<compile_context>
chip_gen: v6e
topology: v6e:2x2x1
jax: 0.10.0
libtpu: 0.0.40
codegen_flags: <defaults>
</compile_context>

<pallas_src>
import functools

import jax
import jax.numpy as jnp
from jax import lax
from jax.experimental import pallas as pl
from jax.experimental.pallas import tpu as pltpu


def eem_kernel(x_ref, e_ref, mask_ref, w1_ref, w2_ref, we_ref, wp_ref,
               a1_ref, hb_ref, out_ref, *, C2, Bt, H, W):
    f32 = jnp.float32
    HW = H * W
    BHW = Bt * HW                       # lane width of one grid step

    x2 = x_ref[...].astype(f32)         # (2, BHW)   image, lane-dense
    e2 = e_ref[...].astype(f32)         # (1, BHW)   edge,  lane-dense
    mk = mask_ref[...]                  # (4, BHW)   precomputed boundary masks
    m_wl, m_wr = mk[0:1], mk[1:2]       # valid for dw = -1 / +1
    m_ht, m_hb = mk[2:3], mk[3:4]       # valid for dh = -1 / +1

    # ---- imhead.conv1 : 1x1 conv (2 -> 2*C2), no bias, on the VPU ----------
    w1 = w1_ref[...].astype(f32)        # (2*C2, 2)
    q1 = w1[:, 0:1] * x2[0:1, :] + w1[:, 1:2] * x2[1:2, :]        # (2*C2, BHW)

    # ---- separable zero-padded 3x3 conv on the flattened lane layout -------
    # shifted[p] = src[p + off]  ==  pltpu.roll(src, (-off) % BHW).
    # Column masks depend only on p % W, so they commute with row shifts of
    # +-W lanes; they also zero every lane that would read across an image
    # boundary inside the lane-concatenated block (and the array wrap-around).
    def conv3x3(src, wt):
        cols = (pltpu.roll(src, shift=1, axis=1) * m_wl,           # dw = -1
                src,                                               # dw =  0
                pltpu.roll(src, shift=BHW - 1, axis=1) * m_wr)     # dw = +1

        def comb(dh):                   # weighted column combine for one dh
            t0 = (dh + 1) * 3
            return (wt[:, t0:t0 + 1] * cols[0]
                    + wt[:, t0 + 1:t0 + 2] * cols[1]
                    + wt[:, t0 + 2:t0 + 3] * cols[2])

        out = comb(0)                                              # dh = 0
        out = out + pltpu.roll(comb(-1), shift=W, axis=1) * m_ht   # dh = -1
        out = out + pltpu.roll(comb(1), shift=BHW - W, axis=1) * m_hb
        return out

    q1c = conv3x3(q1, w2_ref[...].astype(f32))    # (2*C2, BHW)  depthwise
    k_eg = conv3x3(e2, we_ref[...].astype(f32))   # (C2,  BHW)   1 -> C2 chans

    q_im, v_im = q1c[:C2], q1c[C2:]               # (C2, BHW) each

    # ---- per-image fused multi-head attention + project_out ----------------
    wp = wp_ref[...].astype(f32)        # (2, C2)
    a1 = a1_ref[...].astype(f32)        # (C2, 1)  per-row head scale
    hb = hb_ref[...].astype(f32)        # (C2, C2) block-diagonal head bias
    eps2 = 1e-24                        # (torch F.normalize eps = 1e-12) ** 2

    projs = []
    for b in range(Bt):                 # tiny (C2 x C2) work per image
        lo, hi = b * HW, (b + 1) * HW
        q_b, v_b, k_b = q_im[:, lo:hi], v_im[:, lo:hi], k_eg[:, lo:hi]
        qn = q_b * lax.rsqrt(
            jnp.maximum(jnp.sum(q_b * q_b, axis=-1, keepdims=True), eps2))
        kn = k_b * lax.rsqrt(
            jnp.maximum(jnp.sum(k_b * k_b, axis=-1, keepdims=True), eps2))
        s = lax.dot_general(qn, kn, (((1,), (1,)), ((), ())),
                            preferred_element_type=f32)            # (C2, C2)
        s = s * a1 + hb
        s = s - jnp.max(s, axis=-1, keepdims=True)
        p = jnp.exp(s)
        attn = p / jnp.sum(p, axis=-1, keepdims=True)   # exact softmax denom
        # fused project_out:  (wp @ attn) @ v_im  ==  wp @ (attn @ v_im)
        w_small = jnp.dot(wp, attn, preferred_element_type=f32)    # (2, C2)
        projs.append(jnp.dot(w_small, v_b,
                             preferred_element_type=f32))          # (2, HW)

    proj = jnp.concatenate(projs, axis=1) if Bt > 1 else projs[0]  # (2, BHW)
    out_ref[...] = (x2 + proj).astype(out_ref.dtype)


def eem_forward(x, e, params, *, C2, num_heads, block_images=None):
    B, Cin, H, W = x.shape
    assert Cin == 2 and e.shape == (B, 1, H, W)
    HW = H * W
    if block_images is None:
        block_images = next(bt for bt in (8, 4, 2, 1) if B % bt == 0)
    Bt = block_images
    assert B % Bt == 0
    BHW = Bt * HW
    G = B // Bt
    f32 = jnp.float32

    # channel-major, lane-flattened layouts: images concatenated along lanes
    x_cm = x.transpose(1, 0, 2, 3).reshape(2, B * HW)
    e_cm = e.transpose(1, 0, 2, 3).reshape(1, B * HW)

    w1 = params["w1"].astype(f32)                          # (2*C2, 2)
    w2 = params["w2"].reshape(2 * C2, 9).astype(f32)       # (2*C2, 9)
    we = params["we"].reshape(C2, 9).astype(f32)           # (C2, 9)
    wp = params["wp"].astype(f32)                          # (2, C2)

    cd = C2 // num_heads
    a1_rows = jnp.repeat(params["a1"].reshape(-1), cd).reshape(C2, 1).astype(f32)
    head = jnp.arange(C2, dtype=jnp.int32) // cd
    head_bias = jnp.where(head[:, None] == head[None, :], 0.0, -1e30).astype(f32)

    # boundary (zero-padding) masks for one image, tiled across the Bt images
    pos = jnp.arange(HW, dtype=jnp.int32)
    wi, hi = pos % W, pos // W
    mask1 = jnp.stack([(wi >= 1), (wi <= W - 2),
                       (hi >= 1), (hi <= H - 2)], axis=0).astype(f32)
    masks = jnp.tile(mask1, (1, Bt))                       # (4, Bt*HW)

    kernel = functools.partial(eem_kernel, C2=C2, Bt=Bt, H=H, W=W)
    out_cm = pl.pallas_call(
        kernel,
        out_shape=jax.ShapeDtypeStruct((2, B * HW), x.dtype),
        grid_spec=pltpu.PrefetchScalarGridSpec(
            num_scalar_prefetch=0,
            grid=(G,),
            in_specs=[
                pl.BlockSpec((2, BHW), lambda g: (0, g)),
                pl.BlockSpec((1, BHW), lambda g: (0, g)),
                pl.BlockSpec(masks.shape, lambda g: (0, 0)),
                pl.BlockSpec(w1.shape, lambda g: (0, 0)),
                pl.BlockSpec(w2.shape, lambda g: (0, 0)),
                pl.BlockSpec(we.shape, lambda g: (0, 0)),
                pl.BlockSpec(wp.shape, lambda g: (0, 0)),
                pl.BlockSpec(a1_rows.shape, lambda g: (0, 0)),
                pl.BlockSpec(head_bias.shape, lambda g: (0, 0)),
            ],
            out_specs=pl.BlockSpec((2, BHW), lambda g: (0, g)),
        ),
        compiler_params=pltpu.CompilerParams(
            dimension_semantics=("parallel",)),
    )(x_cm, e_cm, masks, w1, w2, we, wp, a1_rows, head_bias)
    return out_cm.reshape(2, B, H, W).transpose(1, 0, 2, 3)


def eem_reference(x, e, params, *, C2, num_heads):
    """Pure-JAX reference (lax.conv based) mirroring the PyTorch forward."""
    w1 = params["w1"][:, :, None, None]          # (2*C2, 2, 1, 1)
    w2 = params["w2"][:, None, :, :]             # (2*C2, 1, 3, 3) depthwise
    we = params["we"][:, None, :, :]             # (C2, 1, 3, 3)
    wp = params["wp"][:, :, None, None]          # (2, C2, 1, 1)
    a1 = params["a1"]
    dn = ("NCHW", "OIHW", "NCHW")
    q1 = lax.conv_general_dilated(x, w1, (1, 1), "VALID", dimension_numbers=dn)
    q1 = lax.conv_general_dilated(q1, w2, (1, 1), "SAME", dimension_numbers=dn,
                                  feature_group_count=2 * C2)
    k = lax.conv_general_dilated(e, we, (1, 1), "SAME", dimension_numbers=dn)
    B, _, H, W = x.shape
    HW = H * W
    cd = C2 // num_heads
    q_im, v_im = q1[:, :C2], q1[:, C2:]
    rsh = lambda t: t.reshape(B, num_heads, cd, HW)
    q_im, v_im, k = rsh(q_im), rsh(v_im), rsh(k)
    l2n = lambda t: t / jnp.maximum(
        jnp.linalg.norm(t, axis=-1, keepdims=True), 1e-12)
    q_im, k = l2n(q_im), l2n(k)
    attn = jnp.einsum("bhcx,bhdx->bhcd", q_im, k) * a1[None, :, None, None]
    attn = jax.nn.softmax(attn, axis=-1)
    out = jnp.einsum("bhcd,bhdx->bhcx", attn, v_im).reshape(B, C2, H, W)
    proj = lax.conv_general_dilated(out, wp, (1, 1), "VALID",
                                    dimension_numbers=dn)
    return x + proj


if __name__ == "__main__":
    B, H, W = 8, 16, 16
    C2, num_heads = 8, 2          # EEM(C, C1, C2=8, num_heads=2, bias=False)

    key = jax.random.PRNGKey(0)
    kx, ke, k1, k2, k3, k4 = jax.random.split(key, 6)

    x = jax.random.normal(kx, (B, 2, H, W), dtype=jnp.float32)   # image (B,2,H,W)
    e = jax.random.normal(ke, (B, 1, H, W), dtype=jnp.float32)   # edge  (B,1,H,W)

    params = {
        # imhead.conv1 : Conv2d(2, 2*C2, 1, bias=False)  -> (2*C2, 2)
        "w1": 0.1 * jax.random.normal(k1, (2 * C2, 2), dtype=jnp.float32),
        # imhead.conv2 : Conv2d(2*C2, 2*C2, 3, groups=2*C2, bias=False) -> (2*C2, 3, 3)
        "w2": 0.1 * jax.random.normal(k2, (2 * C2, 3, 3), dtype=jnp.float32),
        # ehead : Conv2d(1, C2, 3, bias=False) -> (C2, 3, 3)
        "we": 0.1 * jax.random.normal(k3, (C2, 3, 3), dtype=jnp.float32),
        # project_out : Conv2d(C2, 2, 1, bias=False) -> (2, C2)
        "wp": 0.1 * jax.random.normal(k4, (2, C2), dtype=jnp.float32),
        # a1 : nn.Parameter(torch.ones(num_heads, 1, 1)) -> stored as (num_heads,)
        "a1": jnp.ones((num_heads,), dtype=jnp.float32),
    }

    out = eem_forward(x, e, params, C2=C2, num_heads=num_heads, block_images=4)
    out = jax.block_until_ready(out)

    ref = eem_reference(x, e, params, C2=C2, num_heads=num_heads)
    assert out.shape == (B, 2, H, W)
    assert jnp.allclose(out, ref, atol=1e-4, rtol=1e-4), (
        float(jnp.max(jnp.abs(out - ref))))

    print("KERNEL_OK")
</pallas_src>

<mosaic_0001>
module attributes {stable_mosaic.version = 11 : i64} {
  func.func @eem_kernel(%arg0: i32, %arg1: memref<2x1024xf32, #tpu.memory_space<vmem>>, %arg2: memref<1x1024xf32, #tpu.memory_space<vmem>>, %arg3: memref<4x1024xf32, #tpu.memory_space<vmem>>, %arg4: memref<16x2xf32, #tpu.memory_space<vmem>>, %arg5: memref<16x9xf32, #tpu.memory_space<vmem>>, %arg6: memref<8x9xf32, #tpu.memory_space<vmem>>, %arg7: memref<2x8xf32, #tpu.memory_space<vmem>>, %arg8: memref<8x1xf32, #tpu.memory_space<vmem>>, %arg9: memref<8x8xf32, #tpu.memory_space<vmem>>, %arg10: memref<2x1024xf32, #tpu.memory_space<vmem>>) attributes {dimension_semantics = [#tpu.dimension_semantics<parallel>], iteration_bounds = array<i64: 2>, scalar_prefetch = 0 : i64, scratch_operands = 0 : i64, tpu.core_type = #tpu.core_type<tc>, window_params = [{transform_indices = @transform_0, window_bounds = array<i64: 2, 1024>}, {transform_indices = @transform_1, window_bounds = array<i64: 1, 1024>}, {pipeline_mode = #tpu.pipeline_mode<synchronous>, transform_indices = @transform_2, window_bounds = array<i64: 4, 1024>}, {pipeline_mode = #tpu.pipeline_mode<synchronous>, transform_indices = @transform_3, window_bounds = array<i64: 16, 2>}, {pipeline_mode = #tpu.pipeline_mode<synchronous>, transform_indices = @transform_4, window_bounds = array<i64: 16, 9>}, {pipeline_mode = #tpu.pipeline_mode<synchronous>, transform_indices = @transform_5, window_bounds = array<i64: 8, 9>}, {pipeline_mode = #tpu.pipeline_mode<synchronous>, transform_indices = @transform_6, window_bounds = array<i64: 2, 8>}, {pipeline_mode = #tpu.pipeline_mode<synchronous>, transform_indices = @transform_7, window_bounds = array<i64: 8, 1>}, {pipeline_mode = #tpu.pipeline_mode<synchronous>, transform_indices = @transform_8, window_bounds = array<i64: 8, 8>}, {transform_indices = @transform_9, window_bounds = array<i64: 2, 1024>}]} {
    %c0 = arith.constant 0 : index
    %c0_0 = arith.constant 0 : index
    %0 = vector.load %arg1[%c0, %c0_0] : memref<2x1024xf32, #tpu.memory_space<vmem>>, vector<2x1024xf32>
    %c0_1 = arith.constant 0 : index
    %c0_2 = arith.constant 0 : index
    %1 = vector.load %arg2[%c0_1, %c0_2] : memref<1x1024xf32, #tpu.memory_space<vmem>>, vector<1x1024xf32>
    %c0_3 = arith.constant 0 : index
    %c0_4 = arith.constant 0 : index
    %2 = vector.load %arg3[%c0_3, %c0_4] : memref<4x1024xf32, #tpu.memory_space<vmem>>, vector<4x1024xf32>
    %3 = vector.extract_strided_slice %2 {offsets = [0, 0], sizes = [1, 1024], strides = [1, 1]} : vector<4x1024xf32> to vector<1x1024xf32>
    %4 = vector.extract_strided_slice %2 {offsets = [1, 0], sizes = [1, 1024], strides = [1, 1]} : vector<4x1024xf32> to vector<1x1024xf32>
    %5 = vector.extract_strided_slice %2 {offsets = [2, 0], sizes = [1, 1024], strides = [1, 1]} : vector<4x1024xf32> to vector<1x1024xf32>
    %6 = vector.extract_strided_slice %2 {offsets = [3, 0], sizes = [1, 1024], strides = [1, 1]} : vector<4x1024xf32> to vector<1x1024xf32>
    %c0_5 = arith.constant 0 : index
    %c0_6 = arith.constant 0 : index
    %7 = vector.load %arg4[%c0_5, %c0_6] : memref<16x2xf32, #tpu.memory_space<vmem>>, vector<16x2xf32>
    %8 = vector.extract_strided_slice %7 {offsets = [0, 0], sizes = [16, 1], strides = [1, 1]} : vector<16x2xf32> to vector<16x1xf32>
    %9 = vector.extract_strided_slice %0 {offsets = [0, 0], sizes = [1, 1024], strides = [1, 1]} : vector<2x1024xf32> to vector<1x1024xf32>
    %10 = vector.broadcast %8 : vector<16x1xf32> to vector<16x1024xf32>
    %11 = vector.broadcast %9 : vector<1x1024xf32> to vector<16x1024xf32>
    %12 = arith.mulf %10, %11 : vector<16x1024xf32>
    %13 = vector.extract_strided_slice %7 {offsets = [0, 1], sizes = [16, 1], strides = [1, 1]} : vector<16x2xf32> to vector<16x1xf32>
    %14 = vector.extract_strided_slice %0 {offsets = [1, 0], sizes = [1, 1024], strides = [1, 1]} : vector<2x1024xf32> to vector<1x1024xf32>
    %15 = vector.broadcast %13 : vector<16x1xf32> to vector<16x1024xf32>
    %16 = vector.broadcast %14 : vector<1x1024xf32> to vector<16x1024xf32>
    %17 = arith.mulf %15, %16 : vector<16x1024xf32>
    %18 = arith.addf %12, %17 : vector<16x1024xf32>
    %c0_7 = arith.constant 0 : index
    %c0_8 = arith.constant 0 : index
    %19 = vector.load %arg5[%c0_7, %c0_8] : memref<16x9xf32, #tpu.memory_space<vmem>>, vector<16x9xf32>
    %c1_i32 = arith.constant 1 : i32
    %20 = tpu.dynamic_rotate %18 by %c1_i32 dim 1 : vector<16x1024xf32>, i32 -> vector<16x1024xf32>
    %21 = vector.broadcast %3 : vector<1x1024xf32> to vector<16x1024xf32>
    %22 = arith.mulf %20, %21 : vector<16x1024xf32>
    %c1023_i32 = arith.constant 1023 : i32
    %23 = tpu.dynamic_rotate %18 by %c1023_i32 dim 1 : vector<16x1024xf32>, i32 -> vector<16x1024xf32>
    %24 = vector.broadcast %4 : vector<1x1024xf32> to vector<16x1024xf32>
    %25 = arith.mulf %23, %24 : vector<16x1024xf32>
    %26 = vector.extract_strided_slice %19 {offsets = [0, 3], sizes = [16, 1], strides = [1, 1]} : vector<16x9xf32> to vector<16x1xf32>
    %27 = vector.broadcast %26 : vector<16x1xf32> to vector<16x1024xf32>
    %28 = arith.mulf %27, %22 : vector<16x1024xf32>
    %29 = vector.extract_strided_slice %19 {offsets = [0, 4], sizes = [16, 1], strides = [1, 1]} : vector<16x9xf32> to vector<16x1xf32>
    %30 = vector.broadcast %29 : vector<16x1xf32> to vector<16x1024xf32>
    %31 = arith.mulf %30, %18 : vector<16x1024xf32>
    %32 = arith.addf %28, %31 : vector<16x1024xf32>
    %33 = vector.extract_strided_slice %19 {offsets = [0, 5], sizes = [16, 1], strides = [1, 1]} : vector<16x9xf32> to vector<16x1xf32>
    %34 = vector.broadcast %33 : vector<16x1xf32> to vector<16x1024xf32>
    %35 = arith.mulf %34, %25 : vector<16x1024xf32>
    %36 = arith.addf %32, %35 : vector<16x1024xf32>
    %37 = vector.extract_strided_slice %19 {offsets = [0, 0], sizes = [16, 1], strides = [1, 1]} : vector<16x9xf32> to vector<16x1xf32>
    %38 = vector.broadcast %37 : vector<16x1xf32> to vector<16x1024xf32>
    %39 = arith.mulf %38, %22 : vector<16x1024xf32>
    %40 = vector.extract_strided_slice %19 {offsets = [0, 1], sizes = [16, 1], strides = [1, 1]} : vector<16x9xf32> to vector<16x1xf32>
    %41 = vector.broadcast %40 : vector<16x1xf32> to vector<16x1024xf32>
    %42 = arith.mulf %41, %18 : vector<16x1024xf32>
    %43 = arith.addf %39, %42 : vector<16x1024xf32>
    %44 = vector.extract_strided_slice %19 {offsets = [0, 2], sizes = [16, 1], strides = [1, 1]} : vector<16x9xf32> to vector<16x1xf32>
    %45 = vector.broadcast %44 : vector<16x1xf32> to vector<16x1024xf32>
    %46 = arith.mulf %45, %25 : vector<16x1024xf32>
    %47 = arith.addf %43, %46 : vector<16x1024xf32>
    %c16_i32 = arith.constant 16 : i32
    %48 = tpu.dynamic_rotate %47 by %c16_i32 dim 1 : vector<16x1024xf32>, i32 -> vector<16x1024xf32>
    %49 = vector.broadcast %5 : vector<1x1024xf32> to vector<16x1024xf32>
    %50 = arith.mulf %48, %49 : vector<16x1024xf32>
    %51 = arith.addf %36, %50 : vector<16x1024xf32>
    %52 = vector.extract_strided_slice %19 {offsets = [0, 6], sizes = [16, 1], strides = [1, 1]} : vector<16x9xf32> to vector<16x1xf32>
    %53 = vector.broadcast %52 : vector<16x1xf32> to vector<16x1024xf32>
    %54 = arith.mulf %53, %22 : vector<16x1024xf32>
    %55 = vector.extract_strided_slice %19 {offsets = [0, 7], sizes = [16, 1], strides = [1, 1]} : vector<16x9xf32> to vector<16x1xf32>
    %56 = vector.broadcast %55 : vector<16x1xf32> to vector<16x1024xf32>
    %57 = arith.mulf %56, %18 : vector<16x1024xf32>
    %58 = arith.addf %54, %57 : vector<16x1024xf32>
    %59 = vector.extract_strided_slice %19 {offsets = [0, 8], sizes = [16, 1], strides = [1, 1]} : vector<16x9xf32> to vector<16x1xf32>
    %60 = vector.broadcast %59 : vector<16x1xf32> to vector<16x1024xf32>
    %61 = arith.mulf %60, %25 : vector<16x1024xf32>
    %62 = arith.addf %58, %61 : vector<16x1024xf32>
    %c1008_i32 = arith.constant 1008 : i32
    %63 = tpu.dynamic_rotate %62 by %c1008_i32 dim 1 : vector<16x1024xf32>, i32 -> vector<16x1024xf32>
    %64 = vector.broadcast %6 : vector<1x1024xf32> to vector<16x1024xf32>
    %65 = arith.mulf %63, %64 : vector<16x1024xf32>
    %66 = arith.addf %51, %65 : vector<16x1024xf32>
    %c0_9 = arith.constant 0 : index
    %c0_10 = arith.constant 0 : index
    %67 = vector.load %arg6[%c0_9, %c0_10] : memref<8x9xf32, #tpu.memory_space<vmem>>, vector<8x9xf32>
    %c1_i32_11 = arith.constant 1 : i32
    %68 = tpu.dynamic_rotate %1 by %c1_i32_11 dim 1 : vector<1x1024xf32>, i32 -> vector<1x1024xf32>
    %69 = arith.mulf %68, %3 : vector<1x1024xf32>
    %c1023_i32_12 = arith.constant 1023 : i32
    %70 = tpu.dynamic_rotate %1 by %c1023_i32_12 dim 1 : vector<1x1024xf32>, i32 -> vector<1x1024xf32>
    %71 = arith.mulf %70, %4 : vector<1x1024xf32>
    %72 = vector.extract_strided_slice %67 {offsets = [0, 3], sizes = [8, 1], strides = [1, 1]} : vector<8x9xf32> to vector<8x1xf32>
    %73 = vector.broadcast %72 : vector<8x1xf32> to vector<8x1024xf32>
    %74 = vector.broadcast %69 : vector<1x1024xf32> to vector<8x1024xf32>
    %75 = arith.mulf %73, %74 : vector<8x1024xf32>
    %76 = vector.extract_strided_slice %67 {offsets = [0, 4], sizes = [8, 1], strides = [1, 1]} : vector<8x9xf32> to vector<8x1xf32>
    %77 = vector.broadcast %76 : vector<8x1xf32> to vector<8x1024xf32>
    %78 = vector.broadcast %1 : vector<1x1024xf32> to vector<8x1024xf32>
    %79 = arith.mulf %77, %78 : vector<8x1024xf32>
    %80 = arith.addf %75, %79 : vector<8x1024xf32>
    %81 = vector.extract_strided_slice %67 {offsets = [0, 5], sizes = [8, 1], strides = [1, 1]} : vector<8x9xf32> to vector<8x1xf32>
    %82 = vector.broadcast %81 : vector<8x1xf32> to vector<8x1024xf32>
    %83 = vector.broadcast %71 : vector<1x1024xf32> to vector<8x1024xf32>
    %84 = arith.mulf %82, %83 : vector<8x1024xf32>
    %85 = arith.addf %80, %84 : vector<8x1024xf32>
    %86 = vector.extract_strided_slice %67 {offsets = [0, 0], sizes = [8, 1], strides = [1, 1]} : vector<8x9xf32> to vector<8x1xf32>
    %87 = vector.broadcast %86 : vector<8x1xf32> to vector<8x1024xf32>
    %88 = vector.broadcast %69 : vector<1x1024xf32> to vector<8x1024xf32>
    %89 = arith.mulf %87, %88 : vector<8x1024xf32>
    %90 = vector.extract_strided_slice %67 {offsets = [0, 1], sizes = [8, 1], strides = [1, 1]} : vector<8x9xf32> to vector<8x1xf32>
    %91 = vector.broadcast %90 : vector<8x1xf32> to vector<8x1024xf32>
    %92 = vector.broadcast %1 : vector<1x1024xf32> to vector<8x1024xf32>
    %93 = arith.mulf %91, %92 : vector<8x1024xf32>
    %94 = arith.addf %89, %93 : vector<8x1024xf32>
    %95 = vector.extract_strided_slice %67 {offsets = [0, 2], sizes = [8, 1], strides = [1, 1]} : vector<8x9xf32> to vector<8x1xf32>
    %96 = vector.broadcast %95 : vector<8x1xf32> to vector<8x1024xf32>
    %97 = vector.broadcast %71 : vector<1x1024xf32> to vector<8x1024xf32>
    %98 = arith.mulf %96, %97 : vector<8x1024xf32>
    %99 = arith.addf %94, %98 : vector<8x1024xf32>
    %c16_i32_13 = arith.constant 16 : i32
    %100 = tpu.dynamic_rotate %99 by %c16_i32_13 dim 1 : vector<8x1024xf32>, i32 -> vector<8x1024xf32>
    %101 = vector.broadcast %5 : vector<1x1024xf32> to vector<8x1024xf32>
    %102 = arith.mulf %100, %101 : vector<8x1024xf32>
    %103 = arith.addf %85, %102 : vector<8x1024xf32>
    %104 = vector.extract_strided_slice %67 {offsets = [0, 6], sizes = [8, 1], strides = [1, 1]} : vector<8x9xf32> to vector<8x1xf32>
    %105 = vector.broadcast %104 : vector<8x1xf32> to vector<8x1024xf32>
    %106 = vector.broadcast %69 : vector<1x1024xf32> to vector<8x1024xf32>
    %107 = arith.mulf %105, %106 : vector<8x1024xf32>
    %108 = vector.extract_strided_slice %67 {offsets = [0, 7], sizes = [8, 1], strides = [1, 1]} : vector<8x9xf32> to vector<8x1xf32>
    %109 = vector.broadcast %108 : vector<8x1xf32> to vector<8x1024xf32>
    %110 = vector.broadcast %1 : vector<1x1024xf32> to vector<8x1024xf32>
    %111 = arith.mulf %109, %110 : vector<8x1024xf32>
    %112 = arith.addf %107, %111 : vector<8x1024xf32>
    %113 = vector.extract_strided_slice %67 {offsets = [0, 8], sizes = [8, 1], strides = [1, 1]} : vector<8x9xf32> to vector<8x1xf32>
    %114 = vector.broadcast %113 : vector<8x1xf32> to vector<8x1024xf32>
    %115 = vector.broadcast %71 : vector<1x1024xf32> to vector<8x1024xf32>
    %116 = arith.mulf %114, %115 : vector<8x1024xf32>
    %117 = arith.addf %112, %116 : vector<8x1024xf32>
    %c1008_i32_14 = arith.constant 1008 : i32
    %118 = tpu.dynamic_rotate %117 by %c1008_i32_14 dim 1 : vector<8x1024xf32>, i32 -> vector<8x1024xf32>
    %119 = vector.broadcast %6 : vector<1x1024xf32> to vector<8x1024xf32>
    %120 = arith.mulf %118, %119 : vector<8x1024xf32>
    %121 = arith.addf %103, %120 : vector<8x1024xf32>
    %122 = vector.extract_strided_slice %66 {offsets = [0, 0], sizes = [8, 1024], strides = [1, 1]} : vector<16x1024xf32> to vector<8x1024xf32>
    %123 = vector.extract_strided_slice %66 {offsets = [8, 0], sizes = [8, 1024], strides = [1, 1]} : vector<16x1024xf32> to vector<8x1024xf32>
    %c0_15 = arith.constant 0 : index
    %c0_16 = arith.constant 0 : index
    %124 = vector.load %arg7[%c0_15, %c0_16] : memref<2x8xf32, #tpu.memory_space<vmem>>, vector<2x8xf32>
    %c0_17 = arith.constant 0 : index
    %c0_18 = arith.constant 0 : index
    %125 = vector.load %arg8[%c0_17, %c0_18] : memref<8x1xf32, #tpu.memory_space<vmem>>, vector<8x1xf32>
    %c0_19 = arith.constant 0 : index
    %c0_20 = arith.constant 0 : index
    %126 = vector.load %arg9[%c0_19, %c0_20] : memref<8x8xf32, #tpu.memory_space<vmem>>, vector<8x8xf32>
    %127 = vector.extract_strided_slice %122 {offsets = [0, 0], sizes = [8, 256], strides = [1, 1]} : vector<8x1024xf32> to vector<8x256xf32>
    %128 = vector.extract_strided_slice %123 {offsets = [0, 0], sizes = [8, 256], strides = [1, 1]} : vector<8x1024xf32> to vector<8x256xf32>
    %129 = vector.extract_strided_slice %121 {offsets = [0, 0], sizes = [8, 256], strides = [1, 1]} : vector<8x1024xf32> to vector<8x256xf32>
    %130 = arith.mulf %127, %127 : vector<8x256xf32>
    %cst = arith.constant dense<0.000000e+00> : vector<8xf32>
    %131 = vector.multi_reduction <add>, %130, %cst [1] : vector<8x256xf32> to vector<8xf32>
    %132 = vector.shape_cast %131 : vector<8xf32> to vector<8x1xf32>
    %cst_21 = arith.constant 1.000000e-24 : f32
    %133 = vector.broadcast %cst_21 : f32 to vector<8x1xf32>
    %134 = arith.maximumf %132, %133 : vector<8x1xf32>
    %135 = math.rsqrt %134 : vector<8x1xf32>
    %136 = vector.broadcast %135 : vector<8x1xf32> to vector<8x256xf32>
    %137 = arith.mulf %127, %136 : vector<8x256xf32>
    %138 = arith.mulf %129, %129 : vector<8x256xf32>
    %cst_22 = arith.constant dense<0.000000e+00> : vector<8xf32>
    %139 = vector.multi_reduction <add>, %138, %cst_22 [1] : vector<8x256xf32> to vector<8xf32>
    %140 = vector.shape_cast %139 : vector<8xf32> to vector<8x1xf32>
    %cst_23 = arith.constant 1.000000e-24 : f32
    %141 = vector.broadcast %cst_23 : f32 to vector<8x1xf32>
    %142 = arith.maximumf %140, %141 : vector<8x1xf32>
    %143 = math.rsqrt %142 : vector<8x1xf32>
    %144 = vector.broadcast %143 : vector<8x1xf32> to vector<8x256xf32>
    %145 = arith.mulf %129, %144 : vector<8x256xf32>
    %cst_24 = arith.constant dense<0.000000e+00> : vector<8x8xf32>
    %146 = tpu.matmul %137, %145, %cst_24 {dimension_numbers = #tpu.dot_dimension_numbers<[1], [1], [0], [0], [0, 0, 1, 0], [], []>} : vector<8x256xf32>, vector<8x256xf32>, vector<8x8xf32> -> vector<8x8xf32>
    %147 = vector.broadcast %125 : vector<8x1xf32> to vector<8x8xf32>
    %148 = arith.mulf %146, %147 : vector<8x8xf32>
    %149 = arith.addf %148, %126 : vector<8x8xf32>
    %cst_25 = arith.constant dense<0xFF800000> : vector<8xf32>
    %150 = vector.multi_reduction <maximumf>, %149, %cst_25 [1] : vector<8x8xf32> to vector<8xf32>
    %151 = vector.shape_cast %150 : vector<8xf32> to vector<8x1xf32>
    %152 = vector.broadcast %151 : vector<8x1xf32> to vector<8x8xf32>
    %153 = arith.subf %149, %152 : vector<8x8xf32>
    %154 = math.exp %153 : vector<8x8xf32>
    %cst_26 = arith.constant dense<0.000000e+00> : vector<8xf32>
    %155 = vector.multi_reduction <add>, %154, %cst_26 [1] : vector<8x8xf32> to vector<8xf32>
    %156 = vector.shape_cast %155 : vector<8xf32> to vector<8x1xf32>
    %157 = vector.broadcast %156 : vector<8x1xf32> to vector<8x8xf32>
    %158 = arith.divf %154, %157 : vector<8x8xf32>
    %cst_27 = arith.constant dense<0.000000e+00> : vector<2x8xf32>
    %159 = tpu.matmul %124, %158, %cst_27 {dimension_numbers = #tpu.dot_dimension_numbers<[1], [0], [0], [1], [0, 0, 1, 1], [], []>} : vector<2x8xf32>, vector<8x8xf32>, vector<2x8xf32> -> vector<2x8xf32>
    %cst_28 = arith.constant dense<0.000000e+00> : vector<2x256xf32>
    %160 = tpu.matmul %159, %128, %cst_28 {dimension_numbers = #tpu.dot_dimension_numbers<[1], [0], [0], [1], [0, 0, 1, 1], [], []>} : vector<2x8xf32>, vector<8x256xf32>, vector<2x256xf32> -> vector<2x256xf32>
    %161 = vector.extract_strided_slice %122 {offsets = [0, 256], sizes = [8, 256], strides = [1, 1]} : vector<8x1024xf32> to vector<8x256xf32>
    %162 = vector.extract_strided_slice %123 {offsets = [0, 256], sizes = [8, 256], strides = [1, 1]} : vector<8x1024xf32> to vector<8x256xf32>
    %163 = vector.extract_strided_slice %121 {offsets = [0, 256], sizes = [8, 256], strides = [1, 1]} : vector<8x1024xf32> to vector<8x256xf32>
    %164 = arith.mulf %161, %161 : vector<8x256xf32>
    %cst_29 = arith.constant dense<0.000000e+00> : vector<8xf32>
    %165 = vector.multi_reduction <add>, %164, %cst_29 [1] : vector<8x256xf32> to vector<8xf32>
    %166 = vector.shape_cast %165 : vector<8xf32> to vector<8x1xf32>
    %cst_30 = arith.constant 1.000000e-24 : f32
    %167 = vector.broadcast %cst_30 : f32 to vector<8x1xf32>
    %168 = arith.maximumf %166, %167 : vector<8x1xf32>
    %169 = math.rsqrt %168 : vector<8x1xf32>
    %170 = vector.broadcast %169 : vector<8x1xf32> to vector<8x256xf32>
    %171 = arith.mulf %161, %170 : vector<8x256xf32>
    %172 = arith.mulf %163, %163 : vector<8x256xf32>
    %cst_31 = arith.constant dense<0.000000e+00> : vector<8xf32>
    %173 = vector.multi_reduction <add>, %172, %cst_31 [1] : vector<8x256xf32> to vector<8xf32>
    %174 = vector.shape_cast %173 : vector<8xf32> to vector<8x1xf32>
    %cst_32 = arith.constant 1.000000e-24 : f32
    %175 = vector.broadcast %cst_32 : f32 to vector<8x1xf32>
    %176 = arith.maximumf %174, %175 : vector<8x1xf32>
    %177 = math.rsqrt %176 : vector<8x1xf32>
    %178 = vector.broadcast %177 : vector<8x1xf32> to vector<8x256xf32>
    %179 = arith.mulf %163, %178 : vector<8x256xf32>
    %cst_33 = arith.constant dense<0.000000e+00> : vector<8x8xf32>
    %180 = tpu.matmul %171, %179, %cst_33 {dimension_numbers = #tpu.dot_dimension_numbers<[1], [1], [0], [0], [0, 0, 1, 0], [], []>} : vector<8x256xf32>, vector<8x256xf32>, vector<8x8xf32> -> vector<8x8xf32>
    %181 = vector.broadcast %125 : vector<8x1xf32> to vector<8x8xf32>
    %182 = arith.mulf %180, %181 : vector<8x8xf32>
    %183 = arith.addf %182, %126 : vector<8x8xf32>
    %cst_34 = arith.constant dense<0xFF800000> : vector<8xf32>
    %184 = vector.multi_reduction <maximumf>, %183, %cst_34 [1] : vector<8x8xf32> to vector<8xf32>
    %185 = vector.shape_cast %184 : vector<8xf32> to vector<8x1xf32>
    %186 = vector.broadcast %185 : vector<8x1xf32> to vector<8x8xf32>
    %187 = arith.subf %183, %186 : vector<8x8xf32>
    %188 = math.exp %187 : vector<8x8xf32>
    %cst_35 = arith.constant dense<0.000000e+00> : vector<8xf32>
    %189 = vector.multi_reduction <add>, %188, %cst_35 [1] : vector<8x8xf32> to vector<8xf32>
    %190 = vector.shape_cast %189 : vector<8xf32> to vector<8x1xf32>
    %191 = vector.broadcast %190 : vector<8x1xf32> to vector<8x8xf32>
    %192 = arith.divf %188, %191 : vector<8x8xf32>
    %cst_36 = arith.constant dense<0.000000e+00> : vector<2x8xf32>
    %193 = tpu.matmul %124, %192, %cst_36 {dimension_numbers = #tpu.dot_dimension_numbers<[1], [0], [0], [1], [0, 0, 1, 1], [], []>} : vector<2x8xf32>, vector<8x8xf32>, vector<2x8xf32> -> vector<2x8xf32>
    %cst_37 = arith.constant dense<0.000000e+00> : vector<2x256xf32>
    %194 = tpu.matmul %193, %162, %cst_37 {dimension_numbers = #tpu.dot_dimension_numbers<[1], [0], [0], [1], [0, 0, 1, 1], [], []>} : vector<2x8xf32>, vector<8x256xf32>, vector<2x256xf32> -> vector<2x256xf32>
    %195 = vector.extract_strided_slice %122 {offsets = [0, 512], sizes = [8, 256], strides = [1, 1]} : vector<8x1024xf32> to vector<8x256xf32>
    %196 = vector.extract_strided_slice %123 {offsets = [0, 512], sizes = [8, 256], strides = [1, 1]} : vector<8x1024xf32> to vector<8x256xf32>
    %197 = vector.extract_strided_slice %121 {offsets = [0, 512], sizes = [8, 256], strides = [1, 1]} : vector<8x1024xf32> to vector<8x256xf32>
    %198 = arith.mulf %195, %195 : vector<8x256xf32>
    %cst_38 = arith.constant dense<0.000000e+00> : vector<8xf32>
    %199 = vector.multi_reduction <add>, %198, %cst_38 [1] : vector<8x256xf32> to vector<8xf32>
    %200 = vector.shape_cast %199 : vector<8xf32> to vector<8x1xf32>
    %cst_39 = arith.constant 1.000000e-24 : f32
    %201 = vector.broadcast %cst_39 : f32 to vector<8x1xf32>
    %202 = arith.maximumf %200, %201 : vector<8x1xf32>
    %203 = math.rsqrt %202 : vector<8x1xf32>
    %204 = vector.broadcast %203 : vector<8x1xf32> to vector<8x256xf32>
    %205 = arith.mulf %195, %204 : vector<8x256xf32>
    %206 = arith.mulf %197, %197 : vector<8x256xf32>
    %cst_40 = arith.constant dense<0.000000e+00> : vector<8xf32>
    %207 = vector.multi_reduction <add>, %206, %cst_40 [1] : vector<8x256xf32> to vector<8xf32>
    %208 = vector.shape_cast %207 : vector<8xf32> to vector<8x1xf32>
    %cst_41 = arith.constant 1.000000e-24 : f32
    %209 = vector.broadcast %cst_41 : f32 to vector<8x1xf32>
    %210 = arith.maximumf %208, %209 : vector<8x1xf32>
    %211 = math.rsqrt %210 : vector<8x1xf32>
    %212 = vector.broadcast %211 : vector<8x1xf32> to vector<8x256xf32>
    %213 = arith.mulf %197, %212 : vector<8x256xf32>
    %cst_42 = arith.constant dense<0.000000e+00> : vector<8x8xf32>
    %214 = tpu.matmul %205, %213, %cst_42 {dimension_numbers = #tpu.dot_dimension_numbers<[1], [1], [0], [0], [0, 0, 1, 0], [], []>} : vector<8x256xf32>, vector<8x256xf32>, vector<8x8xf32> -> vector<8x8xf32>
    %215 = vector.broadcast %125 : vector<8x1xf32> to vector<8x8xf32>
    %216 = arith.mulf %214, %215 : vector<8x8xf32>
    %217 = arith.addf %216, %126 : vector<8x8xf32>
    %cst_43 = arith.constant dense<0xFF800000> : vector<8xf32>
    %218 = vector.multi_reduction <maximumf>, %217, %cst_43 [1] : vector<8x8xf32> to vector<8xf32>
    %219 = vector.shape_cast %218 : vector<8xf32> to vector<8x1xf32>
    %220 = vector.broadcast %219 : vector<8x1xf32> to vector<8x8xf32>
    %221 = arith.subf %217, %220 : vector<8x8xf32>
    %222 = math.exp %221 : vector<8x8xf32>
    %cst_44 = arith.constant dense<0.000000e+00> : vector<8xf32>
    %223 = vector.multi_reduction <add>, %222, %cst_44 [1] : vector<8x8xf32> to vector<8xf32>
    %224 = vector.shape_cast %223 : vector<8xf32> to vector<8x1xf32>
    %225 = vector.broadcast %224 : vector<8x1xf32> to vector<8x8xf32>
    %226 = arith.divf %222, %225 : vector<8x8xf32>
    %cst_45 = arith.constant dense<0.000000e+00> : vector<2x8xf32>
    %227 = tpu.matmul %124, %226, %cst_45 {dimension_numbers = #tpu.dot_dimension_numbers<[1], [0], [0], [1], [0, 0, 1, 1], [], []>} : vector<2x8xf32>, vector<8x8xf32>, vector<2x8xf32> -> vector<2x8xf32>
    %cst_46 = arith.constant dense<0.000000e+00> : vector<2x256xf32>
    %228 = tpu.matmul %227, %196, %cst_46 {dimension_numbers = #tpu.dot_dimension_numbers<[1], [0], [0], [1], [0, 0, 1, 1], [], []>} : vector<2x8xf32>, vector<8x256xf32>, vector<2x256xf32> -> vector<2x256xf32>
    %229 = vector.extract_strided_slice %122 {offsets = [0, 768], sizes = [8, 256], strides = [1, 1]} : vector<8x1024xf32> to vector<8x256xf32>
    %230 = vector.extract_strided_slice %123 {offsets = [0, 768], sizes = [8, 256], strides = [1, 1]} : vector<8x1024xf32> to vector<8x256xf32>
    %231 = vector.extract_strided_slice %121 {offsets = [0, 768], sizes = [8, 256], strides = [1, 1]} : vector<8x1024xf32> to vector<8x256xf32>
    %232 = arith.mulf %229, %229 : vector<8x256xf32>
    %cst_47 = arith.constant dense<0.000000e+00> : vector<8xf32>
    %233 = vector.multi_reduction <add>, %232, %cst_47 [1] : vector<8x256xf32> to vector<8xf32>
    %234 = vector.shape_cast %233 : vector<8xf32> to vector<8x1xf32>
    %cst_48 = arith.constant 1.000000e-24 : f32
    %235 = vector.broadcast %cst_48 : f32 to vector<8x1xf32>
    %236 = arith.maximumf %234, %235 : vector<8x1xf32>
    %237 = math.rsqrt %236 : vector<8x1xf32>
    %238 = vector.broadcast %237 : vector<8x1xf32> to vector<8x256xf32>
    %239 = arith.mulf %229, %238 : vector<8x256xf32>
    %240 = arith.mulf %231, %231 : vector<8x256xf32>
    %cst_49 = arith.constant dense<0.000000e+00> : vector<8xf32>
    %241 = vector.multi_reduction <add>, %240, %cst_49 [1] : vector<8x256xf32> to vector<8xf32>
    %242 = vector.shape_cast %241 : vector<8xf32> to vector<8x1xf32>
    %cst_50 = arith.constant 1.000000e-24 : f32
    %243 = vector.broadcast %cst_50 : f32 to vector<8x1xf32>
    %244 = arith.maximumf %242, %243 : vector<8x1xf32>
    %245 = math.rsqrt %244 : vector<8x1xf32>
    %246 = vector.broadcast %245 : vector<8x1xf32> to vector<8x256xf32>
    %247 = arith.mulf %231, %246 : vector<8x256xf32>
    %cst_51 = arith.constant dense<0.000000e+00> : vector<8x8xf32>
    %248 = tpu.matmul %239, %247, %cst_51 {dimension_numbers = #tpu.dot_dimension_numbers<[1], [1], [0], [0], [0, 0, 1, 0], [], []>} : vector<8x256xf32>, vector<8x256xf32>, vector<8x8xf32> -> vector<8x8xf32>
    %249 = vector.broadcast %125 : vector<8x1xf32> to vector<8x8xf32>
    %250 = arith.mulf %248, %249 : vector<8x8xf32>
    %251 = arith.addf %250, %126 : vector<8x8xf32>
    %cst_52 = arith.constant dense<0xFF800000> : vector<8xf32>
    %252 = vector.multi_reduction <maximumf>, %251, %cst_52 [1] : vector<8x8xf32> to vector<8xf32>
    %253 = vector.shape_cast %252 : vector<8xf32> to vector<8x1xf32>
    %254 = vector.broadcast %253 : vector<8x1xf32> to vector<8x8xf32>
    %255 = arith.subf %251, %254 : vector<8x8xf32>
    %256 = math.exp %255 : vector<8x8xf32>
    %cst_53 = arith.constant dense<0.000000e+00> : vector<8xf32>
    %257 = vector.multi_reduction <add>, %256, %cst_53 [1] : vector<8x8xf32> to vector<8xf32>
    %258 = vector.shape_cast %257 : vector<8xf32> to vector<8x1xf32>
    %259 = vector.broadcast %258 : vector<8x1xf32> to vector<8x8xf32>
    %260 = arith.divf %256, %259 : vector<8x8xf32>
    %cst_54 = arith.constant dense<0.000000e+00> : vector<2x8xf32>
    %261 = tpu.matmul %124, %260, %cst_54 {dimension_numbers = #tpu.dot_dimension_numbers<[1], [0], [0], [1], [0, 0, 1, 1], [], []>} : vector<2x8xf32>, vector<8x8xf32>, vector<2x8xf32> -> vector<2x8xf32>
    %cst_55 = arith.constant dense<0.000000e+00> : vector<2x256xf32>
    %262 = tpu.matmul %261, %230, %cst_55 {dimension_numbers = #tpu.dot_dimension_numbers<[1], [0], [0], [1], [0, 0, 1, 1], [], []>} : vector<2x8xf32>, vector<8x256xf32>, vector<2x256xf32> -> vector<2x256xf32>
    %263 = tpu.concatenate %160, %194, %228, %262 in 1 : vector<2x256xf32>, vector<2x256xf32>, vector<2x256xf32>, vector<2x256xf32> -> vector<2x1024xf32>
    %264 = arith.addf %0, %263 : vector<2x1024xf32>
    %c0_56 = arith.constant 0 : index
    %c0_57 = arith.constant 0 : index
    %265 = vector.load %arg10[%c0_56, %c0_57] : memref<2x1024xf32, #tpu.memory_space<vmem>>, vector<2x1024xf32>
    tpu.vector_store %arg10[%c0_56, %c0_57], %264 {strides = array<i32>} : memref<2x1024xf32, #tpu.memory_space<vmem>>, vector<2x1024xf32>,
    return
  }
  func.func @transform_0(%arg0: i32) -> (i32, i32) {
    %c0_i32 = arith.constant 0 : i32
    %c0_i32_0 = arith.constant 0 : i32
    return %c0_i32, %arg0 : i32, i32
  }
  func.func @transform_1(%arg0: i32) -> (i32, i32) {
    %c0_i32 = arith.constant 0 : i32
    %c0_i32_0 = arith.constant 0 : i32
    return %c0_i32, %arg0 : i32, i32
  }
  func.func @transform_2(%arg0: i32) -> (i32, i32) {
    %c0_i32 = arith.constant 0 : i32
    %c0_i32_0 = arith.constant 0 : i32
    %c0_i32_1 = arith.constant 0 : i32
    return %c0_i32, %c0_i32_0 : i32, i32
  }
  func.func @transform_3(%arg0: i32) -> (i32, i32) {
    %c0_i32 = arith.constant 0 : i32
    %c0_i32_0 = arith.constant 0 : i32
    %c0_i32_1 = arith.constant 0 : i32
    return %c0_i32, %c0_i32_0 : i32, i32
  }
  func.func @transform_4(%arg0: i32) -> (i32, i32) {
    %c0_i32 = arith.constant 0 : i32
    %c0_i32_0 = arith.constant 0 : i32
    %c0_i32_1 = arith.constant 0 : i32
    return %c0_i32, %c0_i32_0 : i32, i32
  }
  func.func @transform_5(%arg0: i32) -> (i32, i32) {
    %c0_i32 = arith.constant 0 : i32
    %c0_i32_0 = arith.constant 0 : i32
    %c0_i32_1 = arith.constant 0 : i32
    return %c0_i32, %c0_i32_0 : i32, i32
  }
  func.func @transform_6(%arg0: i32) -> (i32, i32) {
    %c0_i32 = arith.constant 0 : i32
    %c0_i32_0 = arith.constant 0 : i32
    %c0_i32_1 = arith.constant 0 : i32
    return %c0_i32, %c0_i32_0 : i32, i32
  }
  func.func @transform_7(%arg0: i32) -> (i32, i32) {
    %c0_i32 = arith.constant 0 : i32
    %c0_i32_0 = arith.constant 0 : i32
    %c0_i32_1 = arith.constant 0 : i32
    return %c0_i32, %c0_i32_0 : i32, i32
  }
  func.func @transform_8(%arg0: i32) -> (i32, i32) {
    %c0_i32 = arith.constant 0 : i32
    %c0_i32_0 = arith.constant 0 : i32
    %c0_i32_1 = arith.constant 0 : i32
    return %c0_i32, %c0_i32_0 : i32, i32
  }
  func.func @transform_9(%arg0: i32) -> (i32, i32) {
    %c0_i32 = arith.constant 0 : i32
    %c0_i32_0 = arith.constant 0 : i32
    return %c0_i32, %arg0 : i32, i32
  }
}

</mosaic_0001>

<llo_original>
// kernel: tpu_custom_call.1
$region0: #{tpu_custom_call.1}
  #allocation0 [shape = 'u32[]', space=smem, size = 0x4, offset = 0x4, fixed_abs, tag = 'smem constant byte address 0x4 - core index']
  #allocation1 [shape = 'u32[144,128]{1,0:T(1,128)}', space=vmem, size = 0x12000, scoped, tag = 'internal scratch']
  %s0 = inlined_call_operand.hbm [shape: f32[2,2048], index: 0, kind: input, shape index: {}]
  %s1 = inlined_call_operand.vmem [shape: f32[1,2048], index: 1, kind: input, shape index: {}]
  %s2 = inlined_call_operand.hbm [shape: f32[4,1024], index: 2, kind: input, shape index: {}]
  %s3 = inlined_call_operand.vmem [shape: f32[16,2], index: 3, kind: input, shape index: {}]
  %s4 = inlined_call_operand.vmem [shape: f32[16,9], index: 4, kind: input, shape index: {}]
  %s5 = inlined_call_operand.hbm [shape: f32[8,9], index: 5, kind: input, shape index: {}]
  %s6 = inlined_call_operand.hbm [shape: f32[2,8], index: 6, kind: input, shape index: {}]
  %s7 = inlined_call_operand.vmem [shape: f32[8,1], index: 7, kind: input, shape index: {}]
  %s8 = inlined_call_operand.vmem [shape: f32[8,8], index: 8, kind: input, shape index: {}]
  %s9 = inlined_call_operand.hbm [shape: f32[2,2048], index: 9, kind: output, shape index: {}]
  %s10 = sld [smem:[#allocation0]]
  $region85: #{tpu_custom_call.1} parent=0
    _
  %s12 = ssub.s32 1, %s10
  %s13 = scalar_select 0, %s12, %s10
  $region1: #{tpu_custom_call.1} parent=0
    #allocation2 [shape = 'u8[16384]{0}', space=vmem, size = 0x4000, scoped, tag = 'input window, operand 0']
    #allocation3 [shape = 's32[2]{0}', space=sflag, size = 0x8, scoped, tag = 'scoped memory for tpu_custom_call.1']
    #allocation4 [shape = 's32[2]{0}', space=sflag, size = 0x8, scoped, tag = 'scoped memory for tpu_custom_call.1']
    #allocation5 [shape = 'u8[16384]{0}', space=vmem, size = 0x4000, scoped, tag = 'input window, operand 2, single buffered']
    #allocation6 [shape = 's32[1]{0}', space=sflag, size = 0x4, scoped, tag = 'scoped memory for tpu_custom_call.1']
    #allocation7 [shape = 'u8[4096]{0}', space=vmem, size = 0x1000, scoped, tag = 'input window, operand 5, single buffered']
    #allocation8 [shape = 'u8[1024]{0}', space=vmem, size = 0x400, scoped, tag = 'input window, operand 6, single buffered']
    #allocation9 [shape = 's32[1]{0}', space=sflag, size = 0x4, scoped, tag = 'scoped memory for tpu_custom_call.1']
    #allocation10 [shape = 'u8[16384]{0}', space=vmem, size = 0x4000, scoped, tag = 'output window, operand 0']
    %14 = vsyncpa [#allocation3], 0
    %s15 = scalar_lea.sflag [#allocation3], 1
    %16 = vsyncpa %s15, 0
    %17 = vsyncpa [#allocation6], 0
    %18 = vsyncpa [#allocation9], 0
    %19 = vsyncpa [#allocation4], 0
    %s20 = scalar_lea.sflag [#allocation4], 1
    %21 = vsyncpa %s20, 0
    loop: start=0, step=1, limit=4
    $region2: #{tpu_custom_call.1} parent=1 // loop_pre_header
      _
    $region3: #{tpu_custom_call.1} parent=1 // loop_header
      %s23 = sphi 0, %s27
      %p24 = scmp.ge.s32.totalorder %s23, 4
      %s33 = sphi 0, %s35
      %s36 = sphi 0, %s33
      %s37 = sphi 0, %s36
      %s53 = sphi 0, %s37
      %s59 = sphi 0, %s61
      %s62 = sphi 0, %s59
      %s63 = sphi 0, %s62
      %s79 = sphi 0, %s63
      %s83 = sphi 0, %s83
      %s85 = sphi 0, %s83
      %s86 = sphi 0, %s85
      %s100 = sphi 0, %s86
      %s104 = sphi 0, %s104
      %s106 = sphi 0, %s104
      %s107 = sphi 0, %s106
      %s121 = sphi 0, %s107
      %s125 = sphi 0, %s125
      %s127 = sphi 0, %s125
      %s128 = sphi 0, %s127
      %s142 = sphi 0, %s128
      %s146 = sphi 0, %s146
      %s148 = sphi 0, %s146
      %s149 = sphi 0, %s148
      %s163 = sphi 0, %s149
      %s167 = sphi 0, %s167
      %s169 = sphi 0, %s167
      %s170 = sphi 0, %s169
      %s184 = sphi 0, %s170
      %s188 = sphi 0, %s188
      %s190 = sphi 0, %s188
      %s191 = sphi 0, %s190
      %s205 = sphi 0, %s191
      %s209 = sphi 0, %s209
      %s211 = sphi 0, %s209
      %s212 = sphi 0, %s211
      %s226 = sphi 0, %s212
      %s232 = sphi 0, %s234
      %s235 = sphi 0, %s232
      %s236 = sphi 0, %s235
      %s252 = sphi 0, %s236
    $region4: #{tpu_custom_call.1} parent=1 // loop_header_branch
      %26 = sbr.rel (%p24) target = $region8
    $region5: #{tpu_custom_call.1} parent=1 // loop_body
      %s28 = ssub.s32 %s23, 1
      %s29 = ssub.s32 %s23, 2
      %s30 = sadd.s32 %s23, 1
      %s31 = ssub.s32 %s23, %s30
      %p32 = scmp.eq.s32.totalorder %s31, 0
      %s34 = sadd.s32 %s33, 1
      %s35 = scalar_select %p32, %s33, %s34
      %p38 = pneg %p32
      %p39 = scmp.eq.s32.totalorder %s23, 1
      %p40 = por %p38, %p39
      %p41 = scmp.ne.s32.totalorder %s33, %s36
      %p42 = scmp.eq.s32.totalorder %s23, 0
      %p43 = por %p41, %p42
      %p44 = scmp.ne.s32.totalorder %s33, %s36
      %p45 = scmp.eq.s32.totalorder %s28, 1
      %p46 = por %p44, %p45
      %p47 = scmp.ne.s32.totalorder %s36, %s37
      %p48 = scmp.eq.s32.totalorder %s28, 0
      %p49 = por %p47, %p48
      %p50 = scmp.ne.s32.totalorder %s36, %s37
      %p51 = scmp.eq.s32.totalorder %s29, 1
      %p52 = por %p50, %p51
      %p54 = scmp.ne.s32.totalorder %s37, %s53
      %p55 = scmp.eq.s32.totalorder %s29, 0
      %p56 = por %p54, %p55
      %s57 = ssub.s32 %s23, %s30
      %p58 = scmp.eq.s32.totalorder %s57, 0
      %s60 = sadd.s32 %s59, 1
      %s61 = scalar_select %p58, %s59, %s60
      %p64 = pneg %p58
      %p65 = scmp.eq.s32.totalorder %s23, 1
      %p66 = por %p64, %p65
      %p67 = scmp.ne.s32.totalorder %s59, %s62
      %p68 = scmp.eq.s32.totalorder %s23, 0
      %p69 = por %p67, %p68
      %p70 = scmp.ne.s32.totalorder %s59, %s62
      %p71 = scmp.eq.s32.totalorder %s28, 1
      %p72 = por %p70, %p71
      %p73 = scmp.ne.s32.totalorder %s62, %s63
      %p74 = scmp.eq.s32.totalorder %s28, 0
      %p75 = por %p73, %p74
      %p76 = scmp.ne.s32.totalorder %s62, %s63
      %p77 = scmp.eq.s32.totalorder %s29, 1
      %p78 = por %p76, %p77
      %p80 = scmp.ne.s32.totalorder %s63, %s79
      %p81 = scmp.eq.s32.totalorder %s29, 0
      %p82 = por %p80, %p81
      %s84 = sadd.s32 %s83, 1
      %p87 = scmp.eq.s32.totalorder %s23, 1
      %p88 = scmp.ne.s32.totalorder %s83, %s85
      %p89 = scmp.eq.s32.totalorder %s23, 0
      %p90 = por %p88, %p89
      %p91 = scmp.ne.s32.totalorder %s83, %s85
      %p92 = scmp.eq.s32.totalorder %s28, 1
      %p93 = por %p91, %p92
      %p94 = scmp.ne.s32.totalorder %s85, %s86
      %p95 = scmp.eq.s32.totalorder %s28, 0
      %p96 = por %p94, %p95
      %p97 = scmp.ne.s32.totalorder %s85, %s86
      %p98 = scmp.eq.s32.totalorder %s29, 1
      %p99 = por %p97, %p98
      %p101 = scmp.ne.s32.totalorder %s86, %s100
      %p102 = scmp.eq.s32.totalorder %s29, 0
      %p103 = por %p101, %p102
      %s105 = sadd.s32 %s104, 1
      %p108 = scmp.eq.s32.totalorder %s23, 1
      %p109 = scmp.ne.s32.totalorder %s104, %s106
      %p110 = scmp.eq.s32.totalorder %s23, 0
      %p111 = por %p109, %p110
      %p112 = scmp.ne.s32.totalorder %s104, %s106
      %p113 = scmp.eq.s32.totalorder %s28, 1
      %p114 = por %p112, %p113
      %p115 = scmp.ne.s32.totalorder %s106, %s107
      %p116 = scmp.eq.s32.totalorder %s28, 0
      %p117 = por %p115, %p116
      %p118 = scmp.ne.s32.totalorder %s106, %s107
      %p119 = scmp.eq.s32.totalorder %s29, 1
      %p120 = por %p118, %p119
      %p122 = scmp.ne.s32.totalorder %s107, %s121
      %p123 = scmp.eq.s32.totalorder %s29, 0
      %p124 = por %p122, %p123
      %s126 = sadd.s32 %s125, 1
      %p129 = scmp.eq.s32.totalorder %s23, 1
      %p130 = scmp.ne.s32.totalorder %s125, %s127
      %p131 = scmp.eq.s32.totalorder %s23, 0
      %p132 = por %p130, %p131
      %p133 = scmp.ne.s32.totalorder %s125, %s127
      %p134 = scmp.eq.s32.totalorder %s28, 1
      %p135 = por %p133, %p134
      %p136 = scmp.ne.s32.totalorder %s127, %s128
      %p137 = scmp.eq.s32.totalorder %s28, 0
      %p138 = por %p136, %p137
      %p139 = scmp.ne.s32.totalorder %s127, %s128
      %p140 = scmp.eq.s32.totalorder %s29, 1
      %p141 = por %p139, %p140
      %p143 = scmp.ne.s32.totalorder %s128, %s142
      %p144 = scmp.eq.s32.totalorder %s29, 0
      %p145 = por %p143, %p144
      %s147 = sadd.s32 %s146, 1
      %p150 = scmp.eq.s32.totalorder %s23, 1
      %p151 = scmp.ne.s32.totalorder %s146, %s148
      %p152 = scmp.eq.s32.totalorder %s23, 0
      %p153 = por %p151, %p152
      %p154 = scmp.ne.s32.totalorder %s146, %s148
      %p155 = scmp.eq.s32.totalorder %s28, 1
      %p156 = por %p154, %p155
      %p157 = scmp.ne.s32.totalorder %s148, %s149
      %p158 = scmp.eq.s32.totalorder %s28, 0
      %p159 = por %p157, %p158
      %p160 = scmp.ne.s32.totalorder %s148, %s149
      %p161 = scmp.eq.s32.totalorder %s29, 1
      %p162 = por %p160, %p161
      %p164 = scmp.ne.s32.totalorder %s149, %s163
      %p165 = scmp.eq.s32.totalorder %s29, 0
      %p166 = por %p164, %p165
      %s168 = sadd.s32 %s167, 1
      %p171 = scmp.eq.s32.totalorder %s23, 1
      %p172 = scmp.ne.s32.totalorder %s167, %s169
      %p173 = scmp.eq.s32.totalorder %s23, 0
      %p174 = por %p172, %p173
      %p175 = scmp.ne.s32.totalorder %s167, %s169
      %p176 = scmp.eq.s32.totalorder %s28, 1
      %p177 = por %p175, %p176
      %p178 = scmp.ne.s32.totalorder %s169, %s170
      %p179 = scmp.eq.s32.totalorder %s28, 0
      %p180 = por %p178, %p179
      %p181 = scmp.ne.s32.totalorder %s169, %s170
      %p182 = scmp.eq.s32.totalorder %s29, 1
      %p183 = por %p181, %p182
      %p185 = scmp.ne.s32.totalorder %s170, %s184
      %p186 = scmp.eq.s32.totalorder %s29, 0
      %p187 = por %p185, %p186
      %s189 = sadd.s32 %s188, 1
      %p192 = scmp.eq.s32.totalorder %s23, 1
      %p193 = scmp.ne.s32.totalorder %s188, %s190
      %p194 = scmp.eq.s32.totalorder %s23, 0
      %p195 = por %p193, %p194
      %p196 = scmp.ne.s32.totalorder %s188, %s190
      %p197 = scmp.eq.s32.totalorder %s28, 1
      %p198 = por %p196, %p197
      %p199 = scmp.ne.s32.totalorder %s190, %s191
      %p200 = scmp.eq.s32.totalorder %s28, 0
      %p201 = por %p199, %p200
      %p202 = scmp.ne.s32.totalorder %s190, %s191
      %p203 = scmp.eq.s32.totalorder %s29, 1
      %p204 = por %p202, %p203
      %p206 = scmp.ne.s32.totalorder %s191, %s205
      %p207 = scmp.eq.s32.totalorder %s29, 0
      %p208 = por %p206, %p207
      %s210 = sadd.s32 %s209, 1
      %p213 = scmp.eq.s32.totalorder %s23, 1
      %p214 = scmp.ne.s32.totalorder %s209, %s211
      %p215 = scmp.eq.s32.totalorder %s23, 0
      %p216 = por %p214, %p215
      %p217 = scmp.ne.s32.totalorder %s209, %s211
      %p218 = scmp.eq.s32.totalorder %s28, 1
      %p219 = por %p217, %p218
      %p220 = scmp.ne.s32.totalorder %s211, %s212
      %p221 = scmp.eq.s32.totalorder %s28, 0
      %p222 = por %p220, %p221
      %p223 = scmp.ne.s32.totalorder %s211, %s212
      %p224 = scmp.eq.s32.totalorder %s29, 1
      %p225 = por %p223, %p224
      %p227 = scmp.ne.s32.totalorder %s212, %s226
      %p228 = scmp.eq.s32.totalorder %s29, 0
      %p229 = por %p227, %p228
      %s230 = ssub.s32 %s23, %s30
      %p231 = scmp.eq.s32.totalorder %s230, 0
      %s233 = sadd.s32 %s232, 1
      %s234 = scalar_select %p231, %s232, %s233
      %p237 = pneg %p231
      %p238 = scmp.eq.s32.totalorder %s23, 1
      %p239 = por %p237, %p238
      %p240 = scmp.ne.s32.totalorder %s232, %s235
      %p241 = scmp.eq.s32.totalorder %s23, 0
      %p242 = por %p240, %p241
      %p243 = scmp.ne.s32.totalorder %s232, %s235
      %p244 = scmp.eq.s32.totalorder %s28, 1
      %p245 = por %p243, %p244
      %p246 = scmp.ne.s32.totalorder %s235, %s236
      %p247 = scmp.eq.s32.totalorder %s28, 0
      %p248 = por %p246, %p247
      %p249 = scmp.ne.s32.totalorder %s235, %s236
      %p250 = scmp.eq.s32.totalorder %s29, 1
      %p251 = por %p249, %p250
      %p253 = scmp.ne.s32.totalorder %s236, %s252
      %p254 = scmp.eq.s32.totalorder %s29, 0
      %p255 = por %p253, %p254
      %p256 = scmp.le.s32.totalorder 1, %s23
      %p257 = scmp.lt.s32.totalorder %s23, 3
      %p258 = pnand %p256, %p257
      %p259 = pneg %p258
      // Predicated region
      $region9: #{tpu_custom_call.1} parent=5 // pred_check
        _
      $region10: #{tpu_custom_call.1} parent=5 // pred_check_branch
        %261 = sbr.rel (%p258) target = $region12
      $region11: #{tpu_custom_call.1} parent=5 // pred_region
        %s262 = ssub.s32 %s23, 1
        // Predicated region
        $region13: #{tpu_custom_call.1} parent=11 // pred_check
          %p263 = pneg %p96
        $region14: #{tpu_custom_call.1} parent=11 // pred_check_branch
          %265 = sbr.rel (%p263) target = $region16
        $region15: #{tpu_custom_call.1} parent=11 // pred_region
          %s267 = ssub.s32 512, 512
          %268 = vsyncadd [#allocation6], %s267
          %s270 = sshll.u32 [#allocation5], 4
          %s271 = int_to_ptr.vmem [resolvable:$true] %s270
          %273 = dma.hbm_to_vmem [thread:$0]  %s2, 512, %s271, [#allocation6]
        $region16: #{tpu_custom_call.1} parent=11 // pred_fallthru
          _
        // Predicated region
        $region17: #{tpu_custom_call.1} parent=11 // pred_check
          %p274 = pneg %p117
        $region18: #{tpu_custom_call.1} parent=11 // pred_check_branch
          %276 = sbr.rel (%p274) target = $region20
        $region19: #{tpu_custom_call.1} parent=11 // pred_region
          _
        $region20: #{tpu_custom_call.1} parent=11 // pred_fallthru
          _
        // Predicated region
        $region21: #{tpu_custom_call.1} parent=11 // pred_check
          %p277 = pneg %p138
        $region22: #{tpu_custom_call.1} parent=11 // pred_check_branch
          %279 = sbr.rel (%p277) target = $region24
        $region23: #{tpu_custom_call.1} parent=11 // pred_region
          _
        $region24: #{tpu_custom_call.1} parent=11 // pred_fallthru
          _
        // Predicated region
        $region25: #{tpu_custom_call.1} parent=11 // pred_check
          %p280 = pneg %p159
        $region26: #{tpu_custom_call.1} parent=11 // pred_check_branch
          %282 = sbr.rel (%p280) target = $region28
        $region27: #{tpu_custom_call.1} parent=11 // pred_region
          %s284 = ssub.s32 128, 128
          %285 = vsyncadd [#allocation6], %s284
          %s287 = sshll.u32 [#allocation7], 4
          %s288 = int_to_ptr.vmem [resolvable:$true] %s287
          %290 = dma.hbm_to_vmem [thread:$0]  %s5, 128, %s288, [#allocation6]
        $region28: #{tpu_custom_call.1} parent=11 // pred_fallthru
          _
        // Predicated region
        $region29: #{tpu_custom_call.1} parent=11 // pred_check
          %p291 = pneg %p180
        $region30: #{tpu_custom_call.1} parent=11 // pred_check_branch
          %293 = sbr.rel (%p291) target = $region32
        $region31: #{tpu_custom_call.1} parent=11 // pred_region
          %s295 = ssub.s32 32, 32
          %296 = vsyncadd [#allocation9], %s295
          %s298 = sshll.u32 [#allocation8], 4
          %s299 = int_to_ptr.vmem [resolvable:$true] %s298
          %301 = dma.hbm_to_vmem [thread:$0]  %s6, 32, %s299, [#allocation9]
        $region32: #{tpu_custom_call.1} parent=11 // pred_fallthru
          _
        // Predicated region
        $region33: #{tpu_custom_call.1} parent=11 // pred_check
          %p302 = pneg %p201
        $region34: #{tpu_custom_call.1} parent=11 // pred_check_branch
          %304 = sbr.rel (%p302) target = $region36
        $region35: #{tpu_custom_call.1} parent=11 // pred_region
          _
        $region36: #{tpu_custom_call.1} parent=11 // pred_fallthru
          _
        // Predicated region
        $region37: #{tpu_custom_call.1} parent=11 // pred_check
          %p305 = pneg %p222
        $region38: #{tpu_custom_call.1} parent=11 // pred_check_branch
          %307 = sbr.rel (%p305) target = $region40
        $region39: #{tpu_custom_call.1} parent=11 // pred_region
          _
        $region40: #{tpu_custom_call.1} parent=11 // pred_fallthru
          _
      $region12: #{tpu_custom_call.1} parent=5 // pred_fallthru
        _
      %p308 = scmp.lt.s32.totalorder %s23, 2
      // Predicated region
      $region41: #{tpu_custom_call.1} parent=5 // pred_check
        %p309 = pneg %p308
      $region42: #{tpu_custom_call.1} parent=5 // pred_check_branch
        %311 = sbr.rel (%p309) target = $region44
      $region43: #{tpu_custom_call.1} parent=5 // pred_region
        // Predicated region
        $region45: #{tpu_custom_call.1} parent=43 // pred_check
          %p312 = pneg %p43
        $region46: #{tpu_custom_call.1} parent=43 // pred_check_branch
          %314 = sbr.rel (%p312) target = $region48
        $region47: #{tpu_custom_call.1} parent=43 // pred_region
          %s315 = sand.u32 %s33, 1
          %s316 = scalar_lea.sflag [#allocation3], %s315
          %s317 = sand.u32 %s33, 1
          %s318 = smul.addr %s317, 16
          %s319 = scalar_lea.vmem [#allocation2], %s318
          %s320 = smul.u32 8, %s23
          %s322 = ssub.s32 256, 256
          %323 = vsyncadd %s316, %s322
          %s324 = smul.addr %s320, 32
          %s325 = scalar_lea.hbm %s0, %s324
          %s327 = sshll.u32 %s319, 4
          %s328 = int_to_ptr.vmem [resolvable:$true] %s327
          %330 = dma.hbm_to_vmem [thread:$0]  %s325, 256, %s328, %s316
        $region48: #{tpu_custom_call.1} parent=43 // pred_fallthru
          _
        // Predicated region
        $region49: #{tpu_custom_call.1} parent=43 // pred_check
          %p331 = pneg %p69
        $region50: #{tpu_custom_call.1} parent=43 // pred_check_branch
          %333 = sbr.rel (%p331) target = $region52
        $region51: #{tpu_custom_call.1} parent=43 // pred_region
          %s334 = smul.u32 8, %s23
          %p335 = scmp.lt.s32.totalorder %s334, 15
          %s336 = scalar_select %p335, %s334, 15
          %s337 = scalar_lea.vmem %s1, %s336
          %s338 = smul.u32 8, %s23
        $region52: #{tpu_custom_call.1} parent=43 // pred_fallthru
          _
      $region44: #{tpu_custom_call.1} parent=5 // pred_fallthru
        _
      %p339 = scmp.le.s32.totalorder 1, %s23
      %p340 = scmp.lt.s32.totalorder %s23, 3
      %p341 = pnand %p339, %p340
      %p342 = pneg %p341
      // Predicated region
      $region53: #{tpu_custom_call.1} parent=5 // pred_check
        _
      $region54: #{tpu_custom_call.1} parent=5 // pred_check_branch
        %344 = sbr.rel (%p341) target = $region56
      $region55: #{tpu_custom_call.1} parent=5 // pred_region
        %s345 = ssub.s32 %s23, 1
        %s346 = sand.u32 %s36, 1
        %s347 = scalar_lea.sflag [#allocation3], %s346
        %s348 = sand.u32 %s36, 1
        %s349 = smul.addr %s348, 16
        %s350 = scalar_lea.vmem [#allocation2], %s349
        // Predicated region
        $region57: #{tpu_custom_call.1} parent=55 // pred_check
          %p351 = pneg %p49
        $region58: #{tpu_custom_call.1} parent=55 // pred_check_branch
          %353 = sbr.rel (%p351) target = $region60
        $region59: #{tpu_custom_call.1} parent=55 // pred_region
          %354 = dma.done %s347, 256
        $region60: #{tpu_custom_call.1} parent=55 // pred_fallthru
          _
        // Predicated region
        $region61: #{tpu_custom_call.1} parent=55 // pred_check
          %p355 = pneg %p96
        $region62: #{tpu_custom_call.1} parent=55 // pred_check_branch
          %357 = sbr.rel (%p355) target = $region64
        $region63: #{tpu_custom_call.1} parent=55 // pred_region
          %358 = dma.done [#allocation6], 512
        $region64: #{tpu_custom_call.1} parent=55 // pred_fallthru
          _
        // Predicated region
        $region65: #{tpu_custom_call.1} parent=55 // pred_check
          %p359 = pneg %p159
        $region66: #{tpu_custom_call.1} parent=55 // pred_check_branch
          %361 = sbr.rel (%p359) target = $region68
        $region67: #{tpu_custom_call.1} parent=55 // pred_region
          %362 = dma.done [#allocation6], 128
        $region68: #{tpu_custom_call.1} parent=55 // pred_fallthru
          _
        // Predicated region
        $region69: #{tpu_custom_call.1} parent=55 // pred_check
          %p363 = pneg %p180
        $region70: #{tpu_custom_call.1} parent=55 // pred_check_branch
          %365 = sbr.rel (%p363) target = $region72
        $region71: #{tpu_custom_call.1} parent=55 // pred_region
          %366 = dma.done [#allocation9], 32
        $region72: #{tpu_custom_call.1} parent=55 // pred_fallthru
          _
        %s367 = sand.u32 %s36, 1
        %s368 = scalar_lea.sflag [#allocation3], %s367
        %s369 = sand.u32 %s36, 1
        %s370 = smul.addr %s369, 16
        %s371 = scalar_lea.vmem [#allocation2], %s370
        %p372 = pneg %p49
        %p373 = pneg %p46
        %s374 = smul.u32 8, %s28
        %p375 = scmp.lt.s32.totalorder %s374, 15
        %s376 = scalar_select %p375, %s374, 15
        %s377 = scalar_lea.vmem %s1, %s376
        %p378 = pneg %p75
        %p379 = pneg %p72
        %p380 = pneg %p96
        %p381 = pneg %p93
        %p382 = pneg %p117
        %p383 = pneg %p114
        %p384 = pneg %p138
        %p385 = pneg %p135
        %p386 = pneg %p159
        %p387 = pneg %p156
        %p388 = pneg %p180
        %p389 = pneg %p177
        %p390 = pneg %p201
        %p391 = pneg %p198
        %p392 = pneg %p222
        %p393 = pneg %p219
        %p394 = pneg %p248
        %p395 = pneg %p245
        %s396 = sand.u32 %s235, 1
        %s397 = scalar_lea.sflag [#allocation4], %s396
        %s398 = sand.u32 %s235, 1
        %s399 = smul.addr %s398, 16
        %s400 = scalar_lea.vmem [#allocation10], %s399
        %s401 = smul.u32 8, %s28
        %s402 = smul.u32 8, %s28
        %p403 = scmp.lt.s32.totalorder %s402, 15
        %s404 = scalar_select %p403, %s402, 15
        %s405 = scalar_lea.vmem %s1, %s404
        %s406 = smul.u32 8, %s28
        %s407 = smul.u32 8, %s28
        %v408 = vld [vmem:[%s350] sm:$0xff]
        %v409 = vld [vmem:[%s350 + $0x8] sm:$0xff]
        %v410 = vld [vmem:[%s405] sm:$0xff]
        %v411 = vld [vmem:[#allocation5] sm:$0xff]
        %v412 = vld [vmem:[#allocation5 + $0x8] sm:$0xff]
        %v413 = vld [vmem:[#allocation5 + $0x10] sm:$0xff]
        %v414 = vld [vmem:[#allocation5 + $0x18] sm:$0xff]
        %v415 = vld [vmem:[%s3] sm:$0xff]
        %v416 = vld [vmem:[%s3 + $0x8] sm:$0xff]
        %418 = vset.pattern.permute.xlu0 0
        %419 = vperm.xlu0 %418, %v415
        %v420 = vpop.permute.xlu0 %419
        %423 = vset.pattern.permute.xlu0 0
        %424 = vperm.xlu0 %423, %v416
        %v425 = vpop.permute.xlu0 %424
        %v429 = vlaneseq
        %v430 = vshrl.u32 %v429, 7
        %v431 = vsub.s32 0, %v430
        %v432 = vrot.slane %v408, %v431
        %v433 = vlaneseq
        %v434 = vshrl.u32 %v433, 7
        %v435 = vsub.s32 2, %v434
        %v436 = vrot.slane %v408, %v435
        %v437 = vlaneseq
        %v438 = vshrl.u32 %v437, 7
        %v439 = vsub.s32 4, %v438
        %v440 = vrot.slane %v408, %v439
        %v441 = vlaneseq
        %v442 = vshrl.u32 %v441, 7
        %v443 = vsub.s32 6, %v442
        %v444 = vrot.slane %v408, %v443
        %v445 = vlaneseq
        %v446 = vshrl.u32 %v445, 7
        %v447 = vsub.s32 0, %v446
        %v448 = vrot.slane %v409, %v447
        %v449 = vlaneseq
        %v450 = vshrl.u32 %v449, 7
        %v451 = vsub.s32 2, %v450
        %v452 = vrot.slane %v409, %v451
        %v453 = vlaneseq
        %v454 = vshrl.u32 %v453, 7
        %v455 = vsub.s32 4, %v454
        %v456 = vrot.slane %v409, %v455
        %v457 = vlaneseq
        %v458 = vshrl.u32 %v457, 7
        %v459 = vsub.s32 6, %v458
        %v460 = vrot.slane %v409, %v459
        %v469 = vlaneseq
        %v470 = vshrl.u32 %v469, 7
        %v471 = vsub.s32 0, %v470
        %v472 = vrot.slane %v432, %v471
        %v473 = vlaneseq
        %v474 = vshrl.u32 %v473, 7
        %v475 = vsub.s32 0, %v474
        %v476 = vrot.slane %v436, %v475
        %v477 = vlaneseq
        %v478 = vshrl.u32 %v477, 7
        %v479 = vsub.s32 0, %v478
        %v480 = vrot.slane %v440, %v479
        %v481 = vlaneseq
        %v482 = vshrl.u32 %v481, 7
        %v483 = vsub.s32 0, %v482
        %v484 = vrot.slane %v444, %v483
        %v485 = vlaneseq
        %v486 = vshrl.u32 %v485, 7
        %v487 = vsub.s32 0, %v486
        %v488 = vrot.slane %v448, %v487
        %v489 = vlaneseq
        %v490 = vshrl.u32 %v489, 7
        %v491 = vsub.s32 0, %v490
        %v492 = vrot.slane %v452, %v491
        %v493 = vlaneseq
        %v494 = vshrl.u32 %v493, 7
        %v495 = vsub.s32 0, %v494
        %v496 = vrot.slane %v456, %v495
        %v497 = vlaneseq
        %v498 = vshrl.u32 %v497, 7
        %v499 = vsub.s32 0, %v498
        %v500 = vrot.slane %v460, %v499
        %v501 = vmul.f32 %v420, %v472
        %v502 = vmul.f32 %v420, %v476
        %v503 = vmul.f32 %v420, %v480
        %v504 = vmul.f32 %v420, %v484
        %v505 = vmul.f32 %v420, %v488
        %v506 = vmul.f32 %v420, %v492
        %v507 = vmul.f32 %v420, %v496
        %v508 = vmul.f32 %v420, %v500
        %v509 = vmul.f32 %v425, %v472
        %v510 = vmul.f32 %v425, %v476
        %v511 = vmul.f32 %v425, %v480
        %v512 = vmul.f32 %v425, %v484
        %v513 = vmul.f32 %v425, %v488
        %v514 = vmul.f32 %v425, %v492
        %v515 = vmul.f32 %v425, %v496
        %v516 = vmul.f32 %v425, %v500
        %517 = vset.pattern.permute.xlu0 1
        %518 = vperm.xlu0 %517, %v415
        %v519 = vpop.permute.xlu0 %518
        %521 = vset.pattern.permute.xlu0 1
        %522 = vperm.xlu0 %521, %v416
        %v523 = vpop.permute.xlu0 %522
        %v525 = vlaneseq
        %v526 = vshrl.u32 %v525, 7
        %v527 = vsub.s32 1, %v526
        %v528 = vrot.slane %v408, %v527
        %v529 = vlaneseq
        %v530 = vshrl.u32 %v529, 7
        %v531 = vsub.s32 3, %v530
        %v532 = vrot.slane %v408, %v531
        %v533 = vlaneseq
        %v534 = vshrl.u32 %v533, 7
        %v535 = vsub.s32 5, %v534
        %v536 = vrot.slane %v408, %v535
        %v537 = vlaneseq
        %v538 = vshrl.u32 %v537, 7
        %v539 = vsub.s32 7, %v538
        %v540 = vrot.slane %v408, %v539
        %v541 = vlaneseq
        %v542 = vshrl.u32 %v541, 7
        %v543 = vsub.s32 1, %v542
        %v544 = vrot.slane %v409, %v543
        %v545 = vlaneseq
        %v546 = vshrl.u32 %v545, 7
        %v547 = vsub.s32 3, %v546
        %v548 = vrot.slane %v409, %v547
        %v549 = vlaneseq
        %v550 = vshrl.u32 %v549, 7
        %v551 = vsub.s32 5, %v550
        %v552 = vrot.slane %v409, %v551
        %v553 = vlaneseq
        %v554 = vshrl.u32 %v553, 7
        %v555 = vsub.s32 7, %v554
        %v556 = vrot.slane %v409, %v555
        %v565 = vlaneseq
        %v566 = vshrl.u32 %v565, 7
        %v567 = vsub.s32 1, %v566
        %v568 = vrot.slane %v528, %v567
        %v569 = vlaneseq
        %v570 = vshrl.u32 %v569, 7
        %v571 = vsub.s32 1, %v570
        %v572 = vrot.slane %v532, %v571
        %v573 = vlaneseq
        %v574 = vshrl.u32 %v573, 7
        %v575 = vsub.s32 1, %v574
        %v576 = vrot.slane %v536, %v575
        %v577 = vlaneseq
        %v578 = vshrl.u32 %v577, 7
        %v579 = vsub.s32 1, %v578
        %v580 = vrot.slane %v540, %v579
        %v581 = vlaneseq
        %v582 = vshrl.u32 %v581, 7
        %v583 = vsub.s32 1, %v582
        %v584 = vrot.slane %v544, %v583
        %v585 = vlaneseq
        %v586 = vshrl.u32 %v585, 7
        %v587 = vsub.s32 1, %v586
        %v588 = vrot.slane %v548, %v587
        %v589 = vlaneseq
        %v590 = vshrl.u32 %v589, 7
        %v591 = vsub.s32 1, %v590
        %v592 = vrot.slane %v552, %v591
        %v593 = vlaneseq
        %v594 = vshrl.u32 %v593, 7
        %v595 = vsub.s32 1, %v594
        %v596 = vrot.slane %v556, %v595
        %v597 = vmul.f32 %v519, %v568
        %v598 = vmul.f32 %v519, %v572
        %v599 = vmul.f32 %v519, %v576
        %v600 = vmul.f32 %v519, %v580
        %v601 = vmul.f32 %v519, %v584
        %v602 = vmul.f32 %v519, %v588
        %v603 = vmul.f32 %v519, %v592
        %v604 = vmul.f32 %v519, %v596
        %v605 = vmul.f32 %v523, %v568
        %v606 = vmul.f32 %v523, %v572
        %v607 = vmul.f32 %v523, %v576
        %v608 = vmul.f32 %v523, %v580
        %v609 = vmul.f32 %v523, %v584
        %v610 = vmul.f32 %v523, %v588
        %v611 = vmul.f32 %v523, %v592
        %v612 = vmul.f32 %v523, %v596
        %v613 = vadd.f32 %v501, %v597
        %v614 = vadd.f32 %v502, %v598
        %v615 = vadd.f32 %v503, %v599
        %v616 = vadd.f32 %v504, %v600
        %v617 = vadd.f32 %v505, %v601
        %v618 = vadd.f32 %v506, %v602
        %v619 = vadd.f32 %v507, %v603
        %v620 = vadd.f32 %v508, %v604
        %v621 = vadd.f32 %v509, %v605
        %v622 = vadd.f32 %v510, %v606
        %v623 = vadd.f32 %v511, %v607
        %v624 = vadd.f32 %v512, %v608
        %v625 = vadd.f32 %v513, %v609
        %v626 = vadd.f32 %v514, %v610
        %v627 = vadd.f32 %v515, %v611
        %v628 = vadd.f32 %v516, %v612
        %v629 = vld [vmem:[%s4] sm:$0xff]
        %v630 = vld [vmem:[%s4 + $0x8] sm:$0xff]
        %631 = vrot.lane.b32.xlu0 %v613, 1
        %v632 = vpop.permute.xlu0 %631
        %633 = vrot.lane.b32.xlu0 %v621, 1
        %v634 = vpop.permute.xlu0 %633
        %635 = vrot.lane.b32.xlu0 %v614, 1
        %v636 = vpop.permute.xlu0 %635
        %637 = vrot.lane.b32.xlu0 %v622, 1
        %v638 = vpop.permute.xlu0 %637
        %639 = vrot.lane.b32.xlu0 %v615, 1
        %v640 = vpop.permute.xlu0 %639
        %641 = vrot.lane.b32.xlu0 %v623, 1
        %v642 = vpop.permute.xlu0 %641
        %643 = vrot.lane.b32.xlu0 %v616, 1
        %v644 = vpop.permute.xlu0 %643
        %645 = vrot.lane.b32.xlu0 %v624, 1
        %v646 = vpop.permute.xlu0 %645
        %647 = vrot.lane.b32.xlu0 %v617, 1
        %v648 = vpop.permute.xlu0 %647
        %649 = vrot.lane.b32.xlu0 %v625, 1
        %v650 = vpop.permute.xlu0 %649
        %651 = vrot.lane.b32.xlu0 %v618, 1
        %v652 = vpop.permute.xlu0 %651
        %653 = vrot.lane.b32.xlu0 %v626, 1
        %v654 = vpop.permute.xlu0 %653
        %655 = vrot.lane.b32.xlu0 %v619, 1
        %v656 = vpop.permute.xlu0 %655
        %657 = vrot.lane.b32.xlu0 %v627, 1
        %v658 = vpop.permute.xlu0 %657
        %659 = vrot.lane.b32.xlu0 %v620, 1
        %v660 = vpop.permute.xlu0 %659
        %661 = vrot.lane.b32.xlu0 %v628, 1
        %v662 = vpop.permute.xlu0 %661
        %v663 = vlaneseq
        %v664 = vand.u32 %v663, 127
        %vm665 = vcmp.lt.s32.totalorder %v664, 1
        %v666 = vsel %vm665, %v656, %v660
        %v667 = vsel %vm665, %v658, %v662
        %v668 = vsel %vm665, %v652, %v656
        %v669 = vsel %vm665, %v654, %v658
        %v670 = vsel %vm665, %v648, %v652
        %v671 = vsel %vm665, %v650, %v654
        %v672 = vsel %vm665, %v644, %v648
        %v673 = vsel %vm665, %v646, %v650
        %v674 = vsel %vm665, %v640, %v644
        %v675 = vsel %vm665, %v642, %v646
        %v676 = vsel %vm665, %v636, %v640
        %v677 = vsel %vm665, %v638, %v642
        %v678 = vsel %vm665, %v632, %v636
        %v679 = vsel %vm665, %v634, %v638
        %v680 = vsel %vm665, %v660, %v632
        %v681 = vsel %vm665, %v662, %v634
        %v686 = vlaneseq
        %v687 = vshrl.u32 %v686, 7
        %v688 = vsub.s32 0, %v687
        %v689 = vrot.slane %v411, %v688
        %v690 = vlaneseq
        %v691 = vshrl.u32 %v690, 7
        %v692 = vsub.s32 4, %v691
        %v693 = vrot.slane %v411, %v692
        %v694 = vlaneseq
        %v695 = vshrl.u32 %v694, 7
        %v696 = vsub.s32 0, %v695
        %v697 = vrot.slane %v412, %v696
        %v698 = vlaneseq
        %v699 = vshrl.u32 %v698, 7
        %v700 = vsub.s32 4, %v699
        %v701 = vrot.slane %v412, %v700
        %v702 = vlaneseq
        %v703 = vshrl.u32 %v702, 7
        %v704 = vsub.s32 0, %v703
        %v705 = vrot.slane %v413, %v704
        %v706 = vlaneseq
        %v707 = vshrl.u32 %v706, 7
        %v708 = vsub.s32 4, %v707
        %v709 = vrot.slane %v413, %v708
        %v710 = vlaneseq
        %v711 = vshrl.u32 %v710, 7
        %v712 = vsub.s32 0, %v711
        %v713 = vrot.slane %v414, %v712
        %v714 = vlaneseq
        %v715 = vshrl.u32 %v714, 7
        %v716 = vsub.s32 4, %v715
        %v717 = vrot.slane %v414, %v716
        %v726 = vlaneseq
        %v727 = vshrl.u32 %v726, 7
        %v728 = vsub.s32 0, %v727
        %v729 = vrot.slane %v689, %v728
        %v730 = vlaneseq
        %v731 = vshrl.u32 %v730, 7
        %v732 = vsub.s32 0, %v731
        %v733 = vrot.slane %v693, %v732
        %v734 = vlaneseq
        %v735 = vshrl.u32 %v734, 7
        %v736 = vsub.s32 0, %v735
        %v737 = vrot.slane %v697, %v736
        %v738 = vlaneseq
        %v739 = vshrl.u32 %v738, 7
        %v740 = vsub.s32 0, %v739
        %v741 = vrot.slane %v701, %v740
        %v742 = vlaneseq
        %v743 = vshrl.u32 %v742, 7
        %v744 = vsub.s32 0, %v743
        %v745 = vrot.slane %v705, %v744
        %v746 = vlaneseq
        %v747 = vshrl.u32 %v746, 7
        %v748 = vsub.s32 0, %v747
        %v749 = vrot.slane %v709, %v748
        %v750 = vlaneseq
        %v751 = vshrl.u32 %v750, 7
        %v752 = vsub.s32 0, %v751
        %v753 = vrot.slane %v713, %v752
        %v754 = vlaneseq
        %v755 = vshrl.u32 %v754, 7
        %v756 = vsub.s32 0, %v755
        %v757 = vrot.slane %v717, %v756
        %v758 = vmul.f32 %v680, %v729
        %v759 = vmul.f32 %v678, %v733
        %v760 = vmul.f32 %v676, %v737
        %v761 = vmul.f32 %v674, %v741
        %v762 = vmul.f32 %v672, %v745
        %v763 = vmul.f32 %v670, %v749
        %v764 = vmul.f32 %v668, %v753
        %v765 = vmul.f32 %v666, %v757
        %v766 = vmul.f32 %v681, %v729
        %v767 = vmul.f32 %v679, %v733
        %v768 = vmul.f32 %v677, %v737
        %v769 = vmul.f32 %v675, %v741
        %v770 = vmul.f32 %v673, %v745
        %v771 = vmul.f32 %v671, %v749
        %v772 = vmul.f32 %v669, %v753
        %v773 = vmul.f32 %v667, %v757
        %774 = vrot.lane.b32.xlu0 %v613, 127
        %v775 = vpop.permute.xlu0 %774
        %776 = vrot.lane.b32.xlu0 %v621, 127
        %v777 = vpop.permute.xlu0 %776
        %778 = vrot.lane.b32.xlu0 %v614, 127
        %v779 = vpop.permute.xlu0 %778
        %780 = vrot.lane.b32.xlu0 %v622, 127
        %v781 = vpop.permute.xlu0 %780
        %782 = vrot.lane.b32.xlu0 %v615, 127
        %v783 = vpop.permute.xlu0 %782
        %784 = vrot.lane.b32.xlu0 %v623, 127
        %v785 = vpop.permute.xlu0 %784
        %786 = vrot.lane.b32.xlu0 %v616, 127
        %v787 = vpop.permute.xlu0 %786
        %788 = vrot.lane.b32.xlu0 %v624, 127
        %v789 = vpop.permute.xlu0 %788
        %790 = vrot.lane.b32.xlu0 %v617, 127
        %v791 = vpop.permute.xlu0 %790
        %792 = vrot.lane.b32.xlu0 %v625, 127
        %v793 = vpop.permute.xlu0 %792
        %794 = vrot.lane.b32.xlu0 %v618, 127
        %v795 = vpop.permute.xlu0 %794
        %796 = vrot.lane.b32.xlu0 %v626, 127
        %v797 = vpop.permute.xlu0 %796
        %798 = vrot.lane.b32.xlu0 %v619, 127
        %v799 = vpop.permute.xlu0 %798
        %800 = vrot.lane.b32.xlu0 %v627, 127
        %v801 = vpop.permute.xlu0 %800
        %802 = vrot.lane.b32.xlu0 %v620, 127
        %v803 = vpop.permute.xlu0 %802
        %804 = vrot.lane.b32.xlu0 %v628, 127
        %v805 = vpop.permute.xlu0 %804
        %vm806 = vcmp.lt.s32.totalorder %v664, 127
        %v807 = vsel %vm806, %v799, %v803
        %v808 = vsel %vm806, %v801, %v805
        %v809 = vsel %vm806, %v795, %v799
        %v810 = vsel %vm806, %v797, %v801
        %v811 = vsel %vm806, %v791, %v795
        %v812 = vsel %vm806, %v793, %v797
        %v813 = vsel %vm806, %v787, %v791
        %v814 = vsel %vm806, %v789, %v793
        %v815 = vsel %vm806, %v783, %v787
        %v816 = vsel %vm806, %v785, %v789
        %v817 = vsel %vm806, %v779, %v783
        %v818 = vsel %vm806, %v781, %v785
        %v819 = vsel %vm806, %v775, %v779
        %v820 = vsel %vm806, %v777, %v781
        %v821 = vsel %vm806, %v803, %v775
        %v822 = vsel %vm806, %v805, %v777
        %v823 = vlaneseq
        %v824 = vshrl.u32 %v823, 7
        %v825 = vsub.s32 1, %v824
        %v826 = vrot.slane %v411, %v825
        %v827 = vlaneseq
        %v828 = vshrl.u32 %v827, 7
        %v829 = vsub.s32 5, %v828
        %v830 = vrot.slane %v411, %v829
        %v831 = vlaneseq
        %v832 = vshrl.u32 %v831, 7
        %v833 = vsub.s32 1, %v832
        %v834 = vrot.slane %v412, %v833
        %v835 = vlaneseq
        %v836 = vshrl.u32 %v835, 7
        %v837 = vsub.s32 5, %v836
        %v838 = vrot.slane %v412, %v837
        %v839 = vlaneseq
        %v840 = vshrl.u32 %v839, 7
        %v841 = vsub.s32 1, %v840
        %v842 = vrot.slane %v413, %v841
        %v843 = vlaneseq
        %v844 = vshrl.u32 %v843, 7
        %v845 = vsub.s32 5, %v844
        %v846 = vrot.slane %v413, %v845
        %v847 = vlaneseq
        %v848 = vshrl.u32 %v847, 7
        %v849 = vsub.s32 1, %v848
        %v850 = vrot.slane %v414, %v849
        %v851 = vlaneseq
        %v852 = vshrl.u32 %v851, 7
        %v853 = vsub.s32 5, %v852
        %v854 = vrot.slane %v414, %v853
        %v863 = vlaneseq
        %v864 = vshrl.u32 %v863, 7
        %v865 = vsub.s32 1, %v864
        %v866 = vrot.slane %v826, %v865
        %v867 = vlaneseq
        %v868 = vshrl.u32 %v867, 7
        %v869 = vsub.s32 1, %v868
        %v870 = vrot.slane %v830, %v869
        %v871 = vlaneseq
        %v872 = vshrl.u32 %v871, 7
        %v873 = vsub.s32 1, %v872
        %v874 = vrot.slane %v834, %v873
        %v875 = vlaneseq
        %v876 = vshrl.u32 %v875, 7
        %v877 = vsub.s32 1, %v876
        %v878 = vrot.slane %v838, %v877
        %v879 = vlaneseq
        %v880 = vshrl.u32 %v879, 7
        %v881 = vsub.s32 1, %v880
        %v882 = vrot.slane %v842, %v881
        %v883 = vlaneseq
        %v884 = vshrl.u32 %v883, 7
        %v885 = vsub.s32 1, %v884
        %v886 = vrot.slane %v846, %v885
        %v887 = vlaneseq
        %v888 = vshrl.u32 %v887, 7
        %v889 = vsub.s32 1, %v888
        %v890 = vrot.slane %v850, %v889
        %v891 = vlaneseq
        %v892 = vshrl.u32 %v891, 7
        %v893 = vsub.s32 1, %v892
        %v894 = vrot.slane %v854, %v893
        %v895 = vmul.f32 %v819, %v866
        %v896 = vmul.f32 %v817, %v870
        %v897 = vmul.f32 %v815, %v874
        %v898 = vmul.f32 %v813, %v878
        %v899 = vmul.f32 %v811, %v882
        %v900 = vmul.f32 %v809, %v886
        %v901 = vmul.f32 %v807, %v890
        %v902 = vmul.f32 %v821, %v894
        %v903 = vmul.f32 %v820, %v866
        %v904 = vmul.f32 %v818, %v870
        %v905 = vmul.f32 %v816, %v874
        %v906 = vmul.f32 %v814, %v878
        %v907 = vmul.f32 %v812, %v882
        %v908 = vmul.f32 %v810, %v886
        %v909 = vmul.f32 %v808, %v890
        %v910 = vmul.f32 %v822, %v894
        %912 = vset.pattern.permute.xlu0 3
        %913 = vperm.xlu0 %912, %v629
        %v914 = vpop.permute.xlu0 %913
        %917 = vset.pattern.permute.xlu0 3
        %918 = vperm.xlu0 %917, %v630
        %v919 = vpop.permute.xlu0 %918
        %v921 = vmul.f32 %v914, %v758
        %v922 = vmul.f32 %v914, %v759
        %v923 = vmul.f32 %v914, %v760
        %v924 = vmul.f32 %v914, %v761
        %v925 = vmul.f32 %v914, %v762
        %v926 = vmul.f32 %v914, %v763
        %v927 = vmul.f32 %v914, %v764
        %v928 = vmul.f32 %v914, %v765
        %v929 = vmul.f32 %v919, %v766
        %v930 = vmul.f32 %v919, %v767
        %v931 = vmul.f32 %v919, %v768
        %v932 = vmul.f32 %v919, %v769
        %v933 = vmul.f32 %v919, %v770
        %v934 = vmul.f32 %v919, %v771
        %v935 = vmul.f32 %v919, %v772
        %v936 = vmul.f32 %v919, %v773
        %937 = vset.pattern.permute.xlu0 4
        %938 = vperm.xlu0 %937, %v629
        %v939 = vpop.permute.xlu0 %938
        %941 = vset.pattern.permute.xlu0 4
        %942 = vperm.xlu0 %941, %v630
        %v943 = vpop.permute.xlu0 %942
        %v945 = vmul.f32 %v939, %v613
        %v946 = vmul.f32 %v939, %v614
        %v947 = vmul.f32 %v939, %v615
        %v948 = vmul.f32 %v939, %v616
        %v949 = vmul.f32 %v939, %v617
        %v950 = vmul.f32 %v939, %v618
        %v951 = vmul.f32 %v939, %v619
        %v952 = vmul.f32 %v939, %v620
        %v953 = vmul.f32 %v943, %v621
        %v954 = vmul.f32 %v943, %v622
        %v955 = vmul.f32 %v943, %v623
        %v956 = vmul.f32 %v943, %v624
        %v957 = vmul.f32 %v943, %v625
        %v958 = vmul.f32 %v943, %v626
        %v959 = vmul.f32 %v943, %v627
        %v960 = vmul.f32 %v943, %v628
        %v961 = vadd.f32 %v921, %v945
        %v962 = vadd.f32 %v922, %v946
        %v963 = vadd.f32 %v923, %v947
        %v964 = vadd.f32 %v924, %v948
        %v965 = vadd.f32 %v925, %v949
        %v966 = vadd.f32 %v926, %v950
        %v967 = vadd.f32 %v927, %v951
        %v968 = vadd.f32 %v928, %v952
        %v969 = vadd.f32 %v929, %v953
        %v970 = vadd.f32 %v930, %v954
        %v971 = vadd.f32 %v931, %v955
        %v972 = vadd.f32 %v932, %v956
        %v973 = vadd.f32 %v933, %v957
        %v974 = vadd.f32 %v934, %v958
        %v975 = vadd.f32 %v935, %v959
        %v976 = vadd.f32 %v936, %v960
        %977 = vset.pattern.permute.xlu0 5
        %978 = vperm.xlu0 %977, %v629
        %v979 = vpop.permute.xlu0 %978
        %981 = vset.pattern.permute.xlu0 5
        %982 = vperm.xlu0 %981, %v630
        %v983 = vpop.permute.xlu0 %982
        %v985 = vmul.f32 %v979, %v895
        %v986 = vmul.f32 %v979, %v896
        %v987 = vmul.f32 %v979, %v897
        %v988 = vmul.f32 %v979, %v898
        %v989 = vmul.f32 %v979, %v899
        %v990 = vmul.f32 %v979, %v900
        %v991 = vmul.f32 %v979, %v901
        %v992 = vmul.f32 %v979, %v902
        %v993 = vmul.f32 %v983, %v903
        %v994 = vmul.f32 %v983, %v904
        %v995 = vmul.f32 %v983, %v905
        %v996 = vmul.f32 %v983, %v906
        %v997 = vmul.f32 %v983, %v907
        %v998 = vmul.f32 %v983, %v908
        %v999 = vmul.f32 %v983, %v909
        %v1000 = vmul.f32 %v983, %v910
        %v1001 = vadd.f32 %v961, %v985
        %v1002 = vadd.f32 %v962, %v986
        %v1003 = vadd.f32 %v963, %v987
        %v1004 = vadd.f32 %v964, %v988
        %v1005 = vadd.f32 %v965, %v989
        %v1006 = vadd.f32 %v966, %v990
        %v1007 = vadd.f32 %v967, %v991
        %v1008 = vadd.f32 %v968, %v992
        %v1009 = vadd.f32 %v969, %v993
        %v1010 = vadd.f32 %v970, %v994
        %v1011 = vadd.f32 %v971, %v995
        %v1012 = vadd.f32 %v972, %v996
        %v1013 = vadd.f32 %v973, %v997
        %v1014 = vadd.f32 %v974, %v998
        %v1015 = vadd.f32 %v975, %v999
        %v1016 = vadd.f32 %v976, %v1000
        %1017 = vset.pattern.permute.xlu0 0
        %1018 = vperm.xlu0 %1017, %v629
        %v1019 = vpop.permute.xlu0 %1018
        %1021 = vset.pattern.permute.xlu0 0
        %1022 = vperm.xlu0 %1021, %v630
        %v1023 = vpop.permute.xlu0 %1022
        %v1025 = vmul.f32 %v1019, %v758
        %v1026 = vmul.f32 %v1019, %v759
        %v1027 = vmul.f32 %v1019, %v760
        %v1028 = vmul.f32 %v1019, %v761
        %v1029 = vmul.f32 %v1019, %v762
        %v1030 = vmul.f32 %v1019, %v763
        %v1031 = vmul.f32 %v1019, %v764
        %v1032 = vmul.f32 %v1019, %v765
        %v1033 = vmul.f32 %v1023, %v766
        %v1034 = vmul.f32 %v1023, %v767
        %v1035 = vmul.f32 %v1023, %v768
        %v1036 = vmul.f32 %v1023, %v769
        %v1037 = vmul.f32 %v1023, %v770
        %v1038 = vmul.f32 %v1023, %v771
        %v1039 = vmul.f32 %v1023, %v772
        %v1040 = vmul.f32 %v1023, %v773
        %1041 = vset.pattern.permute.xlu0 1
        %1042 = vperm.xlu0 %1041, %v629
        %v1043 = vpop.permute.xlu0 %1042
        %1045 = vset.pattern.permute.xlu0 1
        %1046 = vperm.xlu0 %1045, %v630
        %v1047 = vpop.permute.xlu0 %1046
        %v1049 = vmul.f32 %v1043, %v613
        %v1050 = vmul.f32 %v1043, %v614
        %v1051 = vmul.f32 %v1043, %v615
        %v1052 = vmul.f32 %v1043, %v616
        %v1053 = vmul.f32 %v1043, %v617
        %v1054 = vmul.f32 %v1043, %v618
        %v1055 = vmul.f32 %v1043, %v619
        %v1056 = vmul.f32 %v1043, %v620
        %v1057 = vmul.f32 %v1047, %v621
        %v1058 = vmul.f32 %v1047, %v622
        %v1059 = vmul.f32 %v1047, %v623
        %v1060 = vmul.f32 %v1047, %v624
        %v1061 = vmul.f32 %v1047, %v625
        %v1062 = vmul.f32 %v1047, %v626
        %v1063 = vmul.f32 %v1047, %v627
        %v1064 = vmul.f32 %v1047, %v628
        %v1065 = vadd.f32 %v1025, %v1049
        %v1066 = vadd.f32 %v1026, %v1050
        %v1067 = vadd.f32 %v1027, %v1051
        %v1068 = vadd.f32 %v1028, %v1052
        %v1069 = vadd.f32 %v1029, %v1053
        %v1070 = vadd.f32 %v1030, %v1054
        %v1071 = vadd.f32 %v1031, %v1055
        %v1072 = vadd.f32 %v1032, %v1056
        %v1073 = vadd.f32 %v1033, %v1057
        %v1074 = vadd.f32 %v1034, %v1058
        %v1075 = vadd.f32 %v1035, %v1059
        %v1076 = vadd.f32 %v1036, %v1060
        %v1077 = vadd.f32 %v1037, %v1061
        %v1078 = vadd.f32 %v1038, %v1062
        %v1079 = vadd.f32 %v1039, %v1063
        %v1080 = vadd.f32 %v1040, %v1064
        %1081 = vset.pattern.permute.xlu0 2
        %1082 = vperm.xlu0 %1081, %v629
        %v1083 = vpop.permute.xlu0 %1082
        %1085 = vset.pattern.permute.xlu0 2
        %1086 = vperm.xlu0 %1085, %v630
        %v1087 = vpop.permute.xlu0 %1086
        %v1089 = vmul.f32 %v1083, %v895
        %v1090 = vmul.f32 %v1083, %v896
        %v1091 = vmul.f32 %v1083, %v897
        %v1092 = vmul.f32 %v1083, %v898
        %v1093 = vmul.f32 %v1083, %v899
        %v1094 = vmul.f32 %v1083, %v900
        %v1095 = vmul.f32 %v1083, %v901
        %v1096 = vmul.f32 %v1083, %v902
        %v1097 = vmul.f32 %v1087, %v903
        %v1098 = vmul.f32 %v1087, %v904
        %v1099 = vmul.f32 %v1087, %v905
        %v1100 = vmul.f32 %v1087, %v906
        %v1101 = vmul.f32 %v1087, %v907
        %v1102 = vmul.f32 %v1087, %v908
        %v1103 = vmul.f32 %v1087, %v909
        %v1104 = vmul.f32 %v1087, %v910
        %v1105 = vadd.f32 %v1065, %v1089
        %v1106 = vadd.f32 %v1066, %v1090
        %v1107 = vadd.f32 %v1067, %v1091
        %v1108 = vadd.f32 %v1068, %v1092
        %v1109 = vadd.f32 %v1069, %v1093
        %v1110 = vadd.f32 %v1070, %v1094
        %v1111 = vadd.f32 %v1071, %v1095
        %v1112 = vadd.f32 %v1072, %v1096
        %v1113 = vadd.f32 %v1073, %v1097
        %v1114 = vadd.f32 %v1074, %v1098
        %v1115 = vadd.f32 %v1075, %v1099
        %v1116 = vadd.f32 %v1076, %v1100
        %v1117 = vadd.f32 %v1077, %v1101
        %v1118 = vadd.f32 %v1078, %v1102
        %v1119 = vadd.f32 %v1079, %v1103
        %v1120 = vadd.f32 %v1080, %v1104
        %1121 = vrot.lane.b32.xlu0 %v1105, 16
        %v1122 = vpop.permute.xlu0 %1121
        %1123 = vrot.lane.b32.xlu0 %v1113, 16
        %v1124 = vpop.permute.xlu0 %1123
        %1125 = vrot.lane.b32.xlu0 %v1106, 16
        %v1126 = vpop.permute.xlu0 %1125
        %1127 = vrot.lane.b32.xlu0 %v1114, 16
        %v1128 = vpop.permute.xlu0 %1127
        %1129 = vrot.lane.b32.xlu0 %v1107, 16
        %v1130 = vpop.permute.xlu0 %1129
        %1131 = vrot.lane.b32.xlu0 %v1115, 16
        %v1132 = vpop.permute.xlu0 %1131
        %1133 = vrot.lane.b32.xlu0 %v1108, 16
        %v1134 = vpop.permute.xlu0 %1133
        %1135 = vrot.lane.b32.xlu0 %v1116, 16
        %v1136 = vpop.permute.xlu0 %1135
        %1137 = vrot.lane.b32.xlu0 %v1109, 16
        %v1138 = vpop.permute.xlu0 %1137
        %1139 = vrot.lane.b32.xlu0 %v1117, 16
        %v1140 = vpop.permute.xlu0 %1139
        %1141 = vrot.lane.b32.xlu0 %v1110, 16
        %v1142 = vpop.permute.xlu0 %1141
        %1143 = vrot.lane.b32.xlu0 %v1118, 16
        %v1144 = vpop.permute.xlu0 %1143
        %1145 = vrot.lane.b32.xlu0 %v1111, 16
        %v1146 = vpop.permute.xlu0 %1145
        %1147 = vrot.lane.b32.xlu0 %v1119, 16
        %v1148 = vpop.permute.xlu0 %1147
        %1149 = vrot.lane.b32.xlu0 %v1112, 16
        %v1150 = vpop.permute.xlu0 %1149
        %1151 = vrot.lane.b32.xlu0 %v1120, 16
        %v1152 = vpop.permute.xlu0 %1151
        %vm1153 = vcmp.lt.s32.totalorder %v664, 16
        %v1154 = vsel %vm1153, %v1146, %v1150
        %v1155 = vsel %vm1153, %v1148, %v1152
        %v1156 = vsel %vm1153, %v1142, %v1146
        %v1157 = vsel %vm1153, %v1144, %v1148
        %v1158 = vsel %vm1153, %v1138, %v1142
        %v1159 = vsel %vm1153, %v1140, %v1144
        %v1160 = vsel %vm1153, %v1134, %v1138
        %v1161 = vsel %vm1153, %v1136, %v1140
        %v1162 = vsel %vm1153, %v1130, %v1134
        %v1163 = vsel %vm1153, %v1132, %v1136
        %v1164 = vsel %vm1153, %v1126, %v1130
        %v1165 = vsel %vm1153, %v1128, %v1132
        %v1166 = vsel %vm1153, %v1122, %v1126
        %v1167 = vsel %vm1153, %v1124, %v1128
        %v1168 = vsel %vm1153, %v1150, %v1122
        %v1169 = vsel %vm1153, %v1152, %v1124
        %v1170 = vlaneseq
        %v1171 = vshrl.u32 %v1170, 7
        %v1172 = vsub.s32 2, %v1171
        %v1173 = vrot.slane %v411, %v1172
        %v1174 = vlaneseq
        %v1175 = vshrl.u32 %v1174, 7
        %v1176 = vsub.s32 6, %v1175
        %v1177 = vrot.slane %v411, %v1176
        %v1178 = vlaneseq
        %v1179 = vshrl.u32 %v1178, 7
        %v1180 = vsub.s32 2, %v1179
        %v1181 = vrot.slane %v412, %v1180
        %v1182 = vlaneseq
        %v1183 = vshrl.u32 %v1182, 7
        %v1184 = vsub.s32 6, %v1183
        %v1185 = vrot.slane %v412, %v1184
        %v1186 = vlaneseq
        %v1187 = vshrl.u32 %v1186, 7
        %v1188 = vsub.s32 2, %v1187
        %v1189 = vrot.slane %v413, %v1188
        %v1190 = vlaneseq
        %v1191 = vshrl.u32 %v1190, 7
        %v1192 = vsub.s32 6, %v1191
        %v1193 = vrot.slane %v413, %v1192
        %v1194 = vlaneseq
        %v1195 = vshrl.u32 %v1194, 7
        %v1196 = vsub.s32 2, %v1195
        %v1197 = vrot.slane %v414, %v1196
        %v1198 = vlaneseq
        %v1199 = vshrl.u32 %v1198, 7
        %v1200 = vsub.s32 6, %v1199
        %v1201 = vrot.slane %v414, %v1200
        %v1210 = vlaneseq
        %v1211 = vshrl.u32 %v1210, 7
        %v1212 = vsub.s32 2, %v1211
        %v1213 = vrot.slane %v1173, %v1212
        %v1214 = vlaneseq
        %v1215 = vshrl.u32 %v1214, 7
        %v1216 = vsub.s32 2, %v1215
        %v1217 = vrot.slane %v1177, %v1216
        %v1218 = vlaneseq
        %v1219 = vshrl.u32 %v1218, 7
        %v1220 = vsub.s32 2, %v1219
        %v1221 = vrot.slane %v1181, %v1220
        %v1222 = vlaneseq
        %v1223 = vshrl.u32 %v1222, 7
        %v1224 = vsub.s32 2, %v1223
        %v1225 = vrot.slane %v1185, %v1224
        %v1226 = vlaneseq
        %v1227 = vshrl.u32 %v1226, 7
        %v1228 = vsub.s32 2, %v1227
        %v1229 = vrot.slane %v1189, %v1228
        %v1230 = vlaneseq
        %v1231 = vshrl.u32 %v1230, 7
        %v1232 = vsub.s32 2, %v1231
        %v1233 = vrot.slane %v1193, %v1232
        %v1234 = vlaneseq
        %v1235 = vshrl.u32 %v1234, 7
        %v1236 = vsub.s32 2, %v1235
        %v1237 = vrot.slane %v1197, %v1236
        %v1238 = vlaneseq
        %v1239 = vshrl.u32 %v1238, 7
        %v1240 = vsub.s32 2, %v1239
        %v1241 = vrot.slane %v1201, %v1240
        %v1242 = vmul.f32 %v1168, %v1213
        %v1243 = vmul.f32 %v1166, %v1217
        %v1244 = vmul.f32 %v1164, %v1221
        %v1245 = vmul.f32 %v1162, %v1225
        %v1246 = vmul.f32 %v1160, %v1229
        %v1247 = vmul.f32 %v1158, %v1233
        %v1248 = vmul.f32 %v1156, %v1237
        %v1249 = vmul.f32 %v1154, %v1241
        %v1250 = vmul.f32 %v1169, %v1213
        %v1251 = vmul.f32 %v1167, %v1217
        %v1252 = vmul.f32 %v1165, %v1221
        %v1253 = vmul.f32 %v1163, %v1225
        %v1254 = vmul.f32 %v1161, %v1229
        %v1255 = vmul.f32 %v1159, %v1233
        %v1256 = vmul.f32 %v1157, %v1237
        %v1257 = vmul.f32 %v1155, %v1241
        %v1258 = vadd.f32 %v1001, %v1242
        %v1259 = vadd.f32 %v1002, %v1243
        %v1260 = vadd.f32 %v1003, %v1244
        %v1261 = vadd.f32 %v1004, %v1245
        %v1262 = vadd.f32 %v1005, %v1246
        %v1263 = vadd.f32 %v1006, %v1247
        %v1264 = vadd.f32 %v1007, %v1248
        %v1265 = vadd.f32 %v1008, %v1249
        %v1266 = vadd.f32 %v1009, %v1250
        %v1267 = vadd.f32 %v1010, %v1251
        %v1268 = vadd.f32 %v1011, %v1252
        %v1269 = vadd.f32 %v1012, %v1253
        %v1270 = vadd.f32 %v1013, %v1254
        %v1271 = vadd.f32 %v1014, %v1255
        %v1272 = vadd.f32 %v1015, %v1256
        %v1273 = vadd.f32 %v1016, %v1257
        %1274 = vset.pattern.permute.xlu0 6
        %1275 = vperm.xlu0 %1274, %v629
        %v1276 = vpop.permute.xlu0 %1275
        %1278 = vset.pattern.permute.xlu0 6
        %1279 = vperm.xlu0 %1278, %v630
        %v1280 = vpop.permute.xlu0 %1279
        %v1282 = vmul.f32 %v1276, %v758
        %v1283 = vmul.f32 %v1276, %v759
        %v1284 = vmul.f32 %v1276, %v760
        %v1285 = vmul.f32 %v1276, %v761
        %v1286 = vmul.f32 %v1276, %v762
        %v1287 = vmul.f32 %v1276, %v763
        %v1288 = vmul.f32 %v1276, %v764
        %v1289 = vmul.f32 %v1276, %v765
        %v1290 = vmul.f32 %v1280, %v766
        %v1291 = vmul.f32 %v1280, %v767
        %v1292 = vmul.f32 %v1280, %v768
        %v1293 = vmul.f32 %v1280, %v769
        %v1294 = vmul.f32 %v1280, %v770
        %v1295 = vmul.f32 %v1280, %v771
        %v1296 = vmul.f32 %v1280, %v772
        %v1297 = vmul.f32 %v1280, %v773
        %1298 = vset.pattern.permute.xlu0 7
        %1299 = vperm.xlu0 %1298, %v629
        %v1300 = vpop.permute.xlu0 %1299
        %1302 = vset.pattern.permute.xlu0 7
        %1303 = vperm.xlu0 %1302, %v630
        %v1304 = vpop.permute.xlu0 %1303
        %v1306 = vmul.f32 %v1300, %v613
        %v1307 = vmul.f32 %v1300, %v614
        %v1308 = vmul.f32 %v1300, %v615
        %v1309 = vmul.f32 %v1300, %v616
        %v1310 = vmul.f32 %v1300, %v617
        %v1311 = vmul.f32 %v1300, %v618
        %v1312 = vmul.f32 %v1300, %v619
        %v1313 = vmul.f32 %v1300, %v620
        %v1314 = vmul.f32 %v1304, %v621
        %v1315 = vmul.f32 %v1304, %v622
        %v1316 = vmul.f32 %v1304, %v623
        %v1317 = vmul.f32 %v1304, %v624
        %v1318 = vmul.f32 %v1304, %v625
        %v1319 = vmul.f32 %v1304, %v626
        %v1320 = vmul.f32 %v1304, %v627
        %v1321 = vmul.f32 %v1304, %v628
        %v1322 = vadd.f32 %v1282, %v1306
        %v1323 = vadd.f32 %v1283, %v1307
        %v1324 = vadd.f32 %v1284, %v1308
        %v1325 = vadd.f32 %v1285, %v1309
        %v1326 = vadd.f32 %v1286, %v1310
        %v1327 = vadd.f32 %v1287, %v1311
        %v1328 = vadd.f32 %v1288, %v1312
        %v1329 = vadd.f32 %v1289, %v1313
        %v1330 = vadd.f32 %v1290, %v1314
        %v1331 = vadd.f32 %v1291, %v1315
        %v1332 = vadd.f32 %v1292, %v1316
        %v1333 = vadd.f32 %v1293, %v1317
        %v1334 = vadd.f32 %v1294, %v1318
        %v1335 = vadd.f32 %v1295, %v1319
        %v1336 = vadd.f32 %v1296, %v1320
        %v1337 = vadd.f32 %v1297, %v1321
        %1338 = vset.pattern.permute.xlu0 8
        %1339 = vperm.xlu0 %1338, %v629
        %v1340 = vpop.permute.xlu0 %1339
        %1342 = vset.pattern.permute.xlu0 8
        %1343 = vperm.xlu0 %1342, %v630
        %v1344 = vpop.permute.xlu0 %1343
        %v1346 = vmul.f32 %v1340, %v895
        %v1347 = vmul.f32 %v1340, %v896
        %v1348 = vmul.f32 %v1340, %v897
        %v1349 = vmul.f32 %v1340, %v898
        %v1350 = vmul.f32 %v1340, %v899
        %v1351 = vmul.f32 %v1340, %v900
        %v1352 = vmul.f32 %v1340, %v901
        %v1353 = vmul.f32 %v1340, %v902
        %v1354 = vmul.f32 %v1344, %v903
        %v1355 = vmul.f32 %v1344, %v904
        %v1356 = vmul.f32 %v1344, %v905
        %v1357 = vmul.f32 %v1344, %v906
        %v1358 = vmul.f32 %v1344, %v907
        %v1359 = vmul.f32 %v1344, %v908
        %v1360 = vmul.f32 %v1344, %v909
        %v1361 = vmul.f32 %v1344, %v910
        %v1362 = vadd.f32 %v1322, %v1346
        %v1363 = vadd.f32 %v1323, %v1347
        %v1364 = vadd.f32 %v1324, %v1348
        %v1365 = vadd.f32 %v1325, %v1349
        %v1366 = vadd.f32 %v1326, %v1350
        %v1367 = vadd.f32 %v1327, %v1351
        %v1368 = vadd.f32 %v1328, %v1352
        %v1369 = vadd.f32 %v1329, %v1353
        %v1370 = vadd.f32 %v1330, %v1354
        %v1371 = vadd.f32 %v1331, %v1355
        %v1372 = vadd.f32 %v1332, %v1356
        %v1373 = vadd.f32 %v1333, %v1357
        %v1374 = vadd.f32 %v1334, %v1358
        %v1375 = vadd.f32 %v1335, %v1359
        %v1376 = vadd.f32 %v1336, %v1360
        %v1377 = vadd.f32 %v1337, %v1361
        %1378 = vrot.lane.b32.xlu0 %v1362, 112
        %v1379 = vpop.permute.xlu0 %1378
        %1380 = vrot.lane.b32.xlu0 %v1370, 112
        %v1381 = vpop.permute.xlu0 %1380
        %1382 = vrot.lane.b32.xlu0 %v1363, 112
        %v1383 = vpop.permute.xlu0 %1382
        %1384 = vrot.lane.b32.xlu0 %v1371, 112
        %v1385 = vpop.permute.xlu0 %1384
        %1386 = vrot.lane.b32.xlu0 %v1364, 112
        %v1387 = vpop.permute.xlu0 %1386
        %1388 = vrot.lane.b32.xlu0 %v1372, 112
        %v1389 = vpop.permute.xlu0 %1388
        %1390 = vrot.lane.b32.xlu0 %v1365, 112
        %v1391 = vpop.permute.xlu0 %1390
        %1392 = vrot.lane.b32.xlu0 %v1373, 112
        %v1393 = vpop.permute.xlu0 %1392
        %1394 = vrot.lane.b32.xlu0 %v1366, 112
        %v1395 = vpop.permute.xlu0 %1394
        %1396 = vrot.lane.b32.xlu0 %v1374, 112
        %v1397 = vpop.permute.xlu0 %1396
        %1398 = vrot.lane.b32.xlu0 %v1367, 112
        %v1399 = vpop.permute.xlu0 %1398
        %1400 = vrot.lane.b32.xlu0 %v1375, 112
        %v1401 = vpop.permute.xlu0 %1400
        %1402 = vrot.lane.b32.xlu0 %v1368, 112
        %v1403 = vpop.permute.xlu0 %1402
        %1404 = vrot.lane.b32.xlu0 %v1376, 112
        %v1405 = vpop.permute.xlu0 %1404
        %1406 = vrot.lane.b32.xlu0 %v1369, 112
        %v1407 = vpop.permute.xlu0 %1406
        %1408 = vrot.lane.b32.xlu0 %v1377, 112
        %v1409 = vpop.permute.xlu0 %1408
        %vm1410 = vcmp.lt.s32.totalorder %v664, 112
        %v1411 = vsel %vm1410, %v1403, %v1407
        %v1412 = vsel %vm1410, %v1405, %v1409
        %v1413 = vsel %vm1410, %v1399, %v1403
        %v1414 = vsel %vm1410, %v1401, %v1405
        %v1415 = vsel %vm1410, %v1395, %v1399
        %v1416 = vsel %vm1410, %v1397, %v1401
        %v1417 = vsel %vm1410, %v1391, %v1395
        %v1418 = vsel %vm1410, %v1393, %v1397
        %v1419 = vsel %vm1410, %v1387, %v1391
        %v1420 = vsel %vm1410, %v1389, %v1393
        %v1421 = vsel %vm1410, %v1383, %v1387
        %v1422 = vsel %vm1410, %v1385, %v1389
        %v1423 = vsel %vm1410, %v1379, %v1383
        %v1424 = vsel %vm1410, %v1381, %v1385
        %v1425 = vsel %vm1410, %v1407, %v1379
        %v1426 = vsel %vm1410, %v1409, %v1381
        %v1427 = vlaneseq
        %v1428 = vshrl.u32 %v1427, 7
        %v1429 = vsub.s32 3, %v1428
        %v1430 = vrot.slane %v411, %v1429
        %v1431 = vlaneseq
        %v1432 = vshrl.u32 %v1431, 7
        %v1433 = vsub.s32 7, %v1432
        %v1434 = vrot.slane %v411, %v1433
        %v1435 = vlaneseq
        %v1436 = vshrl.u32 %v1435, 7
        %v1437 = vsub.s32 3, %v1436
        %v1438 = vrot.slane %v412, %v1437
        %v1439 = vlaneseq
        %v1440 = vshrl.u32 %v1439, 7
        %v1441 = vsub.s32 7, %v1440
        %v1442 = vrot.slane %v412, %v1441
        %v1443 = vlaneseq
        %v1444 = vshrl.u32 %v1443, 7
        %v1445 = vsub.s32 3, %v1444
        %v1446 = vrot.slane %v413, %v1445
        %v1447 = vlaneseq
        %v1448 = vshrl.u32 %v1447, 7
        %v1449 = vsub.s32 7, %v1448
        %v1450 = vrot.slane %v413, %v1449
        %v1451 = vlaneseq
        %v1452 = vshrl.u32 %v1451, 7
        %v1453 = vsub.s32 3, %v1452
        %v1454 = vrot.slane %v414, %v1453
        %v1455 = vlaneseq
        %v1456 = vshrl.u32 %v1455, 7
        %v1457 = vsub.s32 7, %v1456
        %v1458 = vrot.slane %v414, %v1457
        %v1467 = vlaneseq
        %v1468 = vshrl.u32 %v1467, 7
        %v1469 = vsub.s32 3, %v1468
        %v1470 = vrot.slane %v1430, %v1469
        %v1471 = vlaneseq
        %v1472 = vshrl.u32 %v1471, 7
        %v1473 = vsub.s32 3, %v1472
        %v1474 = vrot.slane %v1434, %v1473
        %v1475 = vlaneseq
        %v1476 = vshrl.u32 %v1475, 7
        %v1477 = vsub.s32 3, %v1476
        %v1478 = vrot.slane %v1438, %v1477
        %v1479 = vlaneseq
        %v1480 = vshrl.u32 %v1479, 7
        %v1481 = vsub.s32 3, %v1480
        %v1482 = vrot.slane %v1442, %v1481
        %v1483 = vlaneseq
        %v1484 = vshrl.u32 %v1483, 7
        %v1485 = vsub.s32 3, %v1484
        %v1486 = vrot.slane %v1446, %v1485
        %v1487 = vlaneseq
        %v1488 = vshrl.u32 %v1487, 7
        %v1489 = vsub.s32 3, %v1488
        %v1490 = vrot.slane %v1450, %v1489
        %v1491 = vlaneseq
        %v1492 = vshrl.u32 %v1491, 7
        %v1493 = vsub.s32 3, %v1492
        %v1494 = vrot.slane %v1454, %v1493
        %v1495 = vlaneseq
        %v1496 = vshrl.u32 %v1495, 7
        %v1497 = vsub.s32 3, %v1496
        %v1498 = vrot.slane %v1458, %v1497
        %v1499 = vmul.f32 %v1423, %v1470
        %v1500 = vmul.f32 %v1421, %v1474
        %v1501 = vmul.f32 %v1419, %v1478
        %v1502 = vmul.f32 %v1417, %v1482
        %v1503 = vmul.f32 %v1415, %v1486
        %v1504 = vmul.f32 %v1413, %v1490
        %v1505 = vmul.f32 %v1411, %v1494
        %v1506 = vmul.f32 %v1425, %v1498
        %v1507 = vmul.f32 %v1424, %v1470
        %v1508 = vmul.f32 %v1422, %v1474
        %v1509 = vmul.f32 %v1420, %v1478
        %v1510 = vmul.f32 %v1418, %v1482
        %v1511 = vmul.f32 %v1416, %v1486
        %v1512 = vmul.f32 %v1414, %v1490
        %v1513 = vmul.f32 %v1412, %v1494
        %v1514 = vmul.f32 %v1426, %v1498
        %v1515 = vadd.f32 %v1258, %v1499
        %v1516 = vadd.f32 %v1259, %v1500
        %v1517 = vadd.f32 %v1260, %v1501
        %v1518 = vadd.f32 %v1261, %v1502
        %v1519 = vadd.f32 %v1262, %v1503
        %v1520 = vadd.f32 %v1263, %v1504
        %v1521 = vadd.f32 %v1264, %v1505
        %v1522 = vadd.f32 %v1265, %v1506
        %v1523 = vadd.f32 %v1266, %v1507
        %v1524 = vadd.f32 %v1267, %v1508
        %v1525 = vadd.f32 %v1268, %v1509
        %v1526 = vadd.f32 %v1269, %v1510
        %v1527 = vadd.f32 %v1270, %v1511
        %v1528 = vadd.f32 %v1271, %v1512
        %v1529 = vadd.f32 %v1272, %v1513
        %v1530 = vadd.f32 %v1273, %v1514
        %v1531 = vld [vmem:[#allocation7] sm:$0xff]
        %v1533 = vlaneseq
        %v1534 = vshrl.u32 %v1533, 7
        %v1535 = vsub.s32 0, %v1534
        %v1536 = vrot.slane %v410, %v1535
        %v1537 = vlaneseq
        %v1538 = vshrl.u32 %v1537, 7
        %v1539 = vsub.s32 1, %v1538
        %v1540 = vrot.slane %v410, %v1539
        %v1541 = vlaneseq
        %v1542 = vshrl.u32 %v1541, 7
        %v1543 = vsub.s32 2, %v1542
        %v1544 = vrot.slane %v410, %v1543
        %v1545 = vlaneseq
        %v1546 = vshrl.u32 %v1545, 7
        %v1547 = vsub.s32 3, %v1546
        %v1548 = vrot.slane %v410, %v1547
        %v1549 = vlaneseq
        %v1550 = vshrl.u32 %v1549, 7
        %v1551 = vsub.s32 4, %v1550
        %v1552 = vrot.slane %v410, %v1551
        %v1553 = vlaneseq
        %v1554 = vshrl.u32 %v1553, 7
        %v1555 = vsub.s32 5, %v1554
        %v1556 = vrot.slane %v410, %v1555
        %v1557 = vlaneseq
        %v1558 = vshrl.u32 %v1557, 7
        %v1559 = vsub.s32 6, %v1558
        %v1560 = vrot.slane %v410, %v1559
        %v1561 = vlaneseq
        %v1562 = vshrl.u32 %v1561, 7
        %v1563 = vsub.s32 7, %v1562
        %v1564 = vrot.slane %v410, %v1563
        %1573 = vrot.lane.b32.xlu0 %v1536, 1
        %v1574 = vpop.permute.xlu0 %1573
        %1575 = vrot.lane.b32.xlu0 %v1540, 1
        %v1576 = vpop.permute.xlu0 %1575
        %1577 = vrot.lane.b32.xlu0 %v1544, 1
        %v1578 = vpop.permute.xlu0 %1577
        %1579 = vrot.lane.b32.xlu0 %v1548, 1
        %v1580 = vpop.permute.xlu0 %1579
        %1581 = vrot.lane.b32.xlu0 %v1552, 1
        %v1582 = vpop.permute.xlu0 %1581
        %1583 = vrot.lane.b32.xlu0 %v1556, 1
        %v1584 = vpop.permute.xlu0 %1583
        %1585 = vrot.lane.b32.xlu0 %v1560, 1
        %v1586 = vpop.permute.xlu0 %1585
        %1587 = vrot.lane.b32.xlu0 %v1564, 1
        %v1588 = vpop.permute.xlu0 %1587
        %v1589 = vsel %vm665, %v1586, %v1588
        %v1590 = vsel %vm665, %v1584, %v1586
        %v1591 = vsel %vm665, %v1582, %v1584
        %v1592 = vsel %vm665, %v1580, %v1582
        %v1593 = vsel %vm665, %v1578, %v1580
        %v1594 = vsel %vm665, %v1576, %v1578
        %v1595 = vsel %vm665, %v1574, %v1576
        %v1596 = vsel %vm665, %v1588, %v1574
        %v1597 = vmul.f32 %v1596, %v689
        %v1598 = vmul.f32 %v1595, %v693
        %v1599 = vmul.f32 %v1594, %v697
        %v1600 = vmul.f32 %v1593, %v701
        %v1601 = vmul.f32 %v1592, %v705
        %v1602 = vmul.f32 %v1591, %v709
        %v1603 = vmul.f32 %v1590, %v713
        %v1604 = vmul.f32 %v1589, %v717
        %1605 = vrot.lane.b32.xlu0 %v1536, 127
        %v1606 = vpop.permute.xlu0 %1605
        %1607 = vrot.lane.b32.xlu0 %v1540, 127
        %v1608 = vpop.permute.xlu0 %1607
        %1609 = vrot.lane.b32.xlu0 %v1544, 127
        %v1610 = vpop.permute.xlu0 %1609
        %1611 = vrot.lane.b32.xlu0 %v1548, 127
        %v1612 = vpop.permute.xlu0 %1611
        %1613 = vrot.lane.b32.xlu0 %v1552, 127
        %v1614 = vpop.permute.xlu0 %1613
        %1615 = vrot.lane.b32.xlu0 %v1556, 127
        %v1616 = vpop.permute.xlu0 %1615
        %1617 = vrot.lane.b32.xlu0 %v1560, 127
        %v1618 = vpop.permute.xlu0 %1617
        %1619 = vrot.lane.b32.xlu0 %v1564, 127
        %v1620 = vpop.permute.xlu0 %1619
        %v1621 = vsel %vm806, %v1618, %v1620
        %v1622 = vsel %vm806, %v1616, %v1618
        %v1623 = vsel %vm806, %v1614, %v1616
        %v1624 = vsel %vm806, %v1612, %v1614
        %v1625 = vsel %vm806, %v1610, %v1612
        %v1626 = vsel %vm806, %v1608, %v1610
        %v1627 = vsel %vm806, %v1606, %v1608
        %v1628 = vsel %vm806, %v1620, %v1606
        %v1629 = vmul.f32 %v1627, %v826
        %v1630 = vmul.f32 %v1626, %v830
        %v1631 = vmul.f32 %v1625, %v834
        %v1632 = vmul.f32 %v1624, %v838
        %v1633 = vmul.f32 %v1623, %v842
        %v1634 = vmul.f32 %v1622, %v846
        %v1635 = vmul.f32 %v1621, %v850
        %v1636 = vmul.f32 %v1628, %v854
        %1638 = vset.pattern.permute.xlu0 3
        %1639 = vperm.xlu0 %1638, %v1531
        %v1640 = vpop.permute.xlu0 %1639
        %v1642 = vlaneseq
        %v1643 = vshrl.u32 %v1642, 7
        %v1644 = vsub.s32 0, %v1643
        %v1645 = vrot.slane %v1597, %v1644
        %v1646 = vlaneseq
        %v1647 = vshrl.u32 %v1646, 7
        %v1648 = vsub.s32 0, %v1647
        %v1649 = vrot.slane %v1598, %v1648
        %v1650 = vlaneseq
        %v1651 = vshrl.u32 %v1650, 7
        %v1652 = vsub.s32 0, %v1651
        %v1653 = vrot.slane %v1599, %v1652
        %v1654 = vlaneseq
        %v1655 = vshrl.u32 %v1654, 7
        %v1656 = vsub.s32 0, %v1655
        %v1657 = vrot.slane %v1600, %v1656
        %v1658 = vlaneseq
        %v1659 = vshrl.u32 %v1658, 7
        %v1660 = vsub.s32 0, %v1659
        %v1661 = vrot.slane %v1601, %v1660
        %v1662 = vlaneseq
        %v1663 = vshrl.u32 %v1662, 7
        %v1664 = vsub.s32 0, %v1663
        %v1665 = vrot.slane %v1602, %v1664
        %v1666 = vlaneseq
        %v1667 = vshrl.u32 %v1666, 7
        %v1668 = vsub.s32 0, %v1667
        %v1669 = vrot.slane %v1603, %v1668
        %v1670 = vlaneseq
        %v1671 = vshrl.u32 %v1670, 7
        %v1672 = vsub.s32 0, %v1671
        %v1673 = vrot.slane %v1604, %v1672
        %v1674 = vmul.f32 %v1640, %v1645
        %v1675 = vmul.f32 %v1640, %v1649
        %v1676 = vmul.f32 %v1640, %v1653
        %v1677 = vmul.f32 %v1640, %v1657
        %v1678 = vmul.f32 %v1640, %v1661
        %v1679 = vmul.f32 %v1640, %v1665
        %v1680 = vmul.f32 %v1640, %v1669
        %v1681 = vmul.f32 %v1640, %v1673
        %1682 = vset.pattern.permute.xlu0 4
        %1683 = vperm.xlu0 %1682, %v1531
        %v1684 = vpop.permute.xlu0 %1683
        %v1686 = vmul.f32 %v1684, %v1536
        %v1687 = vmul.f32 %v1684, %v1540
        %v1688 = vmul.f32 %v1684, %v1544
        %v1689 = vmul.f32 %v1684, %v1548
        %v1690 = vmul.f32 %v1684, %v1552
        %v1691 = vmul.f32 %v1684, %v1556
        %v1692 = vmul.f32 %v1684, %v1560
        %v1693 = vmul.f32 %v1684, %v1564
        %v1694 = vadd.f32 %v1674, %v1686
        %v1695 = vadd.f32 %v1675, %v1687
        %v1696 = vadd.f32 %v1676, %v1688
        %v1697 = vadd.f32 %v1677, %v1689
        %v1698 = vadd.f32 %v1678, %v1690
        %v1699 = vadd.f32 %v1679, %v1691
        %v1700 = vadd.f32 %v1680, %v1692
        %v1701 = vadd.f32 %v1681, %v1693
        %1702 = vset.pattern.permute.xlu0 5
        %1703 = vperm.xlu0 %1702, %v1531
        %v1704 = vpop.permute.xlu0 %1703
        %v1706 = vlaneseq
        %v1707 = vshrl.u32 %v1706, 7
        %v1708 = vsub.s32 0, %v1707
        %v1709 = vrot.slane %v1629, %v1708
        %v1710 = vlaneseq
        %v1711 = vshrl.u32 %v1710, 7
        %v1712 = vsub.s32 0, %v1711
        %v1713 = vrot.slane %v1630, %v1712
        %v1714 = vlaneseq
        %v1715 = vshrl.u32 %v1714, 7
        %v1716 = vsub.s32 0, %v1715
        %v1717 = vrot.slane %v1631, %v1716
        %v1718 = vlaneseq
        %v1719 = vshrl.u32 %v1718, 7
        %v1720 = vsub.s32 0, %v1719
        %v1721 = vrot.slane %v1632, %v1720
        %v1722 = vlaneseq
        %v1723 = vshrl.u32 %v1722, 7
        %v1724 = vsub.s32 0, %v1723
        %v1725 = vrot.slane %v1633, %v1724
        %v1726 = vlaneseq
        %v1727 = vshrl.u32 %v1726, 7
        %v1728 = vsub.s32 0, %v1727
        %v1729 = vrot.slane %v1634, %v1728
        %v1730 = vlaneseq
        %v1731 = vshrl.u32 %v1730, 7
        %v1732 = vsub.s32 0, %v1731
        %v1733 = vrot.slane %v1635, %v1732
        %v1734 = vlaneseq
        %v1735 = vshrl.u32 %v1734, 7
        %v1736 = vsub.s32 0, %v1735
        %v1737 = vrot.slane %v1636, %v1736
        %v1738 = vmul.f32 %v1704, %v1709
        %v1739 = vmul.f32 %v1704, %v1713
        %v1740 = vmul.f32 %v1704, %v1717
        %v1741 = vmul.f32 %v1704, %v1721
        %v1742 = vmul.f32 %v1704, %v1725
        %v1743 = vmul.f32 %v1704, %v1729
        %v1744 = vmul.f32 %v1704, %v1733
        %v1745 = vmul.f32 %v1704, %v1737
        %v1746 = vadd.f32 %v1694, %v1738
        %v1747 = vadd.f32 %v1695, %v1739
        %v1748 = vadd.f32 %v1696, %v1740
        %v1749 = vadd.f32 %v1697, %v1741
        %v1750 = vadd.f32 %v1698, %v1742
        %v1751 = vadd.f32 %v1699, %v1743
        %v1752 = vadd.f32 %v1700, %v1744
        %v1753 = vadd.f32 %v1701, %v1745
        %1754 = vset.pattern.permute.xlu0 0
        %1755 = vperm.xlu0 %1754, %v1531
        %v1756 = vpop.permute.xlu0 %1755
        %v1758 = vmul.f32 %v1756, %v1645
        %v1759 = vmul.f32 %v1756, %v1649
        %v1760 = vmul.f32 %v1756, %v1653
        %v1761 = vmul.f32 %v1756, %v1657
        %v1762 = vmul.f32 %v1756, %v1661
        %v1763 = vmul.f32 %v1756, %v1665
        %v1764 = vmul.f32 %v1756, %v1669
        %v1765 = vmul.f32 %v1756, %v1673
        %1766 = vset.pattern.permute.xlu0 1
        %1767 = vperm.xlu0 %1766, %v1531
        %v1768 = vpop.permute.xlu0 %1767
        %v1770 = vmul.f32 %v1768, %v1536
        %v1771 = vmul.f32 %v1768, %v1540
        %v1772 = vmul.f32 %v1768, %v1544
        %v1773 = vmul.f32 %v1768, %v1548
        %v1774 = vmul.f32 %v1768, %v1552
        %v1775 = vmul.f32 %v1768, %v1556
        %v1776 = vmul.f32 %v1768, %v1560
        %v1777 = vmul.f32 %v1768, %v1564
        %v1778 = vadd.f32 %v1758, %v1770
        %v1779 = vadd.f32 %v1759, %v1771
        %v1780 = vadd.f32 %v1760, %v1772
        %v1781 = vadd.f32 %v1761, %v1773
        %v1782 = vadd.f32 %v1762, %v1774
        %v1783 = vadd.f32 %v1763, %v1775
        %v1784 = vadd.f32 %v1764, %v1776
        %v1785 = vadd.f32 %v1765, %v1777
        %1786 = vset.pattern.permute.xlu0 2
        %1787 = vperm.xlu0 %1786, %v1531
        %v1788 = vpop.permute.xlu0 %1787
        %v1790 = vmul.f32 %v1788, %v1709
        %v1791 = vmul.f32 %v1788, %v1713
        %v1792 = vmul.f32 %v1788, %v1717
        %v1793 = vmul.f32 %v1788, %v1721
        %v1794 = vmul.f32 %v1788, %v1725
        %v1795 = vmul.f32 %v1788, %v1729
        %v1796 = vmul.f32 %v1788, %v1733
        %v1797 = vmul.f32 %v1788, %v1737
        %v1798 = vadd.f32 %v1778, %v1790
        %v1799 = vadd.f32 %v1779, %v1791
        %v1800 = vadd.f32 %v1780, %v1792
        %v1801 = vadd.f32 %v1781, %v1793
        %v1802 = vadd.f32 %v1782, %v1794
        %v1803 = vadd.f32 %v1783, %v1795
        %v1804 = vadd.f32 %v1784, %v1796
        %v1805 = vadd.f32 %v1785, %v1797
        %1806 = vrot.lane.b32.xlu0 %v1798, 16
        %v1807 = vpop.permute.xlu0 %1806
        %1808 = vrot.lane.b32.xlu0 %v1799, 16
        %v1809 = vpop.permute.xlu0 %1808
        %1810 = vrot.lane.b32.xlu0 %v1800, 16
        %v1811 = vpop.permute.xlu0 %1810
        %1812 = vrot.lane.b32.xlu0 %v1801, 16
        %v1813 = vpop.permute.xlu0 %1812
        %1814 = vrot.lane.b32.xlu0 %v1802, 16
        %v1815 = vpop.permute.xlu0 %1814
        %1816 = vrot.lane.b32.xlu0 %v1803, 16
        %v1817 = vpop.permute.xlu0 %1816
        %1818 = vrot.lane.b32.xlu0 %v1804, 16
        %v1819 = vpop.permute.xlu0 %1818
        %1820 = vrot.lane.b32.xlu0 %v1805, 16
        %v1821 = vpop.permute.xlu0 %1820
        %v1822 = vsel %vm1153, %v1819, %v1821
        %v1823 = vsel %vm1153, %v1817, %v1819
        %v1824 = vsel %vm1153, %v1815, %v1817
        %v1825 = vsel %vm1153, %v1813, %v1815
        %v1826 = vsel %vm1153, %v1811, %v1813
        %v1827 = vsel %vm1153, %v1809, %v1811
        %v1828 = vsel %vm1153, %v1807, %v1809
        %v1829 = vsel %vm1153, %v1821, %v1807
        %v1830 = vmul.f32 %v1829, %v1213
        %v1831 = vmul.f32 %v1828, %v1217
        %v1832 = vmul.f32 %v1827, %v1221
        %v1833 = vmul.f32 %v1826, %v1225
        %v1834 = vmul.f32 %v1825, %v1229
        %v1835 = vmul.f32 %v1824, %v1233
        %v1836 = vmul.f32 %v1823, %v1237
        %v1837 = vmul.f32 %v1822, %v1241
        %v1838 = vadd.f32 %v1746, %v1830
        %v1839 = vadd.f32 %v1747, %v1831
        %v1840 = vadd.f32 %v1748, %v1832
        %v1841 = vadd.f32 %v1749, %v1833
        %v1842 = vadd.f32 %v1750, %v1834
        %v1843 = vadd.f32 %v1751, %v1835
        %v1844 = vadd.f32 %v1752, %v1836
        %v1845 = vadd.f32 %v1753, %v1837
        %1846 = vset.pattern.permute.xlu0 6
        %1847 = vperm.xlu0 %1846, %v1531
        %v1848 = vpop.permute.xlu0 %1847
        %v1850 = vmul.f32 %v1848, %v1645
        %v1851 = vmul.f32 %v1848, %v1649
        %v1852 = vmul.f32 %v1848, %v1653
        %v1853 = vmul.f32 %v1848, %v1657
        %v1854 = vmul.f32 %v1848, %v1661
        %v1855 = vmul.f32 %v1848, %v1665
        %v1856 = vmul.f32 %v1848, %v1669
        %v1857 = vmul.f32 %v1848, %v1673
        %1858 = vset.pattern.permute.xlu0 7
        %1859 = vperm.xlu0 %1858, %v1531
        %v1860 = vpop.permute.xlu0 %1859
        %v1862 = vmul.f32 %v1860, %v1536
        %v1863 = vmul.f32 %v1860, %v1540
        %v1864 = vmul.f32 %v1860, %v1544
        %v1865 = vmul.f32 %v1860, %v1548
        %v1866 = vmul.f32 %v1860, %v1552
        %v1867 = vmul.f32 %v1860, %v1556
        %v1868 = vmul.f32 %v1860, %v1560
        %v1869 = vmul.f32 %v1860, %v1564
        %v1870 = vadd.f32 %v1850, %v1862
        %v1871 = vadd.f32 %v1851, %v1863
        %v1872 = vadd.f32 %v1852, %v1864
        %v1873 = vadd.f32 %v1853, %v1865
        %v1874 = vadd.f32 %v1854, %v1866
        %v1875 = vadd.f32 %v1855, %v1867
        %v1876 = vadd.f32 %v1856, %v1868
        %v1877 = vadd.f32 %v1857, %v1869
        %1878 = vset.pattern.permute.xlu0 8
        %1879 = vperm.xlu0 %1878, %v1531
        %v1880 = vpop.permute.xlu0 %1879
        %v1882 = vmul.f32 %v1880, %v1709
        %v1883 = vmul.f32 %v1880, %v1713
        %v1884 = vmul.f32 %v1880, %v1717
        %v1885 = vmul.f32 %v1880, %v1721
        %v1886 = vmul.f32 %v1880, %v1725
        %v1887 = vmul.f32 %v1880, %v1729
        %v1888 = vmul.f32 %v1880, %v1733
        %v1889 = vmul.f32 %v1880, %v1737
        %v1890 = vadd.f32 %v1870, %v1882
        %v1891 = vadd.f32 %v1871, %v1883
        %v1892 = vadd.f32 %v1872, %v1884
        %v1893 = vadd.f32 %v1873, %v1885
        %v1894 = vadd.f32 %v1874, %v1886
        %v1895 = vadd.f32 %v1875, %v1887
        %v1896 = vadd.f32 %v1876, %v1888
        %v1897 = vadd.f32 %v1877, %v1889
        %1898 = vrot.lane.b32.xlu0 %v1890, 112
        %v1899 = vpop.permute.xlu0 %1898
        %1900 = vrot.lane.b32.xlu0 %v1891, 112
        %v1901 = vpop.permute.xlu0 %1900
        %1902 = vrot.lane.b32.xlu0 %v1892, 112
        %v1903 = vpop.permute.xlu0 %1902
        %1904 = vrot.lane.b32.xlu0 %v1893, 112
        %v1905 = vpop.permute.xlu0 %1904
        %1906 = vrot.lane.b32.xlu0 %v1894, 112
        %v1907 = vpop.permute.xlu0 %1906
        %1908 = vrot.lane.b32.xlu0 %v1895, 112
        %v1909 = vpop.permute.xlu0 %1908
        %1910 = vrot.lane.b32.xlu0 %v1896, 112
        %v1911 = vpop.permute.xlu0 %1910
        %1912 = vrot.lane.b32.xlu0 %v1897, 112
        %v1913 = vpop.permute.xlu0 %1912
        %v1914 = vsel %vm1410, %v1911, %v1913
        %v1915 = vsel %vm1410, %v1909, %v1911
        %v1916 = vsel %vm1410, %v1907, %v1909
        %v1917 = vsel %vm1410, %v1905, %v1907
        %v1918 = vsel %vm1410, %v1903, %v1905
        %v1919 = vsel %vm1410, %v1901, %v1903
        %v1920 = vsel %vm1410, %v1899, %v1901
        %v1921 = vsel %vm1410, %v1913, %v1899
        %v1922 = vmul.f32 %v1920, %v1470
        %v1923 = vmul.f32 %v1919, %v1474
        %v1924 = vmul.f32 %v1918, %v1478
        %v1925 = vmul.f32 %v1917, %v1482
        %v1926 = vmul.f32 %v1916, %v1486
        %v1927 = vmul.f32 %v1915, %v1490
        %v1928 = vmul.f32 %v1914, %v1494
        %v1929 = vmul.f32 %v1921, %v1498
        %v1930 = vadd.f32 %v1838, %v1922
        %v1931 = vadd.f32 %v1839, %v1923
        %v1932 = vadd.f32 %v1840, %v1924
        %v1933 = vadd.f32 %v1841, %v1925
        %v1934 = vadd.f32 %v1842, %v1926
        %v1935 = vadd.f32 %v1843, %v1927
        %v1936 = vadd.f32 %v1844, %v1928
        %v1937 = vadd.f32 %v1845, %v1929
        %v1938 = vld [vmem:[#allocation8] sm:$0x3]
        %v1939 = vld [vmem:[%s7] sm:$0xff]
        %v1940 = vld [vmem:[%s8] sm:$0xff]
        %v1941 = vmul.f32 %v1515, %v1515
        %v1942 = vmul.f32 %v1516, %v1516
        %v1943 = vadd.f32 %v1941, %v1942
        %1944 = vadd.xlane.f32.xlu0 %v1943
        %v1945 = vpop.xlane.xlu0 %1944
        %v1946 = vmax.f32 %v1945, 1e-24
        %v1947 = vrsqrt.pop %v1946
        %v1948 = vmul.f32 %v1515, %v1947
        %v1949 = vmul.f32 %v1516, %v1947
        %v1950 = vmul.f32 %v1930, %v1930
        %v1951 = vmul.f32 %v1931, %v1931
        %v1952 = vadd.f32 %v1950, %v1951
        %1953 = vadd.xlane.f32.xlu0 %v1952
        %v1954 = vpop.xlane.xlu0 %1953
        %v1955 = vmax.f32 %v1954, 1e-24
        %v1956 = vrsqrt.pop %v1955
        %v1957 = vmul.f32 %v1930, %v1956
        %v1958 = vmul.f32 %v1931, %v1956
        %1959 = vmatprep.subr.mxu0 0.0
        %1960 = vmatpush1.xpose.msra.mxu0 0.0
        %1961 = vmatprep.subr.mxu0 0.0
        %1962 = vmatpush1.xpose.msra.mxu0 0.0
        %1963 = vmatprep.subr.mxu0 0.0
        %1964 = vmatpush1.xpose.msra.mxu0 0.0
        %1965 = vmatprep.subr.mxu0 0.0
        %1966 = vmatpush1.xpose.msra.mxu0 0.0
        %1967 = vmatprep.subr.mxu0 0.0
        %1968 = vmatpush1.xpose.msra.mxu0 0.0
        %1969 = vmatprep.subr.mxu0 0.0
        %1970 = vmatpush1.xpose.msra.mxu0 0.0
        %1971 = vmatprep.subr.mxu0 0.0
        %1972 = vmatpush1.xpose.msra.mxu0 0.0
        %1973 = vmatprep.subr.mxu0 0.0
        %1974 = vmatpush1.xpose.msra.mxu0 0.0
        %1975 = vmatprep.subr.mxu0 0.0
        %1976 = vmatpush1.xpose.msra.mxu0 0.0
        %1977 = vmatprep.subr.mxu0 0.0
        %1978 = vmatpush1.xpose.msra.mxu0 0.0
        %1979 = vmatprep.subr.mxu0 0.0
        %1980 = vmatpush1.xpose.msra.mxu0 0.0
        %1981 = vmatprep.subr.mxu0 0.0
        %1982 = vmatpush1.xpose.msra.mxu0 0.0
        %1983 = vmatprep.subr.mxu0 0.0
        %1984 = vmatpush1.xpose.msra.mxu0 0.0
        %1985 = vmatprep.subr.mxu0 0.0
        %1986 = vmatpush1.xpose.msra.mxu0 0.0
        %1987 = vmatprep.subr.mxu0 0.0
        %1988 = vmatpush1.xpose.msra.mxu0 0.0
        %1989 = vmatprep.subr.mxu0 %v1958
        %1990 = vmatpush1.xpose.msra.mxu0 %v1957
        %1991 = vmatprep.subr.mxu0 0.0
        %1992 = vmatpush2.xpose.msra.mxu0 0.0
        %1993 = vmatprep.subr.mxu0 0.0
        %1994 = vmatpush2.xpose.msra.mxu0 0.0
        %1995 = vmatprep.subr.mxu0 0.0
        %1996 = vmatpush2.xpose.msra.mxu0 0.0
        %1997 = vmatprep.subr.mxu0 0.0
        %1998 = vmatpush2.xpose.msra.mxu0 0.0
        %1999 = vmatprep.subr.mxu0 0.0
        %2000 = vmatpush2.xpose.msra.mxu0 0.0
        %2001 = vmatprep.subr.mxu0 0.0
        %2002 = vmatpush2.xpose.msra.mxu0 0.0
        %2003 = vmatprep.subr.mxu0 0.0
        %2004 = vmatpush2.xpose.msra.mxu0 0.0
        %2005 = vmatprep.subr.mxu0 0.0
        %2006 = vmatpush2.xpose.msra.mxu0 0.0
        %2007 = vmatprep.subr.mxu0 0.0
        %2008 = vmatpush2.xpose.msra.mxu0 0.0
        %2009 = vmatprep.subr.mxu0 0.0
        %2010 = vmatpush2.xpose.msra.mxu0 0.0
        %2011 = vmatprep.subr.mxu0 0.0
        %2012 = vmatpush2.xpose.msra.mxu0 0.0
        %2013 = vmatprep.subr.mxu0 0.0
        %2014 = vmatpush2.xpose.msra.mxu0 0.0
        %2015 = vmatprep.subr.mxu0 0.0
        %2016 = vmatpush2.xpose.msra.mxu0 0.0
        %2017 = vmatprep.subr.mxu0 0.0
        %2018 = vmatpush2.xpose.msra.mxu0 0.0
        %2019 = vmatprep.subr.mxu0 0.0
        %2020 = vmatpush2.xpose.msra.mxu0 0.0
        %2021 = vmatprep.subr.mxu0 0.0
        %2022 = vmatpush2.xpose.msra.mxu0 0.0
        %2023 = vmatprep.mubr.f32.mxu0 %v1949
        %2024 = vmatmul.mubr.f32.gmra.mxu0 %v1948
        %v2025 = vpop.f32.mrf.mxu0
        %v2026 = vadd.f32 0.0, %v2025
        %v2027 = vpop.f32.mrf.mxu0
        %2028 = vdwg.mxu0
        %2030 = vset.pattern.permute.xlu0 0
        %2031 = vperm.xlu0 %2030, %v1939
        %v2032 = vpop.permute.xlu0 %2031
        %v2034 = vmul.f32 %v2026, %v2032
        %v2035 = vadd.f32 %v2034, %v1940
        %vm2036 = vcmask 64512
        %v2037 = vsel %vm2036, %v2035, -inf
        %2038 = vmax.xlane.f32.xlu0 %v2037
        %v2039 = vpop.xlane.xlu0 %2038
        %v2040 = vsub.f32 %v2035, %v2039
        %v2041 = vmul.f32 %v2040, 1.442695
        %v2042 = vpow.pop %v2041
        %v2043 = vsel %vm2036, %v2042, 0.0
        %2044 = vadd.xlane.f32.xlu0 %v2043
        %v2045 = vpop.xlane.xlu0 %2044
        %v2046 = vrcp.pop %v2045
        %v2047 = vmul.f32 %v2042, %v2046
        %v2049 = vsel %vm2036, %v1938, 0
        %2051 = vmatprep.subr.mxu0 0.0
        %2052 = vmatpush1.msra.mxu0 0.0
        %2053 = vmatprep.subr.mxu0 0.0
        %2054 = vmatpush1.msra.mxu0 0.0
        %2055 = vmatprep.subr.mxu0 0.0
        %2056 = vmatpush1.msra.mxu0 0.0
        %2057 = vmatprep.subr.mxu0 0.0
        %2058 = vmatpush1.msra.mxu0 0.0
        %2059 = vmatprep.subr.mxu0 0.0
        %2060 = vmatpush1.msra.mxu0 0.0
        %2061 = vmatprep.subr.mxu0 0.0
        %2062 = vmatpush1.msra.mxu0 0.0
        %2063 = vmatprep.subr.mxu0 0.0
        %2064 = vmatpush1.msra.mxu0 0.0
        %2065 = vmatprep.subr.mxu0 0.0
        %2066 = vmatpush1.msra.mxu0 0.0
        %2067 = vmatprep.subr.mxu0 0.0
        %2068 = vmatpush1.msra.mxu0 0.0
        %2069 = vmatprep.subr.mxu0 0.0
        %2070 = vmatpush1.msra.mxu0 0.0
        %2071 = vmatprep.subr.mxu0 0.0
        %2072 = vmatpush1.msra.mxu0 0.0
        %2073 = vmatprep.subr.mxu0 0.0
        %2074 = vmatpush1.msra.mxu0 0.0
        %2075 = vmatprep.subr.mxu0 0.0
        %2076 = vmatpush1.msra.mxu0 0.0
        %2077 = vmatprep.subr.mxu0 0.0
        %2078 = vmatpush1.msra.mxu0 0.0
        %2079 = vmatprep.subr.mxu0 0.0
        %2080 = vmatpush1.msra.mxu0 0.0
        %2081 = vmatprep.subr.mxu0 0.0
        %2082 = vmatpush1.msra.mxu0 %v2047
        %2083 = vmatprep.subr.mxu0 0.0
        %2084 = vmatpush2.msra.mxu0 0.0
        %2085 = vmatprep.subr.mxu0 0.0
        %2086 = vmatpush2.msra.mxu0 0.0
        %2087 = vmatprep.subr.mxu0 0.0
        %2088 = vmatpush2.msra.mxu0 0.0
        %2089 = vmatprep.subr.mxu0 0.0
        %2090 = vmatpush2.msra.mxu0 0.0
        %2091 = vmatprep.subr.mxu0 0.0
        %2092 = vmatpush2.msra.mxu0 0.0
        %2093 = vmatprep.subr.mxu0 0.0
        %2094 = vmatpush2.msra.mxu0 0.0
        %2095 = vmatprep.subr.mxu0 0.0
        %2096 = vmatpush2.msra.mxu0 0.0
        %2097 = vmatprep.subr.mxu0 0.0
        %2098 = vmatpush2.msra.mxu0 0.0
        %2099 = vmatprep.subr.mxu0 0.0
        %2100 = vmatpush2.msra.mxu0 0.0
        %2101 = vmatprep.subr.mxu0 0.0
        %2102 = vmatpush2.msra.mxu0 0.0
        %2103 = vmatprep.subr.mxu0 0.0
        %2104 = vmatpush2.msra.mxu0 0.0
        %2105 = vmatprep.subr.mxu0 0.0
        %2106 = vmatpush2.msra.mxu0 0.0
        %2107 = vmatprep.subr.mxu0 0.0
        %2108 = vmatpush2.msra.mxu0 0.0
        %2109 = vmatprep.subr.mxu0 0.0
        %2110 = vmatpush2.msra.mxu0 0.0
        %2111 = vmatprep.subr.mxu0 0.0
        %2112 = vmatpush2.msra.mxu0 0.0
        %2113 = vmatprep.subr.mxu0 0.0
        %2114 = vmatpush2.msra.mxu0 0.0
        %2115 = vmatprep.mubr.f32.mxu0 0.0
        %2116 = vmatmul.mubr.f32.gmra.mxu0 %v2049
        %v2117 = vpop.f32.mrf.mxu0
        %v2118 = vadd.f32 0.0, %v2117
        %v2119 = vpop.f32.mrf.mxu0
        %2120 = vdwg.mxu0
        %v2122 = vsel %vm2036, %v2118, 0
        %2124 = vmatprep.subr.mxu0 0.0
        %2125 = vmatpush1.msra.mxu0 0.0
        %2126 = vmatprep.subr.mxu0 0.0
        %2127 = vmatpush1.msra.mxu0 0.0
        %2128 = vmatprep.subr.mxu0 0.0
        %2129 = vmatpush1.msra.mxu0 0.0
        %2130 = vmatprep.subr.mxu0 0.0
        %2131 = vmatpush1.msra.mxu0 0.0
        %2132 = vmatprep.subr.mxu0 0.0
        %2133 = vmatpush1.msra.mxu0 0.0
        %2134 = vmatprep.subr.mxu0 0.0
        %2135 = vmatpush1.msra.mxu0 0.0
        %2136 = vmatprep.subr.mxu0 0.0
        %2137 = vmatpush1.msra.mxu0 0.0
        %2138 = vmatprep.subr.mxu0 0.0
        %2139 = vmatpush1.msra.mxu0 0.0
        %2140 = vmatprep.subr.mxu0 0.0
        %2141 = vmatpush1.msra.mxu0 0.0
        %2142 = vmatprep.subr.mxu0 0.0
        %2143 = vmatpush1.msra.mxu0 0.0
        %2144 = vmatprep.subr.mxu0 0.0
        %2145 = vmatpush1.msra.mxu0 0.0
        %2146 = vmatprep.subr.mxu0 0.0
        %2147 = vmatpush1.msra.mxu0 0.0
        %2148 = vmatprep.subr.mxu0 0.0
        %2149 = vmatpush1.msra.mxu0 0.0
        %2150 = vmatprep.subr.mxu0 0.0
        %2151 = vmatpush1.msra.mxu0 0.0
        %2152 = vmatprep.subr.mxu0 0.0
        %2153 = vmatpush1.msra.mxu0 0.0
        %2154 = vmatprep.subr.mxu0 %v1524
        %2155 = vmatpush1.msra.mxu0 %v1523
        %2156 = vmatprep.subr.mxu0 0.0
        %2157 = vmatpush2.msra.mxu0 0.0
        %2158 = vmatprep.subr.mxu0 0.0
        %2159 = vmatpush2.msra.mxu0 0.0
        %2160 = vmatprep.subr.mxu0 0.0
        %2161 = vmatpush2.msra.mxu0 0.0
        %2162 = vmatprep.subr.mxu0 0.0
        %2163 = vmatpush2.msra.mxu0 0.0
        %2164 = vmatprep.subr.mxu0 0.0
        %2165 = vmatpush2.msra.mxu0 0.0
        %2166 = vmatprep.subr.mxu0 0.0
        %2167 = vmatpush2.msra.mxu0 0.0
        %2168 = vmatprep.subr.mxu0 0.0
        %2169 = vmatpush2.msra.mxu0 0.0
        %2170 = vmatprep.subr.mxu0 0.0
        %2171 = vmatpush2.msra.mxu0 0.0
        %2172 = vmatprep.subr.mxu0 0.0
        %2173 = vmatpush2.msra.mxu0 0.0
        %2174 = vmatprep.subr.mxu0 0.0
        %2175 = vmatpush2.msra.mxu0 0.0
        %2176 = vmatprep.subr.mxu0 0.0
        %2177 = vmatpush2.msra.mxu0 0.0
        %2178 = vmatprep.subr.mxu0 0.0
        %2179 = vmatpush2.msra.mxu0 0.0
        %2180 = vmatprep.subr.mxu0 0.0
        %2181 = vmatpush2.msra.mxu0 0.0
        %2182 = vmatprep.subr.mxu0 0.0
        %2183 = vmatpush2.msra.mxu0 0.0
        %2184 = vmatprep.subr.mxu0 0.0
        %2185 = vmatpush2.msra.mxu0 0.0
        %2186 = vmatprep.subr.mxu0 0.0
        %2187 = vmatpush2.msra.mxu0 0.0
        %2188 = vmatprep.mubr.f32.mxu0 0.0
        %2189 = vmatmul.mubr.f32.gmra.mxu0 %v2122
        %v2190 = vpop.f32.mrf.mxu0
        %v2191 = vadd.f32 0.0, %v2190
        %v2192 = vpop.f32.mrf.mxu0
        %v2193 = vadd.f32 0.0, %v2192
        %2194 = vdwg.mxu0
        %v2195 = vmul.f32 %v1517, %v1517
        %v2196 = vmul.f32 %v1518, %v1518
        %v2197 = vadd.f32 %v2195, %v2196
        %2198 = vadd.xlane.f32.xlu0 %v2197
        %v2199 = vpop.xlane.xlu0 %2198
        %v2200 = vmax.f32 %v2199, 1e-24
        %v2201 = vrsqrt.pop %v2200
        %v2202 = vmul.f32 %v1517, %v2201
        %v2203 = vmul.f32 %v1518, %v2201
        %v2204 = vmul.f32 %v1932, %v1932
        %v2205 = vmul.f32 %v1933, %v1933
        %v2206 = vadd.f32 %v2204, %v2205
        %2207 = vadd.xlane.f32.xlu0 %v2206
        %v2208 = vpop.xlane.xlu0 %2207
        %v2209 = vmax.f32 %v2208, 1e-24
        %v2210 = vrsqrt.pop %v2209
        %v2211 = vmul.f32 %v1932, %v2210
        %v2212 = vmul.f32 %v1933, %v2210
        %2213 = vmatprep.subr.mxu0 0.0
        %2214 = vmatpush1.xpose.msra.mxu0 0.0
        %2215 = vmatprep.subr.mxu0 0.0
        %2216 = vmatpush1.xpose.msra.mxu0 0.0
        %2217 = vmatprep.subr.mxu0 0.0
        %2218 = vmatpush1.xpose.msra.mxu0 0.0
        %2219 = vmatprep.subr.mxu0 0.0
        %2220 = vmatpush1.xpose.msra.mxu0 0.0
        %2221 = vmatprep.subr.mxu0 0.0
        %2222 = vmatpush1.xpose.msra.mxu0 0.0
        %2223 = vmatprep.subr.mxu0 0.0
        %2224 = vmatpush1.xpose.msra.mxu0 0.0
        %2225 = vmatprep.subr.mxu0 0.0
        %2226 = vmatpush1.xpose.msra.mxu0 0.0
        %2227 = vmatprep.subr.mxu0 0.0
        %2228 = vmatpush1.xpose.msra.mxu0 0.0
        %2229 = vmatprep.subr.mxu0 0.0
        %2230 = vmatpush1.xpose.msra.mxu0 0.0
        %2231 = vmatprep.subr.mxu0 0.0
        %2232 = vmatpush1.xpose.msra.mxu0 0.0
        %2233 = vmatprep.subr.mxu0 0.0
        %2234 = vmatpush1.xpose.msra.mxu0 0.0
        %2235 = vmatprep.subr.mxu0 0.0
        %2236 = vmatpush1.xpose.msra.mxu0 0.0
        %2237 = vmatprep.subr.mxu0 0.0
        %2238 = vmatpush1.xpose.msra.mxu0 0.0
        %2239 = vmatprep.subr.mxu0 0.0
        %2240 = vmatpush1.xpose.msra.mxu0 0.0
        %2241 = vmatprep.subr.mxu0 0.0
        %2242 = vmatpush1.xpose.msra.mxu0 0.0
        %2243 = vmatprep.subr.mxu0 %v2212
        %2244 = vmatpush1.xpose.msra.mxu0 %v2211
        %2245 = vmatprep.subr.mxu0 0.0
        %2246 = vmatpush2.xpose.msra.mxu0 0.0
        %2247 = vmatprep.subr.mxu0 0.0
        %2248 = vmatpush2.xpose.msra.mxu0 0.0
        %2249 = vmatprep.subr.mxu0 0.0
        %2250 = vmatpush2.xpose.msra.mxu0 0.0
        %2251 = vmatprep.subr.mxu0 0.0
        %2252 = vmatpush2.xpose.msra.mxu0 0.0
        %2253 = vmatprep.subr.mxu0 0.0
        %2254 = vmatpush2.xpose.msra.mxu0 0.0
        %2255 = vmatprep.subr.mxu0 0.0
        %2256 = vmatpush2.xpose.msra.mxu0 0.0
        %2257 = vmatprep.subr.mxu0 0.0
        %2258 = vmatpush2.xpose.msra.mxu0 0.0
        %2259 = vmatprep.subr.mxu0 0.0
        %2260 = vmatpush2.xpose.msra.mxu0 0.0
        %2261 = vmatprep.subr.mxu0 0.0
        %2262 = vmatpush2.xpose.msra.mxu0 0.0
        %2263 = vmatprep.subr.mxu0 0.0
        %2264 = vmatpush2.xpose.msra.mxu0 0.0
        %2265 = vmatprep.subr.mxu0 0.0
        %2266 = vmatpush2.xpose.msra.mxu0 0.0
        %2267 = vmatprep.subr.mxu0 0.0
        %2268 = vmatpush2.xpose.msra.mxu0 0.0
        %2269 = vmatprep.subr.mxu0 0.0
        %2270 = vmatpush2.xpose.msra.mxu0 0.0
        %2271 = vmatprep.subr.mxu0 0.0
        %2272 = vmatpush2.xpose.msra.mxu0 0.0
        %2273 = vmatprep.subr.mxu0 0.0
        %2274 = vmatpush2.xpose.msra.mxu0 0.0
        %2275 = vmatprep.subr.mxu0 0.0
        %2276 = vmatpush2.xpose.msra.mxu0 0.0
        %2277 = vmatprep.mubr.f32.mxu0 %v2203
        %2278 = vmatmul.mubr.f32.gmra.mxu0 %v2202
        %v2279 = vpop.f32.mrf.mxu0
        %v2280 = vadd.f32 0.0, %v2279
        %v2281 = vpop.f32.mrf.mxu0
        %2282 = vdwg.mxu0
        %v2283 = vmul.f32 %v2280, %v2032
        %v2284 = vadd.f32 %v2283, %v1940
        %v2285 = vsel %vm2036, %v2284, -inf
        %2286 = vmax.xlane.f32.xlu0 %v2285
        %v2287 = vpop.xlane.xlu0 %2286
        %v2288 = vsub.f32 %v2284, %v2287
        %v2289 = vmul.f32 %v2288, 1.442695
        %v2290 = vpow.pop %v2289
        %v2291 = vsel %vm2036, %v2290, 0.0
        %2292 = vadd.xlane.f32.xlu0 %v2291
        %v2293 = vpop.xlane.xlu0 %2292
        %v2294 = vrcp.pop %v2293
        %v2295 = vmul.f32 %v2290, %v2294
        %2296 = vmatprep.subr.mxu0 0.0
        %2297 = vmatpush1.msra.mxu0 0.0
        %2298 = vmatprep.subr.mxu0 0.0
        %2299 = vmatpush1.msra.mxu0 0.0
        %2300 = vmatprep.subr.mxu0 0.0
        %2301 = vmatpush1.msra.mxu0 0.0
        %2302 = vmatprep.subr.mxu0 0.0
        %2303 = vmatpush1.msra.mxu0 0.0
        %2304 = vmatprep.subr.mxu0 0.0
        %2305 = vmatpush1.msra.mxu0 0.0
        %2306 = vmatprep.subr.mxu0 0.0
        %2307 = vmatpush1.msra.mxu0 0.0
        %2308 = vmatprep.subr.mxu0 0.0
        %2309 = vmatpush1.msra.mxu0 0.0
        %2310 = vmatprep.subr.mxu0 0.0
        %2311 = vmatpush1.msra.mxu0 0.0
        %2312 = vmatprep.subr.mxu0 0.0
        %2313 = vmatpush1.msra.mxu0 0.0
        %2314 = vmatprep.subr.mxu0 0.0
        %2315 = vmatpush1.msra.mxu0 0.0
        %2316 = vmatprep.subr.mxu0 0.0
        %2317 = vmatpush1.msra.mxu0 0.0
        %2318 = vmatprep.subr.mxu0 0.0
        %2319 = vmatpush1.msra.mxu0 0.0
        %2320 = vmatprep.subr.mxu0 0.0
        %2321 = vmatpush1.msra.mxu0 0.0
        %2322 = vmatprep.subr.mxu0 0.0
        %2323 = vmatpush1.msra.mxu0 0.0
        %2324 = vmatprep.subr.mxu0 0.0
        %2325 = vmatpush1.msra.mxu0 0.0
        %2326 = vmatprep.subr.mxu0 0.0
        %2327 = vmatpush1.msra.mxu0 %v2295
        %2328 = vmatprep.subr.mxu0 0.0
        %2329 = vmatpush2.msra.mxu0 0.0
        %2330 = vmatprep.subr.mxu0 0.0
        %2331 = vmatpush2.msra.mxu0 0.0
        %2332 = vmatprep.subr.mxu0 0.0
        %2333 = vmatpush2.msra.mxu0 0.0
        %2334 = vmatprep.subr.mxu0 0.0
        %2335 = vmatpush2.msra.mxu0 0.0
        %2336 = vmatprep.subr.mxu0 0.0
        %2337 = vmatpush2.msra.mxu0 0.0
        %2338 = vmatprep.subr.mxu0 0.0
        %2339 = vmatpush2.msra.mxu0 0.0
        %2340 = vmatprep.subr.mxu0 0.0
        %2341 = vmatpush2.msra.mxu0 0.0
        %2342 = vmatprep.subr.mxu0 0.0
        %2343 = vmatpush2.msra.mxu0 0.0
        %2344 = vmatprep.subr.mxu0 0.0
        %2345 = vmatpush2.msra.mxu0 0.0
        %2346 = vmatprep.subr.mxu0 0.0
        %2347 = vmatpush2.msra.mxu0 0.0
        %2348 = vmatprep.subr.mxu0 0.0
        %2349 = vmatpush2.msra.mxu0 0.0
        %2350 = vmatprep.subr.mxu0 0.0
        %2351 = vmatpush2.msra.mxu0 0.0
        %2352 = vmatprep.subr.mxu0 0.0
        %2353 = vmatpush2.msra.mxu0 0.0
        %2354 = vmatprep.subr.mxu0 0.0
        %2355 = vmatpush2.msra.mxu0 0.0
        %2356 = vmatprep.subr.mxu0 0.0
        %2357 = vmatpush2.msra.mxu0 0.0
        %2358 = vmatprep.subr.mxu0 0.0
        %2359 = vmatpush2.msra.mxu0 0.0
        %2360 = vmatprep.mubr.f32.mxu0 0.0
        %2361 = vmatmul.mubr.f32.gmra.mxu0 %v2049
        %v2362 = vpop.f32.mrf.mxu0
        %v2363 = vadd.f32 0.0, %v2362
        %v2364 = vpop.f32.mrf.mxu0
        %2365 = vdwg.mxu0
        %v2367 = vsel %vm2036, %v2363, 0
        %2369 = vmatprep.subr.mxu0 0.0
        %2370 = vmatpush1.msra.mxu0 0.0
        %2371 = vmatprep.subr.mxu0 0.0
        %2372 = vmatpush1.msra.mxu0 0.0
        %2373 = vmatprep.subr.mxu0 0.0
        %2374 = vmatpush1.msra.mxu0 0.0
        %2375 = vmatprep.subr.mxu0 0.0
        %2376 = vmatpush1.msra.mxu0 0.0
        %2377 = vmatprep.subr.mxu0 0.0
        %2378 = vmatpush1.msra.mxu0 0.0
        %2379 = vmatprep.subr.mxu0 0.0
        %2380 = vmatpush1.msra.mxu0 0.0
        %2381 = vmatprep.subr.mxu0 0.0
        %2382 = vmatpush1.msra.mxu0 0.0
        %2383 = vmatprep.subr.mxu0 0.0
        %2384 = vmatpush1.msra.mxu0 0.0
        %2385 = vmatprep.subr.mxu0 0.0
        %2386 = vmatpush1.msra.mxu0 0.0
        %2387 = vmatprep.subr.mxu0 0.0
        %2388 = vmatpush1.msra.mxu0 0.0
        %2389 = vmatprep.subr.mxu0 0.0
        %2390 = vmatpush1.msra.mxu0 0.0
        %2391 = vmatprep.subr.mxu0 0.0
        %2392 = vmatpush1.msra.mxu0 0.0
        %2393 = vmatprep.subr.mxu0 0.0
        %2394 = vmatpush1.msra.mxu0 0.0
        %2395 = vmatprep.subr.mxu0 0.0
        %2396 = vmatpush1.msra.mxu0 0.0
        %2397 = vmatprep.subr.mxu0 0.0
        %2398 = vmatpush1.msra.mxu0 0.0
        %2399 = vmatprep.subr.mxu0 %v1526
        %2400 = vmatpush1.msra.mxu0 %v1525
        %2401 = vmatprep.subr.mxu0 0.0
        %2402 = vmatpush2.msra.mxu0 0.0
        %2403 = vmatprep.subr.mxu0 0.0
        %2404 = vmatpush2.msra.mxu0 0.0
        %2405 = vmatprep.subr.mxu0 0.0
        %2406 = vmatpush2.msra.mxu0 0.0
        %2407 = vmatprep.subr.mxu0 0.0
        %2408 = vmatpush2.msra.mxu0 0.0
        %2409 = vmatprep.subr.mxu0 0.0
        %2410 = vmatpush2.msra.mxu0 0.0
        %2411 = vmatprep.subr.mxu0 0.0
        %2412 = vmatpush2.msra.mxu0 0.0
        %2413 = vmatprep.subr.mxu0 0.0
        %2414 = vmatpush2.msra.mxu0 0.0
        %2415 = vmatprep.subr.mxu0 0.0
        %2416 = vmatpush2.msra.mxu0 0.0
        %2417 = vmatprep.subr.mxu0 0.0
        %2418 = vmatpush2.msra.mxu0 0.0
        %2419 = vmatprep.subr.mxu0 0.0
        %2420 = vmatpush2.msra.mxu0 0.0
        %2421 = vmatprep.subr.mxu0 0.0
        %2422 = vmatpush2.msra.mxu0 0.0
        %2423 = vmatprep.subr.mxu0 0.0
        %2424 = vmatpush2.msra.mxu0 0.0
        %2425 = vmatprep.subr.mxu0 0.0
        %2426 = vmatpush2.msra.mxu0 0.0
        %2427 = vmatprep.subr.mxu0 0.0
        %2428 = vmatpush2.msra.mxu0 0.0
        %2429 = vmatprep.subr.mxu0 0.0
        %2430 = vmatpush2.msra.mxu0 0.0
        %2431 = vmatprep.subr.mxu0 0.0
        %2432 = vmatpush2.msra.mxu0 0.0
        %2433 = vmatprep.mubr.f32.mxu0 0.0
        %2434 = vmatmul.mubr.f32.gmra.mxu0 %v2367
        %v2435 = vpop.f32.mrf.mxu0
        %v2436 = vadd.f32 0.0, %v2435
        %v2437 = vpop.f32.mrf.mxu0
        %v2438 = vadd.f32 0.0, %v2437
        %2439 = vdwg.mxu0
        %v2440 = vmul.f32 %v1519, %v1519
        %v2441 = vmul.f32 %v1520, %v1520
        %v2442 = vadd.f32 %v2440, %v2441
        %2443 = vadd.xlane.f32.xlu0 %v2442
        %v2444 = vpop.xlane.xlu0 %2443
        %v2445 = vmax.f32 %v2444, 1e-24
        %v2446 = vrsqrt.pop %v2445
        %v2447 = vmul.f32 %v1519, %v2446
        %v2448 = vmul.f32 %v1520, %v2446
        %v2449 = vmul.f32 %v1934, %v1934
        %v2450 = vmul.f32 %v1935, %v1935
        %v2451 = vadd.f32 %v2449, %v2450
        %2452 = vadd.xlane.f32.xlu0 %v2451
        %v2453 = vpop.xlane.xlu0 %2452
        %v2454 = vmax.f32 %v2453, 1e-24
        %v2455 = vrsqrt.pop %v2454
        %v2456 = vmul.f32 %v1934, %v2455
        %v2457 = vmul.f32 %v1935, %v2455
        %2458 = vmatprep.subr.mxu0 0.0
        %2459 = vmatpush1.xpose.msra.mxu0 0.0
        %2460 = vmatprep.subr.mxu0 0.0
        %2461 = vmatpush1.xpose.msra.mxu0 0.0
        %2462 = vmatprep.subr.mxu0 0.0
        %2463 = vmatpush1.xpose.msra.mxu0 0.0
        %2464 = vmatprep.subr.mxu0 0.0
        %2465 = vmatpush1.xpose.msra.mxu0 0.0
        %2466 = vmatprep.subr.mxu0 0.0
        %2467 = vmatpush1.xpose.msra.mxu0 0.0
        %2468 = vmatprep.subr.mxu0 0.0
        %2469 = vmatpush1.xpose.msra.mxu0 0.0
        %2470 = vmatprep.subr.mxu0 0.0
        %2471 = vmatpush1.xpose.msra.mxu0 0.0
        %2472 = vmatprep.subr.mxu0 0.0
        %2473 = vmatpush1.xpose.msra.mxu0 0.0
        %2474 = vmatprep.subr.mxu0 0.0
        %2475 = vmatpush1.xpose.msra.mxu0 0.0
        %2476 = vmatprep.subr.mxu0 0.0
        %2477 = vmatpush1.xpose.msra.mxu0 0.0
        %2478 = vmatprep.subr.mxu0 0.0
        %2479 = vmatpush1.xpose.msra.mxu0 0.0
        %2480 = vmatprep.subr.mxu0 0.0
        %2481 = vmatpush1.xpose.msra.mxu0 0.0
        %2482 = vmatprep.subr.mxu0 0.0
        %2483 = vmatpush1.xpose.msra.mxu0 0.0
        %2484 = vmatprep.subr.mxu0 0.0
        %2485 = vmatpush1.xpose.msra.mxu0 0.0
        %2486 = vmatprep.subr.mxu0 0.0
        %2487 = vmatpush1.xpose.msra.mxu0 0.0
        %2488 = vmatprep.subr.mxu0 %v2457
        %2489 = vmatpush1.xpose.msra.mxu0 %v2456
        %2490 = vmatprep.subr.mxu0 0.0
        %2491 = vmatpush2.xpose.msra.mxu0 0.0
        %2492 = vmatprep.subr.mxu0 0.0
        %2493 = vmatpush2.xpose.msra.mxu0 0.0
        %2494 = vmatprep.subr.mxu0 0.0
        %2495 = vmatpush2.xpose.msra.mxu0 0.0
        %2496 = vmatprep.subr.mxu0 0.0
        %2497 = vmatpush2.xpose.msra.mxu0 0.0
        %2498 = vmatprep.subr.mxu0 0.0
        %2499 = vmatpush2.xpose.msra.mxu0 0.0
        %2500 = vmatprep.subr.mxu0 0.0
        %2501 = vmatpush2.xpose.msra.mxu0 0.0
        %2502 = vmatprep.subr.mxu0 0.0
        %2503 = vmatpush2.xpose.msra.mxu0 0.0
        %2504 = vmatprep.subr.mxu0 0.0
        %2505 = vmatpush2.xpose.msra.mxu0 0.0
        %2506 = vmatprep.subr.mxu0 0.0
        %2507 = vmatpush2.xpose.msra.mxu0 0.0
        %2508 = vmatprep.subr.mxu0 0.0
        %2509 = vmatpush2.xpose.msra.mxu0 0.0
        %2510 = vmatprep.subr.mxu0 0.0
        %2511 = vmatpush2.xpose.msra.mxu0 0.0
        %2512 = vmatprep.subr.mxu0 0.0
        %2513 = vmatpush2.xpose.msra.mxu0 0.0
        %2514 = vmatprep.subr.mxu0 0.0
        %2515 = vmatpush2.xpose.msra.mxu0 0.0
        %2516 = vmatprep.subr.mxu0 0.0
        %2517 = vmatpush2.xpose.msra.mxu0 0.0
        %2518 = vmatprep.subr.mxu0 0.0
        %2519 = vmatpush2.xpose.msra.mxu0 0.0
        %2520 = vmatprep.subr.mxu0 0.0
        %2521 = vmatpush2.xpose.msra.mxu0 0.0
        %2522 = vmatprep.mubr.f32.mxu0 %v2448
        %2523 = vmatmul.mubr.f32.gmra.mxu0 %v2447
        %v2524 = vpop.f32.mrf.mxu0
        %v2525 = vadd.f32 0.0, %v2524
        %v2526 = vpop.f32.mrf.mxu0
        %2527 = vdwg.mxu0
        %v2528 = vmul.f32 %v2525, %v2032
        %v2529 = vadd.f32 %v2528, %v1940
        %v2530 = vsel %vm2036, %v2529, -inf
        %2531 = vmax.xlane.f32.xlu0 %v2530
        %v2532 = vpop.xlane.xlu0 %2531
        %v2533 = vsub.f32 %v2529, %v2532
        %v2534 = vmul.f32 %v2533, 1.442695
        %v2535 = vpow.pop %v2534
        %v2536 = vsel %vm2036, %v2535, 0.0
        %2537 = vadd.xlane.f32.xlu0 %v2536
        %v2538 = vpop.xlane.xlu0 %2537
        %v2539 = vrcp.pop %v2538
        %v2540 = vmul.f32 %v2535, %v2539
        %2541 = vmatprep.subr.mxu0 0.0
        %2542 = vmatpush1.msra.mxu0 0.0
        %2543 = vmatprep.subr.mxu0 0.0
        %2544 = vmatpush1.msra.mxu0 0.0
        %2545 = vmatprep.subr.mxu0 0.0
        %2546 = vmatpush1.msra.mxu0 0.0
        %2547 = vmatprep.subr.mxu0 0.0
        %2548 = vmatpush1.msra.mxu0 0.0
        %2549 = vmatprep.subr.mxu0 0.0
        %2550 = vmatpush1.msra.mxu0 0.0
        %2551 = vmatprep.subr.mxu0 0.0
        %2552 = vmatpush1.msra.mxu0 0.0
        %2553 = vmatprep.subr.mxu0 0.0
        %2554 = vmatpush1.msra.mxu0 0.0
        %2555 = vmatprep.subr.mxu0 0.0
        %2556 = vmatpush1.msra.mxu0 0.0
        %2557 = vmatprep.subr.mxu0 0.0
        %2558 = vmatpush1.msra.mxu0 0.0
        %2559 = vmatprep.subr.mxu0 0.0
        %2560 = vmatpush1.msra.mxu0 0.0
        %2561 = vmatprep.subr.mxu0 0.0
        %2562 = vmatpush1.msra.mxu0 0.0
        %2563 = vmatprep.subr.mxu0 0.0
        %2564 = vmatpush1.msra.mxu0 0.0
        %2565 = vmatprep.subr.mxu0 0.0
        %2566 = vmatpush1.msra.mxu0 0.0
        %2567 = vmatprep.subr.mxu0 0.0
        %2568 = vmatpush1.msra.mxu0 0.0
        %2569 = vmatprep.subr.mxu0 0.0
        %2570 = vmatpush1.msra.mxu0 0.0
        %2571 = vmatprep.subr.mxu0 0.0
        %2572 = vmatpush1.msra.mxu0 %v2540
        %2573 = vmatprep.subr.mxu0 0.0
        %2574 = vmatpush2.msra.mxu0 0.0
        %2575 = vmatprep.subr.mxu0 0.0
        %2576 = vmatpush2.msra.mxu0 0.0
        %2577 = vmatprep.subr.mxu0 0.0
        %2578 = vmatpush2.msra.mxu0 0.0
        %2579 = vmatprep.subr.mxu0 0.0
        %2580 = vmatpush2.msra.mxu0 0.0
        %2581 = vmatprep.subr.mxu0 0.0
        %2582 = vmatpush2.msra.mxu0 0.0
        %2583 = vmatprep.subr.mxu0 0.0
        %2584 = vmatpush2.msra.mxu0 0.0
        %2585 = vmatprep.subr.mxu0 0.0
        %2586 = vmatpush2.msra.mxu0 0.0
        %2587 = vmatprep.subr.mxu0 0.0
        %2588 = vmatpush2.msra.mxu0 0.0
        %2589 = vmatprep.subr.mxu0 0.0
        %2590 = vmatpush2.msra.mxu0 0.0
        %2591 = vmatprep.subr.mxu0 0.0
        %2592 = vmatpush2.msra.mxu0 0.0
        %2593 = vmatprep.subr.mxu0 0.0
        %2594 = vmatpush2.msra.mxu0 0.0
        %2595 = vmatprep.subr.mxu0 0.0
        %2596 = vmatpush2.msra.mxu0 0.0
        %2597 = vmatprep.subr.mxu0 0.0
        %2598 = vmatpush2.msra.mxu0 0.0
        %2599 = vmatprep.subr.mxu0 0.0
        %2600 = vmatpush2.msra.mxu0 0.0
        %2601 = vmatprep.subr.mxu0 0.0
        %2602 = vmatpush2.msra.mxu0 0.0
        %2603 = vmatprep.subr.mxu0 0.0
        %2604 = vmatpush2.msra.mxu0 0.0
        %2605 = vmatprep.mubr.f32.mxu0 0.0
        %2606 = vmatmul.mubr.f32.gmra.mxu0 %v2049
        %v2607 = vpop.f32.mrf.mxu0
        %v2608 = vadd.f32 0.0, %v2607
        %v2609 = vpop.f32.mrf.mxu0
        %2610 = vdwg.mxu0
        %v2612 = vsel %vm2036, %v2608, 0
        %2614 = vmatprep.subr.mxu0 0.0
        %2615 = vmatpush1.msra.mxu0 0.0
        %2616 = vmatprep.subr.mxu0 0.0
        %2617 = vmatpush1.msra.mxu0 0.0
        %2618 = vmatprep.subr.mxu0 0.0
        %2619 = vmatpush1.msra.mxu0 0.0
        %2620 = vmatprep.subr.mxu0 0.0
        %2621 = vmatpush1.msra.mxu0 0.0
        %2622 = vmatprep.subr.mxu0 0.0
        %2623 = vmatpush1.msra.mxu0 0.0
        %2624 = vmatprep.subr.mxu0 0.0
        %2625 = vmatpush1.msra.mxu0 0.0
        %2626 = vmatprep.subr.mxu0 0.0
        %2627 = vmatpush1.msra.mxu0 0.0
        %2628 = vmatprep.subr.mxu0 0.0
        %2629 = vmatpush1.msra.mxu0 0.0
        %2630 = vmatprep.subr.mxu0 0.0
        %2631 = vmatpush1.msra.mxu0 0.0
        %2632 = vmatprep.subr.mxu0 0.0
        %2633 = vmatpush1.msra.mxu0 0.0
        %2634 = vmatprep.subr.mxu0 0.0
        %2635 = vmatpush1.msra.mxu0 0.0
        %2636 = vmatprep.subr.mxu0 0.0
        %2637 = vmatpush1.msra.mxu0 0.0
        %2638 = vmatprep.subr.mxu0 0.0
        %2639 = vmatpush1.msra.mxu0 0.0
        %2640 = vmatprep.subr.mxu0 0.0
        %2641 = vmatpush1.msra.mxu0 0.0
        %2642 = vmatprep.subr.mxu0 0.0
        %2643 = vmatpush1.msra.mxu0 0.0
        %2644 = vmatprep.subr.mxu0 %v1528
        %2645 = vmatpush1.msra.mxu0 %v1527
        %2646 = vmatprep.subr.mxu0 0.0
        %2647 = vmatpush2.msra.mxu0 0.0
        %2648 = vmatprep.subr.mxu0 0.0
        %2649 = vmatpush2.msra.mxu0 0.0
        %2650 = vmatprep.subr.mxu0 0.0
        %2651 = vmatpush2.msra.mxu0 0.0
        %2652 = vmatprep.subr.mxu0 0.0
        %2653 = vmatpush2.msra.mxu0 0.0
        %2654 = vmatprep.subr.mxu0 0.0
        %2655 = vmatpush2.msra.mxu0 0.0
        %2656 = vmatprep.subr.mxu0 0.0
        %2657 = vmatpush2.msra.mxu0 0.0
        %2658 = vmatprep.subr.mxu0 0.0
        %2659 = vmatpush2.msra.mxu0 0.0
        %2660 = vmatprep.subr.mxu0 0.0
        %2661 = vmatpush2.msra.mxu0 0.0
        %2662 = vmatprep.subr.mxu0 0.0
        %2663 = vmatpush2.msra.mxu0 0.0
        %2664 = vmatprep.subr.mxu0 0.0
        %2665 = vmatpush2.msra.mxu0 0.0
        %2666 = vmatprep.subr.mxu0 0.0
        %2667 = vmatpush2.msra.mxu0 0.0
        %2668 = vmatprep.subr.mxu0 0.0
        %2669 = vmatpush2.msra.mxu0 0.0
        %2670 = vmatprep.subr.mxu0 0.0
        %2671 = vmatpush2.msra.mxu0 0.0
        %2672 = vmatprep.subr.mxu0 0.0
        %2673 = vmatpush2.msra.mxu0 0.0
        %2674 = vmatprep.subr.mxu0 0.0
        %2675 = vmatpush2.msra.mxu0 0.0
        %2676 = vmatprep.subr.mxu0 0.0
        %2677 = vmatpush2.msra.mxu0 0.0
        %2678 = vmatprep.mubr.f32.mxu0 0.0
        %2679 = vmatmul.mubr.f32.gmra.mxu0 %v2612
        %v2680 = vpop.f32.mrf.mxu0
        %v2681 = vadd.f32 0.0, %v2680
        %v2682 = vpop.f32.mrf.mxu0
        %v2683 = vadd.f32 0.0, %v2682
        %2684 = vdwg.mxu0
        %v2685 = vmul.f32 %v1521, %v1521
        %v2686 = vmul.f32 %v1522, %v1522
        %v2687 = vadd.f32 %v2685, %v2686
        %2688 = vadd.xlane.f32.xlu0 %v2687
        %v2689 = vpop.xlane.xlu0 %2688
        %v2690 = vmax.f32 %v2689, 1e-24
        %v2691 = vrsqrt.pop %v2690
        %v2692 = vmul.f32 %v1521, %v2691
        %v2693 = vmul.f32 %v1522, %v2691
        %v2694 = vmul.f32 %v1936, %v1936
        %v2695 = vmul.f32 %v1937, %v1937
        %v2696 = vadd.f32 %v2694, %v2695
        %2697 = vadd.xlane.f32.xlu0 %v2696
        %v2698 = vpop.xlane.xlu0 %2697
        %v2699 = vmax.f32 %v2698, 1e-24
        %v2700 = vrsqrt.pop %v2699
        %v2701 = vmul.f32 %v1936, %v2700
        %v2702 = vmul.f32 %v1937, %v2700
        %2703 = vmatprep.subr.mxu0 0.0
        %2704 = vmatpush1.xpose.msra.mxu0 0.0
        %2705 = vmatprep.subr.mxu0 0.0
        %2706 = vmatpush1.xpose.msra.mxu0 0.0
        %2707 = vmatprep.subr.mxu0 0.0
        %2708 = vmatpush1.xpose.msra.mxu0 0.0
        %2709 = vmatprep.subr.mxu0 0.0
        %2710 = vmatpush1.xpose.msra.mxu0 0.0
        %2711 = vmatprep.subr.mxu0 0.0
        %2712 = vmatpush1.xpose.msra.mxu0 0.0
        %2713 = vmatprep.subr.mxu0 0.0
        %2714 = vmatpush1.xpose.msra.mxu0 0.0
        %2715 = vmatprep.subr.mxu0 0.0
        %2716 = vmatpush1.xpose.msra.mxu0 0.0
        %2717 = vmatprep.subr.mxu0 0.0
        %2718 = vmatpush1.xpose.msra.mxu0 0.0
        %2719 = vmatprep.subr.mxu0 0.0
        %2720 = vmatpush1.xpose.msra.mxu0 0.0
        %2721 = vmatprep.subr.mxu0 0.0
        %2722 = vmatpush1.xpose.msra.mxu0 0.0
        %2723 = vmatprep.subr.mxu0 0.0
        %2724 = vmatpush1.xpose.msra.mxu0 0.0
        %2725 = vmatprep.subr.mxu0 0.0
        %2726 = vmatpush1.xpose.msra.mxu0 0.0
        %2727 = vmatprep.subr.mxu0 0.0
        %2728 = vmatpush1.xpose.msra.mxu0 0.0
        %2729 = vmatprep.subr.mxu0 0.0
        %2730 = vmatpush1.xpose.msra.mxu0 0.0
        %2731 = vmatprep.subr.mxu0 0.0
        %2732 = vmatpush1.xpose.msra.mxu0 0.0
        %2733 = vmatprep.subr.mxu0 %v2702
        %2734 = vmatpush1.xpose.msra.mxu0 %v2701
        %2735 = vmatprep.subr.mxu0 0.0
        %2736 = vmatpush2.xpose.msra.mxu0 0.0
        %2737 = vmatprep.subr.mxu0 0.0
        %2738 = vmatpush2.xpose.msra.mxu0 0.0
        %2739 = vmatprep.subr.mxu0 0.0
        %2740 = vmatpush2.xpose.msra.mxu0 0.0
        %2741 = vmatprep.subr.mxu0 0.0
        %2742 = vmatpush2.xpose.msra.mxu0 0.0
        %2743 = vmatprep.subr.mxu0 0.0
        %2744 = vmatpush2.xpose.msra.mxu0 0.0
        %2745 = vmatprep.subr.mxu0 0.0
        %2746 = vmatpush2.xpose.msra.mxu0 0.0
        %2747 = vmatprep.subr.mxu0 0.0
        %2748 = vmatpush2.xpose.msra.mxu0 0.0
        %2749 = vmatprep.subr.mxu0 0.0
        %2750 = vmatpush2.xpose.msra.mxu0 0.0
        %2751 = vmatprep.subr.mxu0 0.0
        %2752 = vmatpush2.xpose.msra.mxu0 0.0
        %2753 = vmatprep.subr.mxu0 0.0
        %2754 = vmatpush2.xpose.msra.mxu0 0.0
        %2755 = vmatprep.subr.mxu0 0.0
        %2756 = vmatpush2.xpose.msra.mxu0 0.0
        %2757 = vmatprep.subr.mxu0 0.0
        %2758 = vmatpush2.xpose.msra.mxu0 0.0
        %2759 = vmatprep.subr.mxu0 0.0
        %2760 = vmatpush2.xpose.msra.mxu0 0.0
        %2761 = vmatprep.subr.mxu0 0.0
        %2762 = vmatpush2.xpose.msra.mxu0 0.0
        %2763 = vmatprep.subr.mxu0 0.0
        %2764 = vmatpush2.xpose.msra.mxu0 0.0
        %2765 = vmatprep.subr.mxu0 0.0
        %2766 = vmatpush2.xpose.msra.mxu0 0.0
        %2767 = vmatprep.mubr.f32.mxu0 %v2693
        %2768 = vmatmul.mubr.f32.gmra.mxu0 %v2692
        %v2769 = vpop.f32.mrf.mxu0
        %v2770 = vadd.f32 0.0, %v2769
        %v2771 = vpop.f32.mrf.mxu0
        %2772 = vdwg.mxu0
        %v2773 = vmul.f32 %v2770, %v2032
        %v2774 = vadd.f32 %v2773, %v1940
        %v2775 = vsel %vm2036, %v2774, -inf
        %2776 = vmax.xlane.f32.xlu0 %v2775
        %v2777 = vpop.xlane.xlu0 %2776
        %v2778 = vsub.f32 %v2774, %v2777
        %v2779 = vmul.f32 %v2778, 1.442695
        %v2780 = vpow.pop %v2779
        %v2781 = vsel %vm2036, %v2780, 0.0
        %2782 = vadd.xlane.f32.xlu0 %v2781
        %v2783 = vpop.xlane.xlu0 %2782
        %v2784 = vrcp.pop %v2783
        %v2785 = vmul.f32 %v2780, %v2784
        %2786 = vmatprep.subr.mxu0 0.0
        %2787 = vmatpush1.msra.mxu0 0.0
        %2788 = vmatprep.subr.mxu0 0.0
        %2789 = vmatpush1.msra.mxu0 0.0
        %2790 = vmatprep.subr.mxu0 0.0
        %2791 = vmatpush1.msra.mxu0 0.0
        %2792 = vmatprep.subr.mxu0 0.0
        %2793 = vmatpush1.msra.mxu0 0.0
        %2794 = vmatprep.subr.mxu0 0.0
        %2795 = vmatpush1.msra.mxu0 0.0
        %2796 = vmatprep.subr.mxu0 0.0
        %2797 = vmatpush1.msra.mxu0 0.0
        %2798 = vmatprep.subr.mxu0 0.0
        %2799 = vmatpush1.msra.mxu0 0.0
        %2800 = vmatprep.subr.mxu0 0.0
        %2801 = vmatpush1.msra.mxu0 0.0
        %2802 = vmatprep.subr.mxu0 0.0
        %2803 = vmatpush1.msra.mxu0 0.0
        %2804 = vmatprep.subr.mxu0 0.0
        %2805 = vmatpush1.msra.mxu0 0.0
        %2806 = vmatprep.subr.mxu0 0.0
        %2807 = vmatpush1.msra.mxu0 0.0
        %2808 = vmatprep.subr.mxu0 0.0
        %2809 = vmatpush1.msra.mxu0 0.0
        %2810 = vmatprep.subr.mxu0 0.0
        %2811 = vmatpush1.msra.mxu0 0.0
        %2812 = vmatprep.subr.mxu0 0.0
        %2813 = vmatpush1.msra.mxu0 0.0
        %2814 = vmatprep.subr.mxu0 0.0
        %2815 = vmatpush1.msra.mxu0 0.0
        %2816 = vmatprep.subr.mxu0 0.0
        %2817 = vmatpush1.msra.mxu0 %v2785
        %2818 = vmatprep.subr.mxu0 0.0
        %2819 = vmatpush2.msra.mxu0 0.0
        %2820 = vmatprep.subr.mxu0 0.0
        %2821 = vmatpush2.msra.mxu0 0.0
        %2822 = vmatprep.subr.mxu0 0.0
        %2823 = vmatpush2.msra.mxu0 0.0
        %2824 = vmatprep.subr.mxu0 0.0
        %2825 = vmatpush2.msra.mxu0 0.0
        %2826 = vmatprep.subr.mxu0 0.0
        %2827 = vmatpush2.msra.mxu0 0.0
        %2828 = vmatprep.subr.mxu0 0.0
        %2829 = vmatpush2.msra.mxu0 0.0
        %2830 = vmatprep.subr.mxu0 0.0
        %2831 = vmatpush2.msra.mxu0 0.0
        %2832 = vmatprep.subr.mxu0 0.0
        %2833 = vmatpush2.msra.mxu0 0.0
        %2834 = vmatprep.subr.mxu0 0.0
        %2835 = vmatpush2.msra.mxu0 0.0
        %2836 = vmatprep.subr.mxu0 0.0
        %2837 = vmatpush2.msra.mxu0 0.0
        %2838 = vmatprep.subr.mxu0 0.0
        %2839 = vmatpush2.msra.mxu0 0.0
        %2840 = vmatprep.subr.mxu0 0.0
        %2841 = vmatpush2.msra.mxu0 0.0
        %2842 = vmatprep.subr.mxu0 0.0
        %2843 = vmatpush2.msra.mxu0 0.0
        %2844 = vmatprep.subr.mxu0 0.0
        %2845 = vmatpush2.msra.mxu0 0.0
        %2846 = vmatprep.subr.mxu0 0.0
        %2847 = vmatpush2.msra.mxu0 0.0
        %2848 = vmatprep.subr.mxu0 0.0
        %2849 = vmatpush2.msra.mxu0 0.0
        %2850 = vmatprep.mubr.f32.mxu0 0.0
        %2851 = vmatmul.mubr.f32.gmra.mxu0 %v2049
        %v2852 = vpop.f32.mrf.mxu0
        %v2853 = vadd.f32 0.0, %v2852
        %v2854 = vpop.f32.mrf.mxu0
        %2855 = vdwg.mxu0
        %v2857 = vsel %vm2036, %v2853, 0
        %2859 = vmatprep.subr.mxu0 0.0
        %2860 = vmatpush1.msra.mxu0 0.0
        %2861 = vmatprep.subr.mxu0 0.0
        %2862 = vmatpush1.msra.mxu0 0.0
        %2863 = vmatprep.subr.mxu0 0.0
        %2864 = vmatpush1.msra.mxu0 0.0
        %2865 = vmatprep.subr.mxu0 0.0
        %2866 = vmatpush1.msra.mxu0 0.0
        %2867 = vmatprep.subr.mxu0 0.0
        %2868 = vmatpush1.msra.mxu0 0.0
        %2869 = vmatprep.subr.mxu0 0.0
        %2870 = vmatpush1.msra.mxu0 0.0
        %2871 = vmatprep.subr.mxu0 0.0
        %2872 = vmatpush1.msra.mxu0 0.0
        %2873 = vmatprep.subr.mxu0 0.0
        %2874 = vmatpush1.msra.mxu0 0.0
        %2875 = vmatprep.subr.mxu0 0.0
        %2876 = vmatpush1.msra.mxu0 0.0
        %2877 = vmatprep.subr.mxu0 0.0
        %2878 = vmatpush1.msra.mxu0 0.0
        %2879 = vmatprep.subr.mxu0 0.0
        %2880 = vmatpush1.msra.mxu0 0.0
        %2881 = vmatprep.subr.mxu0 0.0
        %2882 = vmatpush1.msra.mxu0 0.0
        %2883 = vmatprep.subr.mxu0 0.0
        %2884 = vmatpush1.msra.mxu0 0.0
        %2885 = vmatprep.subr.mxu0 0.0
        %2886 = vmatpush1.msra.mxu0 0.0
        %2887 = vmatprep.subr.mxu0 0.0
        %2888 = vmatpush1.msra.mxu0 0.0
        %2889 = vmatprep.subr.mxu0 %v1530
        %2890 = vmatpush1.msra.mxu0 %v1529
        %2891 = vmatprep.subr.mxu0 0.0
        %2892 = vmatpush2.msra.mxu0 0.0
        %2893 = vmatprep.subr.mxu0 0.0
        %2894 = vmatpush2.msra.mxu0 0.0
        %2895 = vmatprep.subr.mxu0 0.0
        %2896 = vmatpush2.msra.mxu0 0.0
        %2897 = vmatprep.subr.mxu0 0.0
        %2898 = vmatpush2.msra.mxu0 0.0
        %2899 = vmatprep.subr.mxu0 0.0
        %2900 = vmatpush2.msra.mxu0 0.0
        %2901 = vmatprep.subr.mxu0 0.0
        %2902 = vmatpush2.msra.mxu0 0.0
        %2903 = vmatprep.subr.mxu0 0.0
        %2904 = vmatpush2.msra.mxu0 0.0
        %2905 = vmatprep.subr.mxu0 0.0
        %2906 = vmatpush2.msra.mxu0 0.0
        %2907 = vmatprep.subr.mxu0 0.0
        %2908 = vmatpush2.msra.mxu0 0.0
        %2909 = vmatprep.subr.mxu0 0.0
        %2910 = vmatpush2.msra.mxu0 0.0
        %2911 = vmatprep.subr.mxu0 0.0
        %2912 = vmatpush2.msra.mxu0 0.0
        %2913 = vmatprep.subr.mxu0 0.0
        %2914 = vmatpush2.msra.mxu0 0.0
        %2915 = vmatprep.subr.mxu0 0.0
        %2916 = vmatpush2.msra.mxu0 0.0
        %2917 = vmatprep.subr.mxu0 0.0
        %2918 = vmatpush2.msra.mxu0 0.0
        %2919 = vmatprep.subr.mxu0 0.0
        %2920 = vmatpush2.msra.mxu0 0.0
        %2921 = vmatprep.subr.mxu0 0.0
        %2922 = vmatpush2.msra.mxu0 0.0
        %2923 = vmatprep.mubr.f32.mxu0 0.0
        %2924 = vmatmul.mubr.f32.gmra.mxu0 %v2857
        %v2925 = vpop.f32.mrf.mxu0
        %v2926 = vadd.f32 0.0, %v2925
        %v2927 = vpop.f32.mrf.mxu0
        %v2928 = vadd.f32 0.0, %v2927
        %2929 = vdwg.mxu0
        %v2938 = vcombine.low %v2191, %v2193
        %v2939 = vcombine.low %v2436, %v2438
        %v2941 = vunpack.c.l.s4 1983009808
        %v2942 = vunpack.c.0.s8 %v2941
        %v2943 = vlaneseq
        %v2944 = vshrl.u32 %v2943, 7
        %v2945 = vsub.s32 %v2942, %v2944
        %v2946 = vrot.slane %v2938, %v2945
        %v2948 = vunpack.c.l.s4 1983009808
        %v2949 = vunpack.c.0.s8 %v2948
        %v2950 = vlaneseq
        %v2951 = vshrl.u32 %v2950, 7
        %v2952 = vsub.s32 %v2949, %v2951
        %v2953 = vrot.slane %v2939, %v2952
        %v2954 = vcombine.low %v2946, %v2953
        %v2955 = vcombine.low %v2681, %v2683
        %v2956 = vcombine.low %v2926, %v2928
        %v2958 = vunpack.c.l.s4 1983009808
        %v2959 = vunpack.c.0.s8 %v2958
        %v2960 = vlaneseq
        %v2961 = vshrl.u32 %v2960, 7
        %v2962 = vsub.s32 %v2959, %v2961
        %v2963 = vrot.slane %v2955, %v2962
        %v2965 = vunpack.c.l.s4 1983009808
        %v2966 = vunpack.c.0.s8 %v2965
        %v2967 = vlaneseq
        %v2968 = vshrl.u32 %v2967, 7
        %v2969 = vsub.s32 %v2966, %v2968
        %v2970 = vrot.slane %v2956, %v2969
        %v2971 = vcombine.low %v2963, %v2970
        %v2974 = vadd.f32 %v408, %v2954
        %v2975 = vadd.f32 %v409, %v2971
        %2976 = vst [vmem:[%s400] sm:$0xff] %v2974
        %2977 = vst [vmem:[%s400 + $0x8] sm:$0xff] %v2975
        %s2978 = sand.u32 %s235, 1
        %s2979 = scalar_lea.sflag [#allocation4], %s2978
        %s2980 = sand.u32 %s235, 1
        %s2981 = smul.addr %s2980, 16
        %s2982 = scalar_lea.vmem [#allocation10], %s2981
        // Predicated region
        $region73: #{tpu_custom_call.1} parent=55 // pred_check
          %p2983 = pneg %p245
        $region74: #{tpu_custom_call.1} parent=55 // pred_check_branch
          %2985 = sbr.rel (%p2983) target = $region76
        $region75: #{tpu_custom_call.1} parent=55 // pred_region
          %s2986 = smul.u32 8, %s28
          %s2988 = ssub.s32 256, 256
          %2989 = vsyncadd %s2979, %s2988
          %s2990 = smul.addr %s2986, 32
          %s2991 = scalar_lea.hbm %s9, %s2990
          %s2993 = sshll.u32 %s2982, 4
          %s2994 = int_to_ptr.vmem [resolvable:$true] %s2993
          %2996 = dma.vmem_to_hbm [thread:$0]  %s2994, 256, %s2991, %s2979
        $region76: #{tpu_custom_call.1} parent=55 // pred_fallthru
          _
      $region56: #{tpu_custom_call.1} parent=5 // pred_fallthru
        _
      %p2997 = scmp.le.s32.totalorder 2, %s23
      // Predicated region
      $region77: #{tpu_custom_call.1} parent=5 // pred_check
        %p2998 = pneg %p2997
      $region78: #{tpu_custom_call.1} parent=5 // pred_check_branch
        %3000 = sbr.rel (%p2998) target = $region80
      $region79: #{tpu_custom_call.1} parent=5 // pred_region
        %s3001 = ssub.s32 %s23, 2
        // Predicated region
        $region81: #{tpu_custom_call.1} parent=79 // pred_check
          %p3002 = pneg %p251
        $region82: #{tpu_custom_call.1} parent=79 // pred_check_branch
          %3004 = sbr.rel (%p3002) target = $region84
        $region83: #{tpu_custom_call.1} parent=79 // pred_region
          %s3005 = sand.u32 %s236, 1
          %s3006 = scalar_lea.sflag [#allocation4], %s3005
          %s3007 = sand.u32 %s236, 1
          %s3008 = smul.addr %s3007, 16
          %s3009 = scalar_lea.vmem [#allocation10], %s3008
          %3010 = dma.done %s3006, 256
        $region84: #{tpu_custom_call.1} parent=79 // pred_fallthru
          _
      $region80: #{tpu_custom_call.1} parent=5 // pred_fallthru
        _
    $region6: #{tpu_custom_call.1} parent=1 // loop_footer
      %s27 = sadd.s32 1, %s23
    $region7: #{tpu_custom_call.1} parent=1 // loop_footer_branch
      %22 = sbr.rel target = $region3
    $region8: #{tpu_custom_call.1} parent=1 // loop_exit
      _
    %3011 = vsyncpa [#allocation3], 1
    %s3012 = scalar_lea.sflag [#allocation3], 1
    %3013 = vsyncpa %s3012, 1
    %3014 = vsyncpa [#allocation6], 1
    %3015 = vsyncpa [#allocation9], 1
    %3016 = vsyncpa [#allocation4], 1
    %s3017 = scalar_lea.sflag [#allocation4], 1
    %3018 = vsyncpa %s3017, 1

</llo_original>
